<compile_context>
chip_gen: v7x
topology: tpu7x:2x2x1
jax: 0.10.0
libtpu: 0.0.40
codegen_flags: <defaults>
</compile_context>

<pallas_src>
import functools
import math

import jax
import jax.numpy as jnp
from jax.experimental import pallas as pl
from jax.experimental.pallas import tpu as pltpu


def _round_up(x, m):
    return (x + m - 1) // m * m


# ---------------------------------------------------------------------------
# Kernel 1: fused causal self-attention + residual + LayerNorm1
#           (one batch element per grid step)
# ---------------------------------------------------------------------------
def attn_add_ln_kernel(x_ref, wq_ref, wk_ref, wv_ref, wo_ref, bo_ref, g_ref, beta_ref,
                       o_ref, *, heads, scale, eps):
    x = x_ref[0].astype(jnp.float32)              # (S, E) for this batch element
    S, E = x.shape
    dh = heads                                    # "head dim" == heads (module's reshape quirk)
    n_groups = E // heads                         # number of attention groups

    q = jnp.dot(x, wq_ref[...], preferred_element_type=jnp.float32)
    k = jnp.dot(x, wk_ref[...], preferred_element_type=jnp.float32)
    v = jnp.dot(x, wv_ref[...], preferred_element_type=jnp.float32)
    wo = wo_ref[...]

    row = jax.lax.broadcasted_iota(jnp.int32, (S, S), 0)
    col = jax.lax.broadcasted_iota(jnp.int32, (S, S), 1)
    causal_mask = col > row                       # True -> masked (strict upper triangle)

    # TODO(synk): the group loop is statically unrolled (E//heads iterations); fine for
    # small/toy shapes, would need a fori_loop / batched-dot restructure for huge E//heads.
    acc = jnp.zeros((S, E), dtype=jnp.float32)
    for g in range(n_groups):
        lo, hi = g * dh, (g + 1) * dh
        qg, kg, vg = q[:, lo:hi], k[:, lo:hi], v[:, lo:hi]
        # scores = qg @ kg^T / sqrt(heads)
        s = jax.lax.dot_general(qg, kg, (((1,), (1,)), ((), ())),
                                preferred_element_type=jnp.float32) * scale
        s = jnp.where(causal_mask, -jnp.inf, s)
        m = jnp.max(s, axis=-1, keepdims=True)
        p = jnp.exp(s - m)
        p = p / jnp.sum(p, axis=-1, keepdims=True)
        yg = jnp.dot(p, vg, preferred_element_type=jnp.float32)          # (S, dh)
        # Accumulate the output projection group-by-group:
        #   concat_g(yg) @ Wo == sum_g yg @ Wo[g*dh:(g+1)*dh, :]
        acc = acc + jnp.dot(yg, wo[lo:hi, :], preferred_element_type=jnp.float32)

    # Fused: attention output + bias + residual + LayerNorm1 (E is unpadded here).
    z = acc + bo_ref[...] + x
    mu = jnp.mean(z, axis=-1, keepdims=True)
    d = z - mu
    var = jnp.mean(d * d, axis=-1, keepdims=True)
    inv = jax.lax.rsqrt(var + eps)
    o_ref[0] = (d * inv * g_ref[...] + beta_ref[...]).astype(o_ref.dtype)


def attention_add_layer_norm(x, wq, wk, wv, wo, bo, gamma, beta, *, heads, eps=1e-5):
    """LayerNorm(SelfAttention(x) + x).  x: (B, S, E)."""
    B, S, E = x.shape
    assert E % heads == 0, "embed_size must be divisible by heads"
    scale = 1.0 / math.sqrt(float(heads))         # matches reference: / sqrt(k.size(-1)) == heads
    kernel = functools.partial(attn_add_ln_kernel, heads=heads, scale=scale, eps=eps)
    # NOTE: for production GPT-2 shapes E is a multiple of 128, so these blocks are
    # lane-dense; at the toy E=32 the last dim equals the full array dim (allowed).
    return pl.pallas_call(
        kernel,
        out_shape=jax.ShapeDtypeStruct((B, S, E), x.dtype),
        grid_spec=pltpu.PrefetchScalarGridSpec(
            num_scalar_prefetch=0,
            grid=(B,),
            in_specs=[
                pl.BlockSpec((1, S, E), lambda b: (b, 0, 0)),   # x (one batch element)
                pl.BlockSpec((E, E), lambda b: (0, 0)),         # Wq
                pl.BlockSpec((E, E), lambda b: (0, 0)),         # Wk
                pl.BlockSpec((E, E), lambda b: (0, 0)),         # Wv
                pl.BlockSpec((E, E), lambda b: (0, 0)),         # Wo
                pl.BlockSpec((1, E), lambda b: (0, 0)),         # bo
                pl.BlockSpec((1, E), lambda b: (0, 0)),         # ln1 gamma
                pl.BlockSpec((1, E), lambda b: (0, 0)),         # ln1 beta
            ],
            out_specs=pl.BlockSpec((1, S, E), lambda b: (b, 0, 0)),
        ),
        compiler_params=pltpu.CompilerParams(
            dimension_semantics=("parallel",),
            vmem_limit_bytes=32 * 1024 * 1024,
        ),
    )(x, wq, wk, wv, wo, bo.reshape(1, E), gamma.reshape(1, E), beta.reshape(1, E))


# ---------------------------------------------------------------------------
# Kernel 2: fused FFN + residual + LayerNorm2
#   y = LN( relu(x @ W1 + b1) @ W2 + b2 + x )   (row-tiled, hidden-tiled)
# ---------------------------------------------------------------------------
def ffn_add_ln_kernel(x_ref, w1_ref, b1_ref, w2_ref, b2_ref, g_ref, beta_ref,
                      o_ref, acc_ref, *, valid_e, eps, compute_dtype):
    h = pl.program_id(1)                          # hidden-chunk index (reduction axis)

    @pl.when(h == 0)
    def _init():
        acc_ref[...] = jnp.zeros_like(acc_ref)

    xc = x_ref[...].astype(compute_dtype)         # MXU inputs in compute dtype
    hidden = jnp.dot(xc, w1_ref[...], preferred_element_type=jnp.float32)
    hidden = jnp.maximum(hidden + b1_ref[...], 0.0)                       # bias + ReLU in f32
    acc_ref[...] += jnp.dot(hidden.astype(w2_ref.dtype), w2_ref[...],
                            preferred_element_type=jnp.float32)

    @pl.when(h == pl.num_programs(1) - 1)
    def _finalize():
        # FFN output + fc2 bias + residual (residual kept in original precision).
        z = acc_ref[...] + b2_ref[...] + x_ref[...].astype(jnp.float32)
        # LayerNorm over the true E lanes; padded lanes of z are exactly zero
        # (x, W2 columns, b2 are all zero-padded), so the sum is already correct.
        mask = jax.lax.broadcasted_iota(jnp.int32, z.shape, 1) < valid_e
        inv_e = 1.0 / float(valid_e)
        mu = jnp.sum(z, axis=-1, keepdims=True) * inv_e
        d = jnp.where(mask, z - mu, 0.0)
        var = jnp.sum(d * d, axis=-1, keepdims=True) * inv_e
        inv = jax.lax.rsqrt(var + eps)
        o_ref[...] = (d * inv * g_ref[...] + beta_ref[...]).astype(o_ref.dtype)


def ffn_add_layer_norm(x, w1, b1, w2, b2, gamma, beta, *, eps=1e-5, tm=256, th=512,
                       compute_dtype=None):
    """LayerNorm(FFN(x) + x).  x: (B, T, E). w1: (E, H), b1: (H,), w2: (H, E), b2: (E,)."""
    B, T, E = x.shape
    H = w1.shape[1]
    M = B * T
    out_dtype = x.dtype
    cdt = jnp.dtype(compute_dtype) if compute_dtype is not None else jnp.dtype(x.dtype)

    E_pad = _round_up(E, 128)                     # lane-dense loads/stores (unmasked vst)
    H_pad = _round_up(H, 128)
    tm = _round_up(min(tm, _round_up(M, 8)), 8)   # MXU-aligned rows; avoid useless padding
    th = math.gcd(H_pad, _round_up(th, 128))      # multiple of 128 that divides H_pad
    M_pad = _round_up(M, tm)

    x2d = jnp.pad(x.reshape(M, E), ((0, M_pad - M), (0, E_pad - E)))      # original dtype
    w1p = jnp.pad(w1.astype(cdt), ((0, E_pad - E), (0, H_pad - H)))
    b1p = jnp.pad(b1.astype(jnp.float32).reshape(1, H), ((0, 0), (0, H_pad - H)))
    w2p = jnp.pad(w2.astype(cdt), ((0, H_pad - H), (0, E_pad - E)))
    b2p = jnp.pad(b2.astype(jnp.float32).reshape(1, E), ((0, 0), (0, E_pad - E)))
    gp = jnp.pad(gamma.astype(jnp.float32).reshape(1, E), ((0, 0), (0, E_pad - E)))
    bp = jnp.pad(beta.astype(jnp.float32).reshape(1, E), ((0, 0), (0, E_pad - E)))

    # Explicit VMEM budget from the actual working set (double-buffered tiles + scratch).
    x_b = jnp.dtype(x.dtype).itemsize
    w_b = cdt.itemsize
    out_b = jnp.dtype(out_dtype).itemsize
    est = (2 * tm * E_pad * x_b                   # x tile
           + 2 * (E_pad * th + th * E_pad) * w_b  # W1/W2 slices
           + 2 * (th + 3 * E_pad) * 4             # b1 slice, b2, gamma, beta
           + 2 * tm * E_pad * out_b               # output tile
           + tm * E_pad * 4)                      # f32 accumulator scratch
    vmem_limit = int(min(max(2 * est, 32 * 1024 * 1024), 64 * 1024 * 1024))

    kernel = functools.partial(ffn_add_ln_kernel, valid_e=E, eps=eps, compute_dtype=cdt)
    out2d = pl.pallas_call(
        kernel,
        out_shape=jax.ShapeDtypeStruct((M_pad, E_pad), out_dtype),
        grid_spec=pltpu.PrefetchScalarGridSpec(
            num_scalar_prefetch=0,
            grid=(M_pad // tm, H_pad // th),
            in_specs=[
                pl.BlockSpec((tm, E_pad), lambda i, h: (i, 0)),   # activations (+ residual)
                pl.BlockSpec((E_pad, th), lambda i, h: (0, h)),   # W1 slice
                pl.BlockSpec((1, th), lambda i, h: (0, h)),       # b1 slice
                pl.BlockSpec((th, E_pad), lambda i, h: (h, 0)),   # W2 slice
                pl.BlockSpec((1, E_pad), lambda i, h: (0, 0)),    # b2
                pl.BlockSpec((1, E_pad), lambda i, h: (0, 0)),    # ln2 gamma
                pl.BlockSpec((1, E_pad), lambda i, h: (0, 0)),    # ln2 beta
            ],
            out_specs=pl.BlockSpec((tm, E_pad), lambda i, h: (i, 0)),
            scratch_shapes=[pltpu.VMEM((tm, E_pad), jnp.float32)],
        ),
        compiler_params=pltpu.CompilerParams(
            dimension_semantics=("parallel", "arbitrary"),
            vmem_limit_bytes=vmem_limit,
        ),
    )(x2d, w1p, b1p, w2p, b2p, gp, bp)

    return out2d[:M, :E].reshape(B, T, E)


# ---------------------------------------------------------------------------
# Full TransformerBlock forward (eval mode: dropout == identity)
# ---------------------------------------------------------------------------
def transformer_block(x, p, *, heads, ffn_compute_dtype=None):
    h = attention_add_layer_norm(x, p["wq"], p["wk"], p["wv"], p["wo"], p["bo"],
                                 p["ln1_g"], p["ln1_b"], heads=heads)
    return ffn_add_layer_norm(h, p["w1"], p["b1"], p["w2"], p["b2"],
                              p["ln2_g"], p["ln2_b"],
                              compute_dtype=ffn_compute_dtype)


# ---------------------------------------------------------------------------
# Pure-JAX reference (same math as the PyTorch forward, eval mode)
# ---------------------------------------------------------------------------
def ref_transformer_block(x, p, *, heads, eps=1e-5):
    B, S, E = x.shape
    dh = heads
    G = E // heads

    def ln(z, g, b):
        mu = jnp.mean(z, axis=-1, keepdims=True)
        var = jnp.mean((z - mu) ** 2, axis=-1, keepdims=True)
        return (z - mu) * jax.lax.rsqrt(var + eps) * g + b

    q, k, v = x @ p["wq"], x @ p["wk"], x @ p["wv"]

    def split(t):  # replicate view(B,S,E//H,H).transpose(1,2)
        return t.reshape(B, S, G, dh).transpose(0, 2, 1, 3)

    q, k, v = split(q), split(k), split(v)
    s = (q @ jnp.swapaxes(k, -1, -2)) / math.sqrt(float(dh))
    mask = jnp.triu(jnp.ones((S, S)), k=1)
    s = jnp.where(mask == 1, -jnp.inf, s)
    a = jax.nn.softmax(s, axis=-1)
    y = (a @ v).transpose(0, 2, 1, 3).reshape(B, S, E)
    attn_out = y @ p["wo"] + p["bo"]

    h = ln(attn_out + x, p["ln1_g"], p["ln1_b"])
    f = jnp.maximum(h @ p["w1"] + p["b1"], 0.0) @ p["w2"] + p["b2"]
    return ln(f + h, p["ln2_g"], p["ln2_b"])


if __name__ == "__main__":
    B, T, E, heads = 2, 8, 32, 4
    H = 4 * E

    key = jax.random.PRNGKey(0)
    ks = jax.random.split(key, 14)
    x = jax.random.normal(ks[0], (B, T, E), dtype=jnp.float32)

    def init(k, shape, s=0.02):
        return jax.random.normal(k, shape, dtype=jnp.float32) * s

    params = dict(
        wq=init(ks[1], (E, E)), wk=init(ks[2], (E, E)), wv=init(ks[3], (E, E)),
        wo=init(ks[4], (E, E)), bo=init(ks[5], (E,)),
        ln1_g=1.0 + 0.1 * jax.random.normal(ks[6], (E,), dtype=jnp.float32),
        ln1_b=0.1 * jax.random.normal(ks[7], (E,), dtype=jnp.float32),
        w1=init(ks[8], (E, H)), b1=init(ks[9], (H,)),
        w2=init(ks[10], (H, E)), b2=init(ks[11], (E,)),
        ln2_g=1.0 + 0.1 * jax.random.normal(ks[12], (E,), dtype=jnp.float32),
        ln2_b=0.1 * jax.random.normal(ks[13], (E,), dtype=jnp.float32),
    )

    out = jax.block_until_ready(transformer_block(x, params, heads=heads))
    ref = ref_transformer_block(x, params, heads=heads)
    assert out.shape == (B, T, E)
    # Tolerance accommodates MXU default-precision differences between Mosaic and XLA dots.
    assert jnp.allclose(out, ref, atol=1e-3, rtol=1e-3), float(jnp.max(jnp.abs(out - ref)))

    # bf16 FFN compute path (v6e/v7x recommendation: bf16 MXU inputs, f32 accumulation;
    # residual stays f32 inside the kernel).
    out_bf16 = jax.block_until_ready(
        transformer_block(x, params, heads=heads, ffn_compute_dtype=jnp.bfloat16))
    assert jnp.allclose(out_bf16, ref, atol=5e-2, rtol=5e-2)

    print("KERNEL_OK")
</pallas_src>

<mosaic_0001>
module attributes {stable_mosaic.version = 11 : i64} {
  func.func @attn_add_ln_kernel(%arg0: i32, %arg1: memref<1x8x32xf32, #tpu.memory_space<vmem>>, %arg2: memref<32x32xf32, #tpu.memory_space<vmem>>, %arg3: memref<32x32xf32, #tpu.memory_space<vmem>>, %arg4: memref<32x32xf32, #tpu.memory_space<vmem>>, %arg5: memref<32x32xf32, #tpu.memory_space<vmem>>, %arg6: memref<1x32xf32, #tpu.memory_space<vmem>>, %arg7: memref<1x32xf32, #tpu.memory_space<vmem>>, %arg8: memref<1x32xf32, #tpu.memory_space<vmem>>, %arg9: memref<1x8x32xf32, #tpu.memory_space<vmem>>) attributes {dimension_semantics = [#tpu.dimension_semantics<parallel>], iteration_bounds = array<i64: 2>, scalar_prefetch = 0 : i64, scratch_operands = 0 : i64, tpu.core_type = #tpu.core_type<tc>, window_params = [{transform_indices = @transform_0, window_bounds = array<i64: 1, 8, 32>}, {pipeline_mode = #tpu.pipeline_mode<synchronous>, transform_indices = @transform_1, window_bounds = array<i64: 32, 32>}, {pipeline_mode = #tpu.pipeline_mode<synchronous>, transform_indices = @transform_2, window_bounds = array<i64: 32, 32>}, {pipeline_mode = #tpu.pipeline_mode<synchronous>, transform_indices = @transform_3, window_bounds = array<i64: 32, 32>}, {pipeline_mode = #tpu.pipeline_mode<synchronous>, transform_indices = @transform_4, window_bounds = array<i64: 32, 32>}, {pipeline_mode = #tpu.pipeline_mode<synchronous>, transform_indices = @transform_5, window_bounds = array<i64: 1, 32>}, {pipeline_mode = #tpu.pipeline_mode<synchronous>, transform_indices = @transform_6, window_bounds = array<i64: 1, 32>}, {pipeline_mode = #tpu.pipeline_mode<synchronous>, transform_indices = @transform_7, window_bounds = array<i64: 1, 32>}, {transform_indices = @transform_8, window_bounds = array<i64: 1, 8, 32>}]} {
    %c0 = arith.constant 0 : index
    %c0_0 = arith.constant 0 : index
    %c0_1 = arith.constant 0 : index
    %0 = vector.load %arg1[%c0, %c0_0, %c0_1] : memref<1x8x32xf32, #tpu.memory_space<vmem>>, vector<1x8x32xf32>
    %1 = vector.shape_cast %0 : vector<1x8x32xf32> to vector<8x32xf32>
    %c0_2 = arith.constant 0 : index
    %c0_3 = arith.constant 0 : index
    %2 = vector.load %arg2[%c0_2, %c0_3] : memref<32x32xf32, #tpu.memory_space<vmem>>, vector<32x32xf32>
    %cst = arith.constant dense<0.000000e+00> : vector<8x32xf32>
    %3 = tpu.matmul %1, %2, %cst {dimension_numbers = #tpu.dot_dimension_numbers<[1], [0], [0], [1], [0, 0, 1, 1], [], []>} : vector<8x32xf32>, vector<32x32xf32>, vector<8x32xf32> -> vector<8x32xf32>
    %c0_4 = arith.constant 0 : index
    %c0_5 = arith.constant 0 : index
    %4 = vector.load %arg3[%c0_4, %c0_5] : memref<32x32xf32, #tpu.memory_space<vmem>>, vector<32x32xf32>
    %cst_6 = arith.constant dense<0.000000e+00> : vector<8x32xf32>
    %5 = tpu.matmul %1, %4, %cst_6 {dimension_numbers = #tpu.dot_dimension_numbers<[1], [0], [0], [1], [0, 0, 1, 1], [], []>} : vector<8x32xf32>, vector<32x32xf32>, vector<8x32xf32> -> vector<8x32xf32>
    %c0_7 = arith.constant 0 : index
    %c0_8 = arith.constant 0 : index
    %6 = vector.load %arg4[%c0_7, %c0_8] : memref<32x32xf32, #tpu.memory_space<vmem>>, vector<32x32xf32>
    %cst_9 = arith.constant dense<0.000000e+00> : vector<8x32xf32>
    %7 = tpu.matmul %1, %6, %cst_9 {dimension_numbers = #tpu.dot_dimension_numbers<[1], [0], [0], [1], [0, 0, 1, 1], [], []>} : vector<8x32xf32>, vector<32x32xf32>, vector<8x32xf32> -> vector<8x32xf32>
    %c0_10 = arith.constant 0 : index
    %c0_11 = arith.constant 0 : index
    %8 = vector.load %arg5[%c0_10, %c0_11] : memref<32x32xf32, #tpu.memory_space<vmem>>, vector<32x32xf32>
    %9 = tpu.iota {dimensions = array<i32: 0>} : vector<8x8xi32>
    %10 = tpu.iota {dimensions = array<i32: 1>} : vector<8x8xi32>
    %11 = arith.cmpi sgt, %10, %9 : vector<8x8xi32>
    %cst_12 = arith.constant 0.000000e+00 : f32
    %12 = vector.broadcast %cst_12 : f32 to vector<8x32xf32>
    %13 = vector.extract_strided_slice %3 {offsets = [0, 0], sizes = [8, 4], strides = [1, 1]} : vector<8x32xf32> to vector<8x4xf32>
    %14 = vector.extract_strided_slice %5 {offsets = [0, 0], sizes = [8, 4], strides = [1, 1]} : vector<8x32xf32> to vector<8x4xf32>
    %15 = vector.extract_strided_slice %7 {offsets = [0, 0], sizes = [8, 4], strides = [1, 1]} : vector<8x32xf32> to vector<8x4xf32>
    %cst_13 = arith.constant dense<0.000000e+00> : vector<8x8xf32>
    %16 = tpu.matmul %13, %14, %cst_13 {dimension_numbers = #tpu.dot_dimension_numbers<[1], [1], [0], [0], [0, 0, 1, 0], [], []>} : vector<8x4xf32>, vector<8x4xf32>, vector<8x8xf32> -> vector<8x8xf32>
    %cst_14 = arith.constant 5.000000e-01 : f32
    %17 = vector.broadcast %cst_14 : f32 to vector<8x8xf32>
    %18 = arith.mulf %16, %17 : vector<8x8xf32>
    %cst_15 = arith.constant 0xFF800000 : f32
    %19 = vector.broadcast %cst_15 : f32 to vector<8x8xf32>
    %20 = arith.select %11, %19, %18 : vector<8x8xi1>, vector<8x8xf32>
    %cst_16 = arith.constant dense<0xFF800000> : vector<8xf32>
    %21 = vector.multi_reduction <maximumf>, %20, %cst_16 [1] : vector<8x8xf32> to vector<8xf32>
    %22 = vector.shape_cast %21 : vector<8xf32> to vector<8x1xf32>
    %23 = vector.broadcast %22 : vector<8x1xf32> to vector<8x8xf32>
    %24 = arith.subf %20, %23 : vector<8x8xf32>
    %25 = math.exp %24 : vector<8x8xf32>
    %cst_17 = arith.constant dense<0.000000e+00> : vector<8xf32>
    %26 = vector.multi_reduction <add>, %25, %cst_17 [1] : vector<8x8xf32> to vector<8xf32>
    %27 = vector.shape_cast %26 : vector<8xf32> to vector<8x1xf32>
    %28 = vector.broadcast %27 : vector<8x1xf32> to vector<8x8xf32>
    %29 = arith.divf %25, %28 : vector<8x8xf32>
    %cst_18 = arith.constant dense<0.000000e+00> : vector<8x4xf32>
    %30 = tpu.matmul %29, %15, %cst_18 {dimension_numbers = #tpu.dot_dimension_numbers<[1], [0], [0], [1], [0, 0, 1, 1], [], []>} : vector<8x8xf32>, vector<8x4xf32>, vector<8x4xf32> -> vector<8x4xf32>
    %31 = vector.extract_strided_slice %8 {offsets = [0, 0], sizes = [4, 32], strides = [1, 1]} : vector<32x32xf32> to vector<4x32xf32>
    %cst_19 = arith.constant dense<0.000000e+00> : vector<8x32xf32>
    %32 = tpu.matmul %30, %31, %cst_19 {dimension_numbers = #tpu.dot_dimension_numbers<[1], [0], [0], [1], [0, 0, 1, 1], [], []>} : vector<8x4xf32>, vector<4x32xf32>, vector<8x32xf32> -> vector<8x32xf32>
    %33 = arith.addf %12, %32 : vector<8x32xf32>
    %34 = vector.extract_strided_slice %3 {offsets = [0, 4], sizes = [8, 4], strides = [1, 1]} : vector<8x32xf32> to vector<8x4xf32>
    %35 = vector.extract_strided_slice %5 {offsets = [0, 4], sizes = [8, 4], strides = [1, 1]} : vector<8x32xf32> to vector<8x4xf32>
    %36 = vector.extract_strided_slice %7 {offsets = [0, 4], sizes = [8, 4], strides = [1, 1]} : vector<8x32xf32> to vector<8x4xf32>
    %cst_20 = arith.constant dense<0.000000e+00> : vector<8x8xf32>
    %37 = tpu.matmul %34, %35, %cst_20 {dimension_numbers = #tpu.dot_dimension_numbers<[1], [1], [0], [0], [0, 0, 1, 0], [], []>} : vector<8x4xf32>, vector<8x4xf32>, vector<8x8xf32> -> vector<8x8xf32>
    %cst_21 = arith.constant 5.000000e-01 : f32
    %38 = vector.broadcast %cst_21 : f32 to vector<8x8xf32>
    %39 = arith.mulf %37, %38 : vector<8x8xf32>
    %cst_22 = arith.constant 0xFF800000 : f32
    %40 = vector.broadcast %cst_22 : f32 to vector<8x8xf32>
    %41 = arith.select %11, %40, %39 : vector<8x8xi1>, vector<8x8xf32>
    %cst_23 = arith.constant dense<0xFF800000> : vector<8xf32>
    %42 = vector.multi_reduction <maximumf>, %41, %cst_23 [1] : vector<8x8xf32> to vector<8xf32>
    %43 = vector.shape_cast %42 : vector<8xf32> to vector<8x1xf32>
    %44 = vector.broadcast %43 : vector<8x1xf32> to vector<8x8xf32>
    %45 = arith.subf %41, %44 : vector<8x8xf32>
    %46 = math.exp %45 : vector<8x8xf32>
    %cst_24 = arith.constant dense<0.000000e+00> : vector<8xf32>
    %47 = vector.multi_reduction <add>, %46, %cst_24 [1] : vector<8x8xf32> to vector<8xf32>
    %48 = vector.shape_cast %47 : vector<8xf32> to vector<8x1xf32>
    %49 = vector.broadcast %48 : vector<8x1xf32> to vector<8x8xf32>
    %50 = arith.divf %46, %49 : vector<8x8xf32>
    %cst_25 = arith.constant dense<0.000000e+00> : vector<8x4xf32>
    %51 = tpu.matmul %50, %36, %cst_25 {dimension_numbers = #tpu.dot_dimension_numbers<[1], [0], [0], [1], [0, 0, 1, 1], [], []>} : vector<8x8xf32>, vector<8x4xf32>, vector<8x4xf32> -> vector<8x4xf32>
    %52 = vector.extract_strided_slice %8 {offsets = [4, 0], sizes = [4, 32], strides = [1, 1]} : vector<32x32xf32> to vector<4x32xf32>
    %cst_26 = arith.constant dense<0.000000e+00> : vector<8x32xf32>
    %53 = tpu.matmul %51, %52, %cst_26 {dimension_numbers = #tpu.dot_dimension_numbers<[1], [0], [0], [1], [0, 0, 1, 1], [], []>} : vector<8x4xf32>, vector<4x32xf32>, vector<8x32xf32> -> vector<8x32xf32>
    %54 = arith.addf %33, %53 : vector<8x32xf32>
    %55 = vector.extract_strided_slice %3 {offsets = [0, 8], sizes = [8, 4], strides = [1, 1]} : vector<8x32xf32> to vector<8x4xf32>
    %56 = vector.extract_strided_slice %5 {offsets = [0, 8], sizes = [8, 4], strides = [1, 1]} : vector<8x32xf32> to vector<8x4xf32>
    %57 = vector.extract_strided_slice %7 {offsets = [0, 8], sizes = [8, 4], strides = [1, 1]} : vector<8x32xf32> to vector<8x4xf32>
    %cst_27 = arith.constant dense<0.000000e+00> : vector<8x8xf32>
    %58 = tpu.matmul %55, %56, %cst_27 {dimension_numbers = #tpu.dot_dimension_numbers<[1], [1], [0], [0], [0, 0, 1, 0], [], []>} : vector<8x4xf32>, vector<8x4xf32>, vector<8x8xf32> -> vector<8x8xf32>
    %cst_28 = arith.constant 5.000000e-01 : f32
    %59 = vector.broadcast %cst_28 : f32 to vector<8x8xf32>
    %60 = arith.mulf %58, %59 : vector<8x8xf32>
    %cst_29 = arith.constant 0xFF800000 : f32
    %61 = vector.broadcast %cst_29 : f32 to vector<8x8xf32>
    %62 = arith.select %11, %61, %60 : vector<8x8xi1>, vector<8x8xf32>
    %cst_30 = arith.constant dense<0xFF800000> : vector<8xf32>
    %63 = vector.multi_reduction <maximumf>, %62, %cst_30 [1] : vector<8x8xf32> to vector<8xf32>
    %64 = vector.shape_cast %63 : vector<8xf32> to vector<8x1xf32>
    %65 = vector.broadcast %64 : vector<8x1xf32> to vector<8x8xf32>
    %66 = arith.subf %62, %65 : vector<8x8xf32>
    %67 = math.exp %66 : vector<8x8xf32>
    %cst_31 = arith.constant dense<0.000000e+00> : vector<8xf32>
    %68 = vector.multi_reduction <add>, %67, %cst_31 [1] : vector<8x8xf32> to vector<8xf32>
    %69 = vector.shape_cast %68 : vector<8xf32> to vector<8x1xf32>
    %70 = vector.broadcast %69 : vector<8x1xf32> to vector<8x8xf32>
    %71 = arith.divf %67, %70 : vector<8x8xf32>
    %cst_32 = arith.constant dense<0.000000e+00> : vector<8x4xf32>
    %72 = tpu.matmul %71, %57, %cst_32 {dimension_numbers = #tpu.dot_dimension_numbers<[1], [0], [0], [1], [0, 0, 1, 1], [], []>} : vector<8x8xf32>, vector<8x4xf32>, vector<8x4xf32> -> vector<8x4xf32>
    %73 = vector.extract_strided_slice %8 {offsets = [8, 0], sizes = [4, 32], strides = [1, 1]} : vector<32x32xf32> to vector<4x32xf32>
    %cst_33 = arith.constant dense<0.000000e+00> : vector<8x32xf32>
    %74 = tpu.matmul %72, %73, %cst_33 {dimension_numbers = #tpu.dot_dimension_numbers<[1], [0], [0], [1], [0, 0, 1, 1], [], []>} : vector<8x4xf32>, vector<4x32xf32>, vector<8x32xf32> -> vector<8x32xf32>
    %75 = arith.addf %54, %74 : vector<8x32xf32>
    %76 = vector.extract_strided_slice %3 {offsets = [0, 12], sizes = [8, 4], strides = [1, 1]} : vector<8x32xf32> to vector<8x4xf32>
    %77 = vector.extract_strided_slice %5 {offsets = [0, 12], sizes = [8, 4], strides = [1, 1]} : vector<8x32xf32> to vector<8x4xf32>
    %78 = vector.extract_strided_slice %7 {offsets = [0, 12], sizes = [8, 4], strides = [1, 1]} : vector<8x32xf32> to vector<8x4xf32>
    %cst_34 = arith.constant dense<0.000000e+00> : vector<8x8xf32>
    %79 = tpu.matmul %76, %77, %cst_34 {dimension_numbers = #tpu.dot_dimension_numbers<[1], [1], [0], [0], [0, 0, 1, 0], [], []>} : vector<8x4xf32>, vector<8x4xf32>, vector<8x8xf32> -> vector<8x8xf32>
    %cst_35 = arith.constant 5.000000e-01 : f32
    %80 = vector.broadcast %cst_35 : f32 to vector<8x8xf32>
    %81 = arith.mulf %79, %80 : vector<8x8xf32>
    %cst_36 = arith.constant 0xFF800000 : f32
    %82 = vector.broadcast %cst_36 : f32 to vector<8x8xf32>
    %83 = arith.select %11, %82, %81 : vector<8x8xi1>, vector<8x8xf32>
    %cst_37 = arith.constant dense<0xFF800000> : vector<8xf32>
    %84 = vector.multi_reduction <maximumf>, %83, %cst_37 [1] : vector<8x8xf32> to vector<8xf32>
    %85 = vector.shape_cast %84 : vector<8xf32> to vector<8x1xf32>
    %86 = vector.broadcast %85 : vector<8x1xf32> to vector<8x8xf32>
    %87 = arith.subf %83, %86 : vector<8x8xf32>
    %88 = math.exp %87 : vector<8x8xf32>
    %cst_38 = arith.constant dense<0.000000e+00> : vector<8xf32>
    %89 = vector.multi_reduction <add>, %88, %cst_38 [1] : vector<8x8xf32> to vector<8xf32>
    %90 = vector.shape_cast %89 : vector<8xf32> to vector<8x1xf32>
    %91 = vector.broadcast %90 : vector<8x1xf32> to vector<8x8xf32>
    %92 = arith.divf %88, %91 : vector<8x8xf32>
    %cst_39 = arith.constant dense<0.000000e+00> : vector<8x4xf32>
    %93 = tpu.matmul %92, %78, %cst_39 {dimension_numbers = #tpu.dot_dimension_numbers<[1], [0], [0], [1], [0, 0, 1, 1], [], []>} : vector<8x8xf32>, vector<8x4xf32>, vector<8x4xf32> -> vector<8x4xf32>
    %94 = vector.extract_strided_slice %8 {offsets = [12, 0], sizes = [4, 32], strides = [1, 1]} : vector<32x32xf32> to vector<4x32xf32>
    %cst_40 = arith.constant dense<0.000000e+00> : vector<8x32xf32>
    %95 = tpu.matmul %93, %94, %cst_40 {dimension_numbers = #tpu.dot_dimension_numbers<[1], [0], [0], [1], [0, 0, 1, 1], [], []>} : vector<8x4xf32>, vector<4x32xf32>, vector<8x32xf32> -> vector<8x32xf32>
    %96 = arith.addf %75, %95 : vector<8x32xf32>
    %97 = vector.extract_strided_slice %3 {offsets = [0, 16], sizes = [8, 4], strides = [1, 1]} : vector<8x32xf32> to vector<8x4xf32>
    %98 = vector.extract_strided_slice %5 {offsets = [0, 16], sizes = [8, 4], strides = [1, 1]} : vector<8x32xf32> to vector<8x4xf32>
    %99 = vector.extract_strided_slice %7 {offsets = [0, 16], sizes = [8, 4], strides = [1, 1]} : vector<8x32xf32> to vector<8x4xf32>
    %cst_41 = arith.constant dense<0.000000e+00> : vector<8x8xf32>
    %100 = tpu.matmul %97, %98, %cst_41 {dimension_numbers = #tpu.dot_dimension_numbers<[1], [1], [0], [0], [0, 0, 1, 0], [], []>} : vector<8x4xf32>, vector<8x4xf32>, vector<8x8xf32> -> vector<8x8xf32>
    %cst_42 = arith.constant 5.000000e-01 : f32
    %101 = vector.broadcast %cst_42 : f32 to vector<8x8xf32>
    %102 = arith.mulf %100, %101 : vector<8x8xf32>
    %cst_43 = arith.constant 0xFF800000 : f32
    %103 = vector.broadcast %cst_43 : f32 to vector<8x8xf32>
    %104 = arith.select %11, %103, %102 : vector<8x8xi1>, vector<8x8xf32>
    %cst_44 = arith.constant dense<0xFF800000> : vector<8xf32>
    %105 = vector.multi_reduction <maximumf>, %104, %cst_44 [1] : vector<8x8xf32> to vector<8xf32>
    %106 = vector.shape_cast %105 : vector<8xf32> to vector<8x1xf32>
    %107 = vector.broadcast %106 : vector<8x1xf32> to vector<8x8xf32>
    %108 = arith.subf %104, %107 : vector<8x8xf32>
    %109 = math.exp %108 : vector<8x8xf32>
    %cst_45 = arith.constant dense<0.000000e+00> : vector<8xf32>
    %110 = vector.multi_reduction <add>, %109, %cst_45 [1] : vector<8x8xf32> to vector<8xf32>
    %111 = vector.shape_cast %110 : vector<8xf32> to vector<8x1xf32>
    %112 = vector.broadcast %111 : vector<8x1xf32> to vector<8x8xf32>
    %113 = arith.divf %109, %112 : vector<8x8xf32>
    %cst_46 = arith.constant dense<0.000000e+00> : vector<8x4xf32>
    %114 = tpu.matmul %113, %99, %cst_46 {dimension_numbers = #tpu.dot_dimension_numbers<[1], [0], [0], [1], [0, 0, 1, 1], [], []>} : vector<8x8xf32>, vector<8x4xf32>, vector<8x4xf32> -> vector<8x4xf32>
    %115 = vector.extract_strided_slice %8 {offsets = [16, 0], sizes = [4, 32], strides = [1, 1]} : vector<32x32xf32> to vector<4x32xf32>
    %cst_47 = arith.constant dense<0.000000e+00> : vector<8x32xf32>
    %116 = tpu.matmul %114, %115, %cst_47 {dimension_numbers = #tpu.dot_dimension_numbers<[1], [0], [0], [1], [0, 0, 1, 1], [], []>} : vector<8x4xf32>, vector<4x32xf32>, vector<8x32xf32> -> vector<8x32xf32>
    %117 = arith.addf %96, %116 : vector<8x32xf32>
    %118 = vector.extract_strided_slice %3 {offsets = [0, 20], sizes = [8, 4], strides = [1, 1]} : vector<8x32xf32> to vector<8x4xf32>
    %119 = vector.extract_strided_slice %5 {offsets = [0, 20], sizes = [8, 4], strides = [1, 1]} : vector<8x32xf32> to vector<8x4xf32>
    %120 = vector.extract_strided_slice %7 {offsets = [0, 20], sizes = [8, 4], strides = [1, 1]} : vector<8x32xf32> to vector<8x4xf32>
    %cst_48 = arith.constant dense<0.000000e+00> : vector<8x8xf32>
    %121 = tpu.matmul %118, %119, %cst_48 {dimension_numbers = #tpu.dot_dimension_numbers<[1], [1], [0], [0], [0, 0, 1, 0], [], []>} : vector<8x4xf32>, vector<8x4xf32>, vector<8x8xf32> -> vector<8x8xf32>
    %cst_49 = arith.constant 5.000000e-01 : f32
    %122 = vector.broadcast %cst_49 : f32 to vector<8x8xf32>
    %123 = arith.mulf %121, %122 : vector<8x8xf32>
    %cst_50 = arith.constant 0xFF800000 : f32
    %124 = vector.broadcast %cst_50 : f32 to vector<8x8xf32>
    %125 = arith.select %11, %124, %123 : vector<8x8xi1>, vector<8x8xf32>
    %cst_51 = arith.constant dense<0xFF800000> : vector<8xf32>
    %126 = vector.multi_reduction <maximumf>, %125, %cst_51 [1] : vector<8x8xf32> to vector<8xf32>
    %127 = vector.shape_cast %126 : vector<8xf32> to vector<8x1xf32>
    %128 = vector.broadcast %127 : vector<8x1xf32> to vector<8x8xf32>
    %129 = arith.subf %125, %128 : vector<8x8xf32>
    %130 = math.exp %129 : vector<8x8xf32>
    %cst_52 = arith.constant dense<0.000000e+00> : vector<8xf32>
    %131 = vector.multi_reduction <add>, %130, %cst_52 [1] : vector<8x8xf32> to vector<8xf32>
    %132 = vector.shape_cast %131 : vector<8xf32> to vector<8x1xf32>
    %133 = vector.broadcast %132 : vector<8x1xf32> to vector<8x8xf32>
    %134 = arith.divf %130, %133 : vector<8x8xf32>
    %cst_53 = arith.constant dense<0.000000e+00> : vector<8x4xf32>
    %135 = tpu.matmul %134, %120, %cst_53 {dimension_numbers = #tpu.dot_dimension_numbers<[1], [0], [0], [1], [0, 0, 1, 1], [], []>} : vector<8x8xf32>, vector<8x4xf32>, vector<8x4xf32> -> vector<8x4xf32>
    %136 = vector.extract_strided_slice %8 {offsets = [20, 0], sizes = [4, 32], strides = [1, 1]} : vector<32x32xf32> to vector<4x32xf32>
    %cst_54 = arith.constant dense<0.000000e+00> : vector<8x32xf32>
    %137 = tpu.matmul %135, %136, %cst_54 {dimension_numbers = #tpu.dot_dimension_numbers<[1], [0], [0], [1], [0, 0, 1, 1], [], []>} : vector<8x4xf32>, vector<4x32xf32>, vector<8x32xf32> -> vector<8x32xf32>
    %138 = arith.addf %117, %137 : vector<8x32xf32>
    %139 = vector.extract_strided_slice %3 {offsets = [0, 24], sizes = [8, 4], strides = [1, 1]} : vector<8x32xf32> to vector<8x4xf32>
    %140 = vector.extract_strided_slice %5 {offsets = [0, 24], sizes = [8, 4], strides = [1, 1]} : vector<8x32xf32> to vector<8x4xf32>
    %141 = vector.extract_strided_slice %7 {offsets = [0, 24], sizes = [8, 4], strides = [1, 1]} : vector<8x32xf32> to vector<8x4xf32>
    %cst_55 = arith.constant dense<0.000000e+00> : vector<8x8xf32>
    %142 = tpu.matmul %139, %140, %cst_55 {dimension_numbers = #tpu.dot_dimension_numbers<[1], [1], [0], [0], [0, 0, 1, 0], [], []>} : vector<8x4xf32>, vector<8x4xf32>, vector<8x8xf32> -> vector<8x8xf32>
    %cst_56 = arith.constant 5.000000e-01 : f32
    %143 = vector.broadcast %cst_56 : f32 to vector<8x8xf32>
    %144 = arith.mulf %142, %143 : vector<8x8xf32>
    %cst_57 = arith.constant 0xFF800000 : f32
    %145 = vector.broadcast %cst_57 : f32 to vector<8x8xf32>
    %146 = arith.select %11, %145, %144 : vector<8x8xi1>, vector<8x8xf32>
    %cst_58 = arith.constant dense<0xFF800000> : vector<8xf32>
    %147 = vector.multi_reduction <maximumf>, %146, %cst_58 [1] : vector<8x8xf32> to vector<8xf32>
    %148 = vector.shape_cast %147 : vector<8xf32> to vector<8x1xf32>
    %149 = vector.broadcast %148 : vector<8x1xf32> to vector<8x8xf32>
    %150 = arith.subf %146, %149 : vector<8x8xf32>
    %151 = math.exp %150 : vector<8x8xf32>
    %cst_59 = arith.constant dense<0.000000e+00> : vector<8xf32>
    %152 = vector.multi_reduction <add>, %151, %cst_59 [1] : vector<8x8xf32> to vector<8xf32>
    %153 = vector.shape_cast %152 : vector<8xf32> to vector<8x1xf32>
    %154 = vector.broadcast %153 : vector<8x1xf32> to vector<8x8xf32>
    %155 = arith.divf %151, %154 : vector<8x8xf32>
    %cst_60 = arith.constant dense<0.000000e+00> : vector<8x4xf32>
    %156 = tpu.matmul %155, %141, %cst_60 {dimension_numbers = #tpu.dot_dimension_numbers<[1], [0], [0], [1], [0, 0, 1, 1], [], []>} : vector<8x8xf32>, vector<8x4xf32>, vector<8x4xf32> -> vector<8x4xf32>
    %157 = vector.extract_strided_slice %8 {offsets = [24, 0], sizes = [4, 32], strides = [1, 1]} : vector<32x32xf32> to vector<4x32xf32>
    %cst_61 = arith.constant dense<0.000000e+00> : vector<8x32xf32>
    %158 = tpu.matmul %156, %157, %cst_61 {dimension_numbers = #tpu.dot_dimension_numbers<[1], [0], [0], [1], [0, 0, 1, 1], [], []>} : vector<8x4xf32>, vector<4x32xf32>, vector<8x32xf32> -> vector<8x32xf32>
    %159 = arith.addf %138, %158 : vector<8x32xf32>
    %160 = vector.extract_strided_slice %3 {offsets = [0, 28], sizes = [8, 4], strides = [1, 1]} : vector<8x32xf32> to vector<8x4xf32>
    %161 = vector.extract_strided_slice %5 {offsets = [0, 28], sizes = [8, 4], strides = [1, 1]} : vector<8x32xf32> to vector<8x4xf32>
    %162 = vector.extract_strided_slice %7 {offsets = [0, 28], sizes = [8, 4], strides = [1, 1]} : vector<8x32xf32> to vector<8x4xf32>
    %cst_62 = arith.constant dense<0.000000e+00> : vector<8x8xf32>
    %163 = tpu.matmul %160, %161, %cst_62 {dimension_numbers = #tpu.dot_dimension_numbers<[1], [1], [0], [0], [0, 0, 1, 0], [], []>} : vector<8x4xf32>, vector<8x4xf32>, vector<8x8xf32> -> vector<8x8xf32>
    %cst_63 = arith.constant 5.000000e-01 : f32
    %164 = vector.broadcast %cst_63 : f32 to vector<8x8xf32>
    %165 = arith.mulf %163, %164 : vector<8x8xf32>
    %cst_64 = arith.constant 0xFF800000 : f32
    %166 = vector.broadcast %cst_64 : f32 to vector<8x8xf32>
    %167 = arith.select %11, %166, %165 : vector<8x8xi1>, vector<8x8xf32>
    %cst_65 = arith.constant dense<0xFF800000> : vector<8xf32>
    %168 = vector.multi_reduction <maximumf>, %167, %cst_65 [1] : vector<8x8xf32> to vector<8xf32>
    %169 = vector.shape_cast %168 : vector<8xf32> to vector<8x1xf32>
    %170 = vector.broadcast %169 : vector<8x1xf32> to vector<8x8xf32>
    %171 = arith.subf %167, %170 : vector<8x8xf32>
    %172 = math.exp %171 : vector<8x8xf32>
    %cst_66 = arith.constant dense<0.000000e+00> : vector<8xf32>
    %173 = vector.multi_reduction <add>, %172, %cst_66 [1] : vector<8x8xf32> to vector<8xf32>
    %174 = vector.shape_cast %173 : vector<8xf32> to vector<8x1xf32>
    %175 = vector.broadcast %174 : vector<8x1xf32> to vector<8x8xf32>
    %176 = arith.divf %172, %175 : vector<8x8xf32>
    %cst_67 = arith.constant dense<0.000000e+00> : vector<8x4xf32>
    %177 = tpu.matmul %176, %162, %cst_67 {dimension_numbers = #tpu.dot_dimension_numbers<[1], [0], [0], [1], [0, 0, 1, 1], [], []>} : vector<8x8xf32>, vector<8x4xf32>, vector<8x4xf32> -> vector<8x4xf32>
    %178 = vector.extract_strided_slice %8 {offsets = [28, 0], sizes = [4, 32], strides = [1, 1]} : vector<32x32xf32> to vector<4x32xf32>
    %cst_68 = arith.constant dense<0.000000e+00> : vector<8x32xf32>
    %179 = tpu.matmul %177, %178, %cst_68 {dimension_numbers = #tpu.dot_dimension_numbers<[1], [0], [0], [1], [0, 0, 1, 1], [], []>} : vector<8x4xf32>, vector<4x32xf32>, vector<8x32xf32> -> vector<8x32xf32>
    %180 = arith.addf %159, %179 : vector<8x32xf32>
    %c0_69 = arith.constant 0 : index
    %c0_70 = arith.constant 0 : index
    %181 = vector.load %arg6[%c0_69, %c0_70] : memref<1x32xf32, #tpu.memory_space<vmem>>, vector<1x32xf32>
    %182 = vector.broadcast %181 : vector<1x32xf32> to vector<8x32xf32>
    %183 = arith.addf %180, %182 : vector<8x32xf32>
    %184 = arith.addf %183, %1 : vector<8x32xf32>
    %cst_71 = arith.constant dense<0.000000e+00> : vector<8xf32>
    %185 = vector.multi_reduction <add>, %184, %cst_71 [1] : vector<8x32xf32> to vector<8xf32>
    %186 = vector.shape_cast %185 : vector<8xf32> to vector<8x1xf32>
    %cst_72 = arith.constant 3.200000e+01 : f32
    %187 = vector.broadcast %cst_72 : f32 to vector<8x1xf32>
    %188 = arith.divf %186, %187 : vector<8x1xf32>
    %189 = vector.broadcast %188 : vector<8x1xf32> to vector<8x32xf32>
    %190 = arith.subf %184, %189 : vector<8x32xf32>
    %191 = arith.mulf %190, %190 : vector<8x32xf32>
    %cst_73 = arith.constant dense<0.000000e+00> : vector<8xf32>
    %192 = vector.multi_reduction <add>, %191, %cst_73 [1] : vector<8x32xf32> to vector<8xf32>
    %193 = vector.shape_cast %192 : vector<8xf32> to vector<8x1xf32>
    %cst_74 = arith.constant 3.200000e+01 : f32
    %194 = vector.broadcast %cst_74 : f32 to vector<8x1xf32>
    %195 = arith.divf %193, %194 : vector<8x1xf32>
    %cst_75 = arith.constant 9.99999974E-6 : f32
    %196 = vector.broadcast %cst_75 : f32 to vector<8x1xf32>
    %197 = arith.addf %195, %196 : vector<8x1xf32>
    %198 = math.rsqrt %197 : vector<8x1xf32>
    %199 = vector.broadcast %198 : vector<8x1xf32> to vector<8x32xf32>
    %200 = arith.mulf %190, %199 : vector<8x32xf32>
    %c0_76 = arith.constant 0 : index
    %c0_77 = arith.constant 0 : index
    %201 = vector.load %arg7[%c0_76, %c0_77] : memref<1x32xf32, #tpu.memory_space<vmem>>, vector<1x32xf32>
    %202 = vector.broadcast %201 : vector<1x32xf32> to vector<8x32xf32>
    %203 = arith.mulf %200, %202 : vector<8x32xf32>
    %c0_78 = arith.constant 0 : index
    %c0_79 = arith.constant 0 : index
    %204 = vector.load %arg8[%c0_78, %c0_79] : memref<1x32xf32, #tpu.memory_space<vmem>>, vector<1x32xf32>
    %205 = vector.broadcast %204 : vector<1x32xf32> to vector<8x32xf32>
    %206 = arith.addf %203, %205 : vector<8x32xf32>
    %c0_80 = arith.constant 0 : index
    %c0_81 = arith.constant 0 : index
    %c0_82 = arith.constant 0 : index
    %207 = vector.load %arg9[%c0_80, %c0_81, %c0_82] : memref<1x8x32xf32, #tpu.memory_space<vmem>>, vector<1x8x32xf32>
    %208 = vector.shape_cast %207 : vector<1x8x32xf32> to vector<8x32xf32>
    %209 = vector.shape_cast %206 : vector<8x32xf32> to vector<1x8x32xf32>
    tpu.vector_store %arg9[%c0_80, %c0_81, %c0_82], %209 {strides = array<i32>} : memref<1x8x32xf32, #tpu.memory_space<vmem>>, vector<1x8x32xf32>,
    return
  }
  func.func @transform_0(%arg0: i32) -> (i32, i32, i32) {
    %c0_i32 = arith.constant 0 : i32
    %c0_i32_0 = arith.constant 0 : i32
    %c0_i32_1 = arith.constant 0 : i32
    return %arg0, %c0_i32, %c0_i32_0 : i32, i32, i32
  }
  func.func @transform_1(%arg0: i32) -> (i32, i32) {
    %c0_i32 = arith.constant 0 : i32
    %c0_i32_0 = arith.constant 0 : i32
    %c0_i32_1 = arith.constant 0 : i32
    return %c0_i32, %c0_i32_0 : i32, i32
  }
  func.func @transform_2(%arg0: i32) -> (i32, i32) {
    %c0_i32 = arith.constant 0 : i32
    %c0_i32_0 = arith.constant 0 : i32
    %c0_i32_1 = arith.constant 0 : i32
    return %c0_i32, %c0_i32_0 : i32, i32
  }
  func.func @transform_3(%arg0: i32) -> (i32, i32) {
    %c0_i32 = arith.constant 0 : i32
    %c0_i32_0 = arith.constant 0 : i32
    %c0_i32_1 = arith.constant 0 : i32
    return %c0_i32, %c0_i32_0 : i32, i32
  }
  func.func @transform_4(%arg0: i32) -> (i32, i32) {
    %c0_i32 = arith.constant 0 : i32
    %c0_i32_0 = arith.constant 0 : i32
    %c0_i32_1 = arith.constant 0 : i32
    return %c0_i32, %c0_i32_0 : i32, i32
  }
  func.func @transform_5(%arg0: i32) -> (i32, i32) {
    %c0_i32 = arith.constant 0 : i32
    %c0_i32_0 = arith.constant 0 : i32
    %c0_i32_1 = arith.constant 0 : i32
    return %c0_i32, %c0_i32_0 : i32, i32
  }
  func.func @transform_6(%arg0: i32) -> (i32, i32) {
    %c0_i32 = arith.constant 0 : i32
    %c0_i32_0 = arith.constant 0 : i32
    %c0_i32_1 = arith.constant 0 : i32
    return %c0_i32, %c0_i32_0 : i32, i32
  }
  func.func @transform_7(%arg0: i32) -> (i32, i32) {
    %c0_i32 = arith.constant 0 : i32
    %c0_i32_0 = arith.constant 0 : i32
    %c0_i32_1 = arith.constant 0 : i32
    return %c0_i32, %c0_i32_0 : i32, i32
  }
  func.func @transform_8(%arg0: i32) -> (i32, i32, i32) {
    %c0_i32 = arith.constant 0 : i32
    %c0_i32_0 = arith.constant 0 : i32
    %c0_i32_1 = arith.constant 0 : i32
    return %arg0, %c0_i32, %c0_i32_0 : i32, i32, i32
  }
}

</mosaic_0001>

<llo_original>
// kernel: tpu_custom_call.1
$region0: #{tpu_custom_call.1}
  #allocation0 [shape = 'u32[]', space=smem, size = 0x4, offset = 0x4, fixed_abs, tag = 'smem constant byte address 0x4 - core index']
  #allocation1 [shape = 'u32[144,128]{1,0:T(1,128)}', space=vmem, size = 0x12000, scoped, tag = 'internal scratch']
  %s0 = inlined_call_operand.hbm [shape: f32[2,8,32], index: 0, kind: input, shape index: {}]
  %s1 = inlined_call_operand.hbm [shape: f32[32,32], index: 1, kind: input, shape index: {}]
  %s2 = inlined_call_operand.hbm [shape: f32[32,32], index: 2, kind: input, shape index: {}]
  %s3 = inlined_call_operand.hbm [shape: f32[32,32], index: 3, kind: input, shape index: {}]
  %s4 = inlined_call_operand.hbm [shape: f32[32,32], index: 4, kind: input, shape index: {}]
  %s5 = inlined_call_operand.vmem [shape: f32[1,32], index: 5, kind: input, shape index: {}]
  %s6 = inlined_call_operand.vmem [shape: f32[1,32], index: 6, kind: input, shape index: {}]
  %s7 = inlined_call_operand.vmem [shape: f32[1,32], index: 7, kind: input, shape index: {}]
  %s8 = inlined_call_operand.hbm [shape: f32[2,8,32], index: 8, kind: output, shape index: {}]
  %s9 = sld [smem:[#allocation0]]
  $region85: #{tpu_custom_call.1} parent=0
    _
  %s11 = ssub.s32 1, %s9
  %s12 = scalar_select 0, %s11, %s9
  $region1: #{tpu_custom_call.1} parent=0
    #allocation2 [shape = 'u8[8192]{0}', space=vmem, size = 0x2000, scoped, tag = 'input window, operand 0']
    #allocation3 [shape = 's32[2]{0}', space=sflag, size = 0x8, scoped, tag = 'scoped memory for tpu_custom_call.1']
    #allocation4 [shape = 's32[2]{0}', space=sflag, size = 0x8, scoped, tag = 'scoped memory for tpu_custom_call.1']
    #allocation5 [shape = 'u8[16384]{0}', space=vmem, size = 0x4000, scoped, tag = 'input window, operand 1, single buffered']
    #allocation6 [shape = 's32[1]{0}', space=sflag, size = 0x4, scoped, tag = 'scoped memory for tpu_custom_call.1']
    #allocation7 [shape = 'u8[16384]{0}', space=vmem, size = 0x4000, scoped, tag = 'input window, operand 2, single buffered']
    #allocation8 [shape = 'u8[16384]{0}', space=vmem, size = 0x4000, scoped, tag = 'input window, operand 3, single buffered']
    #allocation9 [shape = 's32[1]{0}', space=sflag, size = 0x4, scoped, tag = 'scoped memory for tpu_custom_call.1']
    #allocation10 [shape = 'u8[16384]{0}', space=vmem, size = 0x4000, scoped, tag = 'input window, operand 4, single buffered']
    #allocation11 [shape = 'u8[8192]{0}', space=vmem, size = 0x2000, scoped, tag = 'output window, operand 0']
    %13 = vsyncpa [#allocation3], 0
    %s14 = scalar_lea.sflag [#allocation3], 1
    %15 = vsyncpa %s14, 0
    %16 = vsyncpa [#allocation6], 0
    %17 = vsyncpa [#allocation9], 0
    %18 = vsyncpa [#allocation4], 0
    %s19 = scalar_lea.sflag [#allocation4], 1
    %20 = vsyncpa %s19, 0
    loop: start=0, step=1, limit=4
    $region2: #{tpu_custom_call.1} parent=1 // loop_pre_header
      _
    $region3: #{tpu_custom_call.1} parent=1 // loop_header
      %s22 = sphi 0, %s26
      %p23 = scmp.ge.s32.totalorder %s22, 4
      %s32 = sphi 0, %s34
      %s35 = sphi 0, %s32
      %s36 = sphi 0, %s35
      %s52 = sphi 0, %s36
      %s56 = sphi 0, %s56
      %s58 = sphi 0, %s56
      %s59 = sphi 0, %s58
      %s73 = sphi 0, %s59
      %s77 = sphi 0, %s77
      %s79 = sphi 0, %s77
      %s80 = sphi 0, %s79
      %s94 = sphi 0, %s80
      %s98 = sphi 0, %s98
      %s100 = sphi 0, %s98
      %s101 = sphi 0, %s100
      %s115 = sphi 0, %s101
      %s119 = sphi 0, %s119
      %s121 = sphi 0, %s119
      %s122 = sphi 0, %s121
      %s136 = sphi 0, %s122
      %s140 = sphi 0, %s140
      %s142 = sphi 0, %s140
      %s143 = sphi 0, %s142
      %s157 = sphi 0, %s143
      %s161 = sphi 0, %s161
      %s163 = sphi 0, %s161
      %s164 = sphi 0, %s163
      %s178 = sphi 0, %s164
      %s182 = sphi 0, %s182
      %s184 = sphi 0, %s182
      %s185 = sphi 0, %s184
      %s199 = sphi 0, %s185
      %s205 = sphi 0, %s207
      %s208 = sphi 0, %s205
      %s209 = sphi 0, %s208
      %s225 = sphi 0, %s209
    $region4: #{tpu_custom_call.1} parent=1 // loop_header_branch
      %25 = sbr.rel (%p23) target = $region8
    $region5: #{tpu_custom_call.1} parent=1 // loop_body
      %s27 = ssub.s32 %s22, 1
      %s28 = ssub.s32 %s22, 2
      %s29 = sadd.s32 %s22, 1
      %s30 = ssub.s32 %s22, %s29
      %p31 = scmp.eq.s32.totalorder %s30, 0
      %s33 = sadd.s32 %s32, 1
      %s34 = scalar_select %p31, %s32, %s33
      %p37 = pneg %p31
      %p38 = scmp.eq.s32.totalorder %s22, 1
      %p39 = por %p37, %p38
      %p40 = scmp.ne.s32.totalorder %s32, %s35
      %p41 = scmp.eq.s32.totalorder %s22, 0
      %p42 = por %p40, %p41
      %p43 = scmp.ne.s32.totalorder %s32, %s35
      %p44 = scmp.eq.s32.totalorder %s27, 1
      %p45 = por %p43, %p44
      %p46 = scmp.ne.s32.totalorder %s35, %s36
      %p47 = scmp.eq.s32.totalorder %s27, 0
      %p48 = por %p46, %p47
      %p49 = scmp.ne.s32.totalorder %s35, %s36
      %p50 = scmp.eq.s32.totalorder %s28, 1
      %p51 = por %p49, %p50
      %p53 = scmp.ne.s32.totalorder %s36, %s52
      %p54 = scmp.eq.s32.totalorder %s28, 0
      %p55 = por %p53, %p54
      %s57 = sadd.s32 %s56, 1
      %p60 = scmp.eq.s32.totalorder %s22, 1
      %p61 = scmp.ne.s32.totalorder %s56, %s58
      %p62 = scmp.eq.s32.totalorder %s22, 0
      %p63 = por %p61, %p62
      %p64 = scmp.ne.s32.totalorder %s56, %s58
      %p65 = scmp.eq.s32.totalorder %s27, 1
      %p66 = por %p64, %p65
      %p67 = scmp.ne.s32.totalorder %s58, %s59
      %p68 = scmp.eq.s32.totalorder %s27, 0
      %p69 = por %p67, %p68
      %p70 = scmp.ne.s32.totalorder %s58, %s59
      %p71 = scmp.eq.s32.totalorder %s28, 1
      %p72 = por %p70, %p71
      %p74 = scmp.ne.s32.totalorder %s59, %s73
      %p75 = scmp.eq.s32.totalorder %s28, 0
      %p76 = por %p74, %p75
      %s78 = sadd.s32 %s77, 1
      %p81 = scmp.eq.s32.totalorder %s22, 1
      %p82 = scmp.ne.s32.totalorder %s77, %s79
      %p83 = scmp.eq.s32.totalorder %s22, 0
      %p84 = por %p82, %p83
      %p85 = scmp.ne.s32.totalorder %s77, %s79
      %p86 = scmp.eq.s32.totalorder %s27, 1
      %p87 = por %p85, %p86
      %p88 = scmp.ne.s32.totalorder %s79, %s80
      %p89 = scmp.eq.s32.totalorder %s27, 0
      %p90 = por %p88, %p89
      %p91 = scmp.ne.s32.totalorder %s79, %s80
      %p92 = scmp.eq.s32.totalorder %s28, 1
      %p93 = por %p91, %p92
      %p95 = scmp.ne.s32.totalorder %s80, %s94
      %p96 = scmp.eq.s32.totalorder %s28, 0
      %p97 = por %p95, %p96
      %s99 = sadd.s32 %s98, 1
      %p102 = scmp.eq.s32.totalorder %s22, 1
      %p103 = scmp.ne.s32.totalorder %s98, %s100
      %p104 = scmp.eq.s32.totalorder %s22, 0
      %p105 = por %p103, %p104
      %p106 = scmp.ne.s32.totalorder %s98, %s100
      %p107 = scmp.eq.s32.totalorder %s27, 1
      %p108 = por %p106, %p107
      %p109 = scmp.ne.s32.totalorder %s100, %s101
      %p110 = scmp.eq.s32.totalorder %s27, 0
      %p111 = por %p109, %p110
      %p112 = scmp.ne.s32.totalorder %s100, %s101
      %p113 = scmp.eq.s32.totalorder %s28, 1
      %p114 = por %p112, %p113
      %p116 = scmp.ne.s32.totalorder %s101, %s115
      %p117 = scmp.eq.s32.totalorder %s28, 0
      %p118 = por %p116, %p117
      %s120 = sadd.s32 %s119, 1
      %p123 = scmp.eq.s32.totalorder %s22, 1
      %p124 = scmp.ne.s32.totalorder %s119, %s121
      %p125 = scmp.eq.s32.totalorder %s22, 0
      %p126 = por %p124, %p125
      %p127 = scmp.ne.s32.totalorder %s119, %s121
      %p128 = scmp.eq.s32.totalorder %s27, 1
      %p129 = por %p127, %p128
      %p130 = scmp.ne.s32.totalorder %s121, %s122
      %p131 = scmp.eq.s32.totalorder %s27, 0
      %p132 = por %p130, %p131
      %p133 = scmp.ne.s32.totalorder %s121, %s122
      %p134 = scmp.eq.s32.totalorder %s28, 1
      %p135 = por %p133, %p134
      %p137 = scmp.ne.s32.totalorder %s122, %s136
      %p138 = scmp.eq.s32.totalorder %s28, 0
      %p139 = por %p137, %p138
      %s141 = sadd.s32 %s140, 1
      %p144 = scmp.eq.s32.totalorder %s22, 1
      %p145 = scmp.ne.s32.totalorder %s140, %s142
      %p146 = scmp.eq.s32.totalorder %s22, 0
      %p147 = por %p145, %p146
      %p148 = scmp.ne.s32.totalorder %s140, %s142
      %p149 = scmp.eq.s32.totalorder %s27, 1
      %p150 = por %p148, %p149
      %p151 = scmp.ne.s32.totalorder %s142, %s143
      %p152 = scmp.eq.s32.totalorder %s27, 0
      %p153 = por %p151, %p152
      %p154 = scmp.ne.s32.totalorder %s142, %s143
      %p155 = scmp.eq.s32.totalorder %s28, 1
      %p156 = por %p154, %p155
      %p158 = scmp.ne.s32.totalorder %s143, %s157
      %p159 = scmp.eq.s32.totalorder %s28, 0
      %p160 = por %p158, %p159
      %s162 = sadd.s32 %s161, 1
      %p165 = scmp.eq.s32.totalorder %s22, 1
      %p166 = scmp.ne.s32.totalorder %s161, %s163
      %p167 = scmp.eq.s32.totalorder %s22, 0
      %p168 = por %p166, %p167
      %p169 = scmp.ne.s32.totalorder %s161, %s163
      %p170 = scmp.eq.s32.totalorder %s27, 1
      %p171 = por %p169, %p170
      %p172 = scmp.ne.s32.totalorder %s163, %s164
      %p173 = scmp.eq.s32.totalorder %s27, 0
      %p174 = por %p172, %p173
      %p175 = scmp.ne.s32.totalorder %s163, %s164
      %p176 = scmp.eq.s32.totalorder %s28, 1
      %p177 = por %p175, %p176
      %p179 = scmp.ne.s32.totalorder %s164, %s178
      %p180 = scmp.eq.s32.totalorder %s28, 0
      %p181 = por %p179, %p180
      %s183 = sadd.s32 %s182, 1
      %p186 = scmp.eq.s32.totalorder %s22, 1
      %p187 = scmp.ne.s32.totalorder %s182, %s184
      %p188 = scmp.eq.s32.totalorder %s22, 0
      %p189 = por %p187, %p188
      %p190 = scmp.ne.s32.totalorder %s182, %s184
      %p191 = scmp.eq.s32.totalorder %s27, 1
      %p192 = por %p190, %p191
      %p193 = scmp.ne.s32.totalorder %s184, %s185
      %p194 = scmp.eq.s32.totalorder %s27, 0
      %p195 = por %p193, %p194
      %p196 = scmp.ne.s32.totalorder %s184, %s185
      %p197 = scmp.eq.s32.totalorder %s28, 1
      %p198 = por %p196, %p197
      %p200 = scmp.ne.s32.totalorder %s185, %s199
      %p201 = scmp.eq.s32.totalorder %s28, 0
      %p202 = por %p200, %p201
      %s203 = ssub.s32 %s22, %s29
      %p204 = scmp.eq.s32.totalorder %s203, 0
      %s206 = sadd.s32 %s205, 1
      %s207 = scalar_select %p204, %s205, %s206
      %p210 = pneg %p204
      %p211 = scmp.eq.s32.totalorder %s22, 1
      %p212 = por %p210, %p211
      %p213 = scmp.ne.s32.totalorder %s205, %s208
      %p214 = scmp.eq.s32.totalorder %s22, 0
      %p215 = por %p213, %p214
      %p216 = scmp.ne.s32.totalorder %s205, %s208
      %p217 = scmp.eq.s32.totalorder %s27, 1
      %p218 = por %p216, %p217
      %p219 = scmp.ne.s32.totalorder %s208, %s209
      %p220 = scmp.eq.s32.totalorder %s27, 0
      %p221 = por %p219, %p220
      %p222 = scmp.ne.s32.totalorder %s208, %s209
      %p223 = scmp.eq.s32.totalorder %s28, 1
      %p224 = por %p222, %p223
      %p226 = scmp.ne.s32.totalorder %s209, %s225
      %p227 = scmp.eq.s32.totalorder %s28, 0
      %p228 = por %p226, %p227
      %p229 = scmp.le.s32.totalorder 1, %s22
      %p230 = scmp.lt.s32.totalorder %s22, 3
      %p231 = pnand %p229, %p230
      %p232 = pneg %p231
      // Predicated region
      $region9: #{tpu_custom_call.1} parent=5 // pred_check
        _
      $region10: #{tpu_custom_call.1} parent=5 // pred_check_branch
        %234 = sbr.rel (%p231) target = $region12
      $region11: #{tpu_custom_call.1} parent=5 // pred_region
        %s235 = ssub.s32 %s22, 1
        // Predicated region
        $region13: #{tpu_custom_call.1} parent=11 // pred_check
          %p236 = pneg %p69
        $region14: #{tpu_custom_call.1} parent=11 // pred_check_branch
          %238 = sbr.rel (%p236) target = $region16
        $region15: #{tpu_custom_call.1} parent=11 // pred_region
          %s240 = ssub.s32 512, 512
          %241 = vsyncadd [#allocation6], %s240
          %s242 = sshll.u32 [#allocation5], 4
          %s243 = int_to_ptr.vmem [resolvable:$true] %s242
          %248 = dma.hbm_to_vmem [thread:$0]  %s1, 512, %s243, [#allocation6], 128, 128, 8
        $region16: #{tpu_custom_call.1} parent=11 // pred_fallthru
          _
        // Predicated region
        $region17: #{tpu_custom_call.1} parent=11 // pred_check
          %p249 = pneg %p90
        $region18: #{tpu_custom_call.1} parent=11 // pred_check_branch
          %251 = sbr.rel (%p249) target = $region20
        $region19: #{tpu_custom_call.1} parent=11 // pred_region
          %s253 = ssub.s32 512, 512
          %254 = vsyncadd [#allocation6], %s253
          %s255 = sshll.u32 [#allocation7], 4
          %s256 = int_to_ptr.vmem [resolvable:$true] %s255
          %261 = dma.hbm_to_vmem [thread:$0]  %s2, 512, %s256, [#allocation6], 128, 128, 8
        $region20: #{tpu_custom_call.1} parent=11 // pred_fallthru
          _
        // Predicated region
        $region21: #{tpu_custom_call.1} parent=11 // pred_check
          %p262 = pneg %p111
        $region22: #{tpu_custom_call.1} parent=11 // pred_check_branch
          %264 = sbr.rel (%p262) target = $region24
        $region23: #{tpu_custom_call.1} parent=11 // pred_region
          %s266 = ssub.s32 512, 512
          %267 = vsyncadd [#allocation9], %s266
          %s268 = sshll.u32 [#allocation8], 4
          %s269 = int_to_ptr.vmem [resolvable:$true] %s268
          %274 = dma.hbm_to_vmem [thread:$0]  %s3, 512, %s269, [#allocation9], 128, 128, 8
        $region24: #{tpu_custom_call.1} parent=11 // pred_fallthru
          _
        // Predicated region
        $region25: #{tpu_custom_call.1} parent=11 // pred_check
          %p275 = pneg %p132
        $region26: #{tpu_custom_call.1} parent=11 // pred_check_branch
          %277 = sbr.rel (%p275) target = $region28
        $region27: #{tpu_custom_call.1} parent=11 // pred_region
          %s279 = ssub.s32 512, 512
          %280 = vsyncadd [#allocation9], %s279
          %s281 = sshll.u32 [#allocation10], 4
          %s282 = int_to_ptr.vmem [resolvable:$true] %s281
          %287 = dma.hbm_to_vmem [thread:$0]  %s4, 512, %s282, [#allocation9], 128, 128, 8
        $region28: #{tpu_custom_call.1} parent=11 // pred_fallthru
          _
        // Predicated region
        $region29: #{tpu_custom_call.1} parent=11 // pred_check
          %p288 = pneg %p153
        $region30: #{tpu_custom_call.1} parent=11 // pred_check_branch
          %290 = sbr.rel (%p288) target = $region32
        $region31: #{tpu_custom_call.1} parent=11 // pred_region
          _
        $region32: #{tpu_custom_call.1} parent=11 // pred_fallthru
          _
        // Predicated region
        $region33: #{tpu_custom_call.1} parent=11 // pred_check
          %p291 = pneg %p174
        $region34: #{tpu_custom_call.1} parent=11 // pred_check_branch
          %293 = sbr.rel (%p291) target = $region36
        $region35: #{tpu_custom_call.1} parent=11 // pred_region
          _
        $region36: #{tpu_custom_call.1} parent=11 // pred_fallthru
          _
        // Predicated region
        $region37: #{tpu_custom_call.1} parent=11 // pred_check
          %p294 = pneg %p195
        $region38: #{tpu_custom_call.1} parent=11 // pred_check_branch
          %296 = sbr.rel (%p294) target = $region40
        $region39: #{tpu_custom_call.1} parent=11 // pred_region
          _
        $region40: #{tpu_custom_call.1} parent=11 // pred_fallthru
          _
      $region12: #{tpu_custom_call.1} parent=5 // pred_fallthru
        _
      %p297 = scmp.lt.s32.totalorder %s22, 2
      // Predicated region
      $region41: #{tpu_custom_call.1} parent=5 // pred_check
        %p298 = pneg %p297
      $region42: #{tpu_custom_call.1} parent=5 // pred_check_branch
        %300 = sbr.rel (%p298) target = $region44
      $region43: #{tpu_custom_call.1} parent=5 // pred_region
        // Predicated region
        $region45: #{tpu_custom_call.1} parent=43 // pred_check
          %p301 = pneg %p42
        $region46: #{tpu_custom_call.1} parent=43 // pred_check_branch
          %303 = sbr.rel (%p301) target = $region48
        $region47: #{tpu_custom_call.1} parent=43 // pred_region
          %s304 = sand.u32 %s32, 1
          %s305 = scalar_lea.sflag [#allocation3], %s304
          %s306 = sand.u32 %s32, 1
          %s307 = smul.addr %s306, 8
          %s308 = scalar_lea.vmem [#allocation2], %s307
          %s310 = ssub.s32 128, 128
          %311 = vsyncadd %s305, %s310
          %s312 = smul.addr %s22, 128
          %s313 = scalar_lea.hbm %s0, %s312
          %s315 = sshll.u32 %s308, 4
          %s316 = int_to_ptr.vmem [resolvable:$true] %s315
          %318 = dma.hbm_to_vmem [thread:$0]  %s313, 128, %s316, %s305
        $region48: #{tpu_custom_call.1} parent=43 // pred_fallthru
          _
      $region44: #{tpu_custom_call.1} parent=5 // pred_fallthru
        _
      %p319 = scmp.le.s32.totalorder 1, %s22
      %p320 = scmp.lt.s32.totalorder %s22, 3
      %p321 = pnand %p319, %p320
      %p322 = pneg %p321
      // Predicated region
      $region49: #{tpu_custom_call.1} parent=5 // pred_check
        _
      $region50: #{tpu_custom_call.1} parent=5 // pred_check_branch
        %324 = sbr.rel (%p321) target = $region52
      $region51: #{tpu_custom_call.1} parent=5 // pred_region
        %s325 = ssub.s32 %s22, 1
        %s326 = sand.u32 %s35, 1
        %s327 = scalar_lea.sflag [#allocation3], %s326
        %s328 = sand.u32 %s35, 1
        %s329 = smul.addr %s328, 8
        %s330 = scalar_lea.vmem [#allocation2], %s329
        // Predicated region
        $region53: #{tpu_custom_call.1} parent=51 // pred_check
          %p331 = pneg %p48
        $region54: #{tpu_custom_call.1} parent=51 // pred_check_branch
          %333 = sbr.rel (%p331) target = $region56
        $region55: #{tpu_custom_call.1} parent=51 // pred_region
          %334 = dma.done %s327, 128
        $region56: #{tpu_custom_call.1} parent=51 // pred_fallthru
          _
        // Predicated region
        $region57: #{tpu_custom_call.1} parent=51 // pred_check
          %p335 = pneg %p69
        $region58: #{tpu_custom_call.1} parent=51 // pred_check_branch
          %337 = sbr.rel (%p335) target = $region60
        $region59: #{tpu_custom_call.1} parent=51 // pred_region
          %338 = dma.done [#allocation6], 512
        $region60: #{tpu_custom_call.1} parent=51 // pred_fallthru
          _
        // Predicated region
        $region61: #{tpu_custom_call.1} parent=51 // pred_check
          %p339 = pneg %p90
        $region62: #{tpu_custom_call.1} parent=51 // pred_check_branch
          %341 = sbr.rel (%p339) target = $region64
        $region63: #{tpu_custom_call.1} parent=51 // pred_region
          %342 = dma.done [#allocation6], 512
        $region64: #{tpu_custom_call.1} parent=51 // pred_fallthru
          _
        // Predicated region
        $region65: #{tpu_custom_call.1} parent=51 // pred_check
          %p343 = pneg %p111
        $region66: #{tpu_custom_call.1} parent=51 // pred_check_branch
          %345 = sbr.rel (%p343) target = $region68
        $region67: #{tpu_custom_call.1} parent=51 // pred_region
          %346 = dma.done [#allocation9], 512
        $region68: #{tpu_custom_call.1} parent=51 // pred_fallthru
          _
        // Predicated region
        $region69: #{tpu_custom_call.1} parent=51 // pred_check
          %p347 = pneg %p132
        $region70: #{tpu_custom_call.1} parent=51 // pred_check_branch
          %349 = sbr.rel (%p347) target = $region72
        $region71: #{tpu_custom_call.1} parent=51 // pred_region
          %350 = dma.done [#allocation9], 512
        $region72: #{tpu_custom_call.1} parent=51 // pred_fallthru
          _
        %s351 = sand.u32 %s35, 1
        %s352 = scalar_lea.sflag [#allocation3], %s351
        %s353 = sand.u32 %s35, 1
        %s354 = smul.addr %s353, 8
        %s355 = scalar_lea.vmem [#allocation2], %s354
        %p356 = pneg %p48
        %p357 = pneg %p45
        %p358 = pneg %p69
        %p359 = pneg %p66
        %p360 = pneg %p90
        %p361 = pneg %p87
        %p362 = pneg %p111
        %p363 = pneg %p108
        %p364 = pneg %p132
        %p365 = pneg %p129
        %p366 = pneg %p153
        %p367 = pneg %p150
        %p368 = pneg %p174
        %p369 = pneg %p171
        %p370 = pneg %p195
        %p371 = pneg %p192
        %p372 = pneg %p221
        %p373 = pneg %p218
        %s374 = sand.u32 %s208, 1
        %s375 = scalar_lea.sflag [#allocation4], %s374
        %s376 = sand.u32 %s208, 1
        %s377 = smul.addr %s376, 8
        %s378 = scalar_lea.vmem [#allocation11], %s377
        %v379 = vld [vmem:[%s330] sm:$0xff]
        %v380 = vld [vmem:[#allocation5] sm:$0xff]
        %v381 = vld [vmem:[#allocation5 + $0x8] sm:$0xff]
        %v382 = vld [vmem:[#allocation5 + $0x10] sm:$0xff]
        %v383 = vld [vmem:[#allocation5 + $0x18] sm:$0xff]
        %vm384 = vcmask 261120
        %v386 = vsel %vm384, %v379, 0
        %388 = vmatprep.subr.mxu0 0.0
        %389 = vmatpush1.msra.mxu0 %v380
        %390 = vmatprep.subr.mxu0 0.0
        %391 = vmatpush1.msra.mxu0 %v381
        %392 = vmatprep.subr.mxu0 0.0
        %393 = vmatpush1.msra.mxu0 %v382
        %394 = vmatprep.subr.mxu0 0.0
        %395 = vmatpush1.msra.mxu0 %v383
        %396 = vmatprep.subr.mxu0 0.0
        %397 = vmatpush1.msra.mxu0 0.0
        %398 = vmatprep.subr.mxu0 0.0
        %399 = vmatpush1.msra.mxu0 0.0
        %400 = vmatprep.subr.mxu0 0.0
        %401 = vmatpush1.msra.mxu0 0.0
        %402 = vmatprep.subr.mxu0 0.0
        %403 = vmatpush1.msra.mxu0 0.0
        %404 = vmatprep.subr.mxu0 0.0
        %405 = vmatpush1.msra.mxu0 0.0
        %406 = vmatprep.subr.mxu0 0.0
        %407 = vmatpush1.msra.mxu0 0.0
        %408 = vmatprep.subr.mxu0 0.0
        %409 = vmatpush1.msra.mxu0 0.0
        %410 = vmatprep.subr.mxu0 0.0
        %411 = vmatpush1.msra.mxu0 0.0
        %412 = vmatprep.subr.mxu0 0.0
        %413 = vmatpush1.msra.mxu0 0.0
        %414 = vmatprep.subr.mxu0 0.0
        %415 = vmatpush1.msra.mxu0 0.0
        %416 = vmatprep.subr.mxu0 0.0
        %417 = vmatpush1.msra.mxu0 0.0
        %418 = vmatprep.subr.mxu0 0.0
        %419 = vmatpush1.msra.mxu0 0.0
        %420 = vmatprep.subr.mxu0 0.0
        %421 = vmatpush1.msra.mxu0 0.0
        %422 = vmatprep.subr.mxu0 0.0
        %423 = vmatpush1.msra.mxu0 0.0
        %424 = vmatprep.subr.mxu0 0.0
        %425 = vmatpush1.msra.mxu0 0.0
        %426 = vmatprep.subr.mxu0 0.0
        %427 = vmatpush1.msra.mxu0 0.0
        %428 = vmatprep.subr.mxu0 0.0
        %429 = vmatpush1.msra.mxu0 0.0
        %430 = vmatprep.subr.mxu0 0.0
        %431 = vmatpush1.msra.mxu0 0.0
        %432 = vmatprep.subr.mxu0 0.0
        %433 = vmatpush1.msra.mxu0 0.0
        %434 = vmatprep.subr.mxu0 0.0
        %435 = vmatpush1.msra.mxu0 0.0
        %436 = vmatprep.subr.mxu0 0.0
        %437 = vmatpush1.msra.mxu0 0.0
        %438 = vmatprep.subr.mxu0 0.0
        %439 = vmatpush1.msra.mxu0 0.0
        %440 = vmatprep.subr.mxu0 0.0
        %441 = vmatpush1.msra.mxu0 0.0
        %442 = vmatprep.subr.mxu0 0.0
        %443 = vmatpush1.msra.mxu0 0.0
        %444 = vmatprep.subr.mxu0 0.0
        %445 = vmatpush1.msra.mxu0 0.0
        %446 = vmatprep.subr.mxu0 0.0
        %447 = vmatpush1.msra.mxu0 0.0
        %448 = vmatprep.subr.mxu0 0.0
        %449 = vmatpush1.msra.mxu0 0.0
        %450 = vmatprep.subr.mxu0 0.0
        %451 = vmatpush1.msra.mxu0 0.0
        %452 = vmatprep.mubr.f32.mxu0 0.0
        %453 = vmatmul.mubr.f32.gmra.mrb[0].mxu0 %v386
        %v454 = vpop.f32.mrb[0].mxu0
        %v455 = vadd.f32 0.0, %v454
        %v456 = vpop.f32.mrb[0].mxu0
        %457 = vdwg.mxu0
        %v458 = vld [vmem:[#allocation7] sm:$0xff]
        %v459 = vld [vmem:[#allocation7 + $0x8] sm:$0xff]
        %v460 = vld [vmem:[#allocation7 + $0x10] sm:$0xff]
        %v461 = vld [vmem:[#allocation7 + $0x18] sm:$0xff]
        %462 = vmatprep.subr.mxu0 0.0
        %463 = vmatpush1.msra.mxu0 %v458
        %464 = vmatprep.subr.mxu0 0.0
        %465 = vmatpush1.msra.mxu0 %v459
        %466 = vmatprep.subr.mxu0 0.0
        %467 = vmatpush1.msra.mxu0 %v460
        %468 = vmatprep.subr.mxu0 0.0
        %469 = vmatpush1.msra.mxu0 %v461
        %470 = vmatprep.subr.mxu0 0.0
        %471 = vmatpush1.msra.mxu0 0.0
        %472 = vmatprep.subr.mxu0 0.0
        %473 = vmatpush1.msra.mxu0 0.0
        %474 = vmatprep.subr.mxu0 0.0
        %475 = vmatpush1.msra.mxu0 0.0
        %476 = vmatprep.subr.mxu0 0.0
        %477 = vmatpush1.msra.mxu0 0.0
        %478 = vmatprep.subr.mxu0 0.0
        %479 = vmatpush1.msra.mxu0 0.0
        %480 = vmatprep.subr.mxu0 0.0
        %481 = vmatpush1.msra.mxu0 0.0
        %482 = vmatprep.subr.mxu0 0.0
        %483 = vmatpush1.msra.mxu0 0.0
        %484 = vmatprep.subr.mxu0 0.0
        %485 = vmatpush1.msra.mxu0 0.0
        %486 = vmatprep.subr.mxu0 0.0
        %487 = vmatpush1.msra.mxu0 0.0
        %488 = vmatprep.subr.mxu0 0.0
        %489 = vmatpush1.msra.mxu0 0.0
        %490 = vmatprep.subr.mxu0 0.0
        %491 = vmatpush1.msra.mxu0 0.0
        %492 = vmatprep.subr.mxu0 0.0
        %493 = vmatpush1.msra.mxu0 0.0
        %494 = vmatprep.subr.mxu0 0.0
        %495 = vmatpush1.msra.mxu0 0.0
        %496 = vmatprep.subr.mxu0 0.0
        %497 = vmatpush1.msra.mxu0 0.0
        %498 = vmatprep.subr.mxu0 0.0
        %499 = vmatpush1.msra.mxu0 0.0
        %500 = vmatprep.subr.mxu0 0.0
        %501 = vmatpush1.msra.mxu0 0.0
        %502 = vmatprep.subr.mxu0 0.0
        %503 = vmatpush1.msra.mxu0 0.0
        %504 = vmatprep.subr.mxu0 0.0
        %505 = vmatpush1.msra.mxu0 0.0
        %506 = vmatprep.subr.mxu0 0.0
        %507 = vmatpush1.msra.mxu0 0.0
        %508 = vmatprep.subr.mxu0 0.0
        %509 = vmatpush1.msra.mxu0 0.0
        %510 = vmatprep.subr.mxu0 0.0
        %511 = vmatpush1.msra.mxu0 0.0
        %512 = vmatprep.subr.mxu0 0.0
        %513 = vmatpush1.msra.mxu0 0.0
        %514 = vmatprep.subr.mxu0 0.0
        %515 = vmatpush1.msra.mxu0 0.0
        %516 = vmatprep.subr.mxu0 0.0
        %517 = vmatpush1.msra.mxu0 0.0
        %518 = vmatprep.subr.mxu0 0.0
        %519 = vmatpush1.msra.mxu0 0.0
        %520 = vmatprep.subr.mxu0 0.0
        %521 = vmatpush1.msra.mxu0 0.0
        %522 = vmatprep.subr.mxu0 0.0
        %523 = vmatpush1.msra.mxu0 0.0
        %524 = vmatprep.subr.mxu0 0.0
        %525 = vmatpush1.msra.mxu0 0.0
        %526 = vmatprep.mubr.f32.mxu0 0.0
        %527 = vmatmul.mubr.f32.gmra.mrb[0].mxu0 %v386
        %v528 = vpop.f32.mrb[0].mxu0
        %v529 = vadd.f32 0.0, %v528
        %v530 = vpop.f32.mrb[0].mxu0
        %531 = vdwg.mxu0
        %v532 = vld [vmem:[#allocation8] sm:$0xff]
        %v533 = vld [vmem:[#allocation8 + $0x8] sm:$0xff]
        %v534 = vld [vmem:[#allocation8 + $0x10] sm:$0xff]
        %v535 = vld [vmem:[#allocation8 + $0x18] sm:$0xff]
        %536 = vmatprep.subr.mxu0 0.0
        %537 = vmatpush1.msra.mxu0 %v532
        %538 = vmatprep.subr.mxu0 0.0
        %539 = vmatpush1.msra.mxu0 %v533
        %540 = vmatprep.subr.mxu0 0.0
        %541 = vmatpush1.msra.mxu0 %v534
        %542 = vmatprep.subr.mxu0 0.0
        %543 = vmatpush1.msra.mxu0 %v535
        %544 = vmatprep.subr.mxu0 0.0
        %545 = vmatpush1.msra.mxu0 0.0
        %546 = vmatprep.subr.mxu0 0.0
        %547 = vmatpush1.msra.mxu0 0.0
        %548 = vmatprep.subr.mxu0 0.0
        %549 = vmatpush1.msra.mxu0 0.0
        %550 = vmatprep.subr.mxu0 0.0
        %551 = vmatpush1.msra.mxu0 0.0
        %552 = vmatprep.subr.mxu0 0.0
        %553 = vmatpush1.msra.mxu0 0.0
        %554 = vmatprep.subr.mxu0 0.0
        %555 = vmatpush1.msra.mxu0 0.0
        %556 = vmatprep.subr.mxu0 0.0
        %557 = vmatpush1.msra.mxu0 0.0
        %558 = vmatprep.subr.mxu0 0.0
        %559 = vmatpush1.msra.mxu0 0.0
        %560 = vmatprep.subr.mxu0 0.0
        %561 = vmatpush1.msra.mxu0 0.0
        %562 = vmatprep.subr.mxu0 0.0
        %563 = vmatpush1.msra.mxu0 0.0
        %564 = vmatprep.subr.mxu0 0.0
        %565 = vmatpush1.msra.mxu0 0.0
        %566 = vmatprep.subr.mxu0 0.0
        %567 = vmatpush1.msra.mxu0 0.0
        %568 = vmatprep.subr.mxu0 0.0
        %569 = vmatpush1.msra.mxu0 0.0
        %570 = vmatprep.subr.mxu0 0.0
        %571 = vmatpush1.msra.mxu0 0.0
        %572 = vmatprep.subr.mxu0 0.0
        %573 = vmatpush1.msra.mxu0 0.0
        %574 = vmatprep.subr.mxu0 0.0
        %575 = vmatpush1.msra.mxu0 0.0
        %576 = vmatprep.subr.mxu0 0.0
        %577 = vmatpush1.msra.mxu0 0.0
        %578 = vmatprep.subr.mxu0 0.0
        %579 = vmatpush1.msra.mxu0 0.0
        %580 = vmatprep.subr.mxu0 0.0
        %581 = vmatpush1.msra.mxu0 0.0
        %582 = vmatprep.subr.mxu0 0.0
        %583 = vmatpush1.msra.mxu0 0.0
        %584 = vmatprep.subr.mxu0 0.0
        %585 = vmatpush1.msra.mxu0 0.0
        %586 = vmatprep.subr.mxu0 0.0
        %587 = vmatpush1.msra.mxu0 0.0
        %588 = vmatprep.subr.mxu0 0.0
        %589 = vmatpush1.msra.mxu0 0.0
        %590 = vmatprep.subr.mxu0 0.0
        %591 = vmatpush1.msra.mxu0 0.0
        %592 = vmatprep.subr.mxu0 0.0
        %593 = vmatpush1.msra.mxu0 0.0
        %594 = vmatprep.subr.mxu0 0.0
        %595 = vmatpush1.msra.mxu0 0.0
        %596 = vmatprep.subr.mxu0 0.0
        %597 = vmatpush1.msra.mxu0 0.0
        %598 = vmatprep.subr.mxu0 0.0
        %599 = vmatpush1.msra.mxu0 0.0
        %600 = vmatprep.mubr.f32.mxu0 0.0
        %601 = vmatmul.mubr.f32.gmra.mrb[0].mxu0 %v386
        %v602 = vpop.f32.mrb[0].mxu0
        %v603 = vadd.f32 0.0, %v602
        %v604 = vpop.f32.mrb[0].mxu0
        %605 = vdwg.mxu0
        %v606 = vld [vmem:[#allocation10] sm:$0xff]
        %v607 = vld [vmem:[#allocation10 + $0x8] sm:$0xff]
        %v608 = vld [vmem:[#allocation10 + $0x10] sm:$0xff]
        %v609 = vld [vmem:[#allocation10 + $0x18] sm:$0xff]
        %v610 = vlaneseq
        %v611 = vshrl.u32 %v610, 7
        %v612 = vlaneseq
        %v613 = vand.u32 %v612, 127
        %vm614 = vcmp.gt.s32.totalorder %v613, %v611
        %vm615 = vcmask 31744
        %v617 = vsel %vm615, %v455, 0
        %v620 = vsel %vm615, %v529, 0
        %622 = vmatprep.subr.mxu0 0.0
        %623 = vmatpush1.xpose.msra.mxu0 %v620
        %624 = vmatprep.subr.mxu0 0.0
        %625 = vmatpush1.xpose.msra.mxu0 0.0
        %626 = vmatprep.subr.mxu0 0.0
        %627 = vmatpush1.xpose.msra.mxu0 0.0
        %628 = vmatprep.subr.mxu0 0.0
        %629 = vmatpush1.xpose.msra.mxu0 0.0
        %630 = vmatprep.subr.mxu0 0.0
        %631 = vmatpush1.xpose.msra.mxu0 0.0
        %632 = vmatprep.subr.mxu0 0.0
        %633 = vmatpush1.xpose.msra.mxu0 0.0
        %634 = vmatprep.subr.mxu0 0.0
        %635 = vmatpush1.xpose.msra.mxu0 0.0
        %636 = vmatprep.subr.mxu0 0.0
        %637 = vmatpush1.xpose.msra.mxu0 0.0
        %638 = vmatprep.subr.mxu0 0.0
        %639 = vmatpush1.xpose.msra.mxu0 0.0
        %640 = vmatprep.subr.mxu0 0.0
        %641 = vmatpush1.xpose.msra.mxu0 0.0
        %642 = vmatprep.subr.mxu0 0.0
        %643 = vmatpush1.xpose.msra.mxu0 0.0
        %644 = vmatprep.subr.mxu0 0.0
        %645 = vmatpush1.xpose.msra.mxu0 0.0
        %646 = vmatprep.subr.mxu0 0.0
        %647 = vmatpush1.xpose.msra.mxu0 0.0
        %648 = vmatprep.subr.mxu0 0.0
        %649 = vmatpush1.xpose.msra.mxu0 0.0
        %650 = vmatprep.subr.mxu0 0.0
        %651 = vmatpush1.xpose.msra.mxu0 0.0
        %652 = vmatprep.subr.mxu0 0.0
        %653 = vmatpush1.xpose.msra.mxu0 0.0
        %654 = vmatprep.subr.mxu0 0.0
        %655 = vmatpush1.xpose.msra.mxu0 0.0
        %656 = vmatprep.subr.mxu0 0.0
        %657 = vmatpush1.xpose.msra.mxu0 0.0
        %658 = vmatprep.subr.mxu0 0.0
        %659 = vmatpush1.xpose.msra.mxu0 0.0
        %660 = vmatprep.subr.mxu0 0.0
        %661 = vmatpush1.xpose.msra.mxu0 0.0
        %662 = vmatprep.subr.mxu0 0.0
        %663 = vmatpush1.xpose.msra.mxu0 0.0
        %664 = vmatprep.subr.mxu0 0.0
        %665 = vmatpush1.xpose.msra.mxu0 0.0
        %666 = vmatprep.subr.mxu0 0.0
        %667 = vmatpush1.xpose.msra.mxu0 0.0
        %668 = vmatprep.subr.mxu0 0.0
        %669 = vmatpush1.xpose.msra.mxu0 0.0
        %670 = vmatprep.subr.mxu0 0.0
        %671 = vmatpush1.xpose.msra.mxu0 0.0
        %672 = vmatprep.subr.mxu0 0.0
        %673 = vmatpush1.xpose.msra.mxu0 0.0
        %674 = vmatprep.subr.mxu0 0.0
        %675 = vmatpush1.xpose.msra.mxu0 0.0
        %676 = vmatprep.subr.mxu0 0.0
        %677 = vmatpush1.xpose.msra.mxu0 0.0
        %678 = vmatprep.subr.mxu0 0.0
        %679 = vmatpush1.xpose.msra.mxu0 0.0
        %680 = vmatprep.subr.mxu0 0.0
        %681 = vmatpush1.xpose.msra.mxu0 0.0
        %682 = vmatprep.subr.mxu0 0.0
        %683 = vmatpush1.xpose.msra.mxu0 0.0
        %684 = vmatprep.subr.mxu0 0.0
        %685 = vmatpush1.xpose.msra.mxu0 0.0
        %686 = vmatprep.mubr.f32.mxu0 0.0
        %687 = vmatmul.mubr.f32.gmra.mrb[0].mxu0 %v617
        %v688 = vpop.f32.mrb[0].mxu0
        %v689 = vadd.f32 0.0, %v688
        %v690 = vpop.f32.mrb[0].mxu0
        %691 = vdwg.mxu0
        %v692 = vmul.f32 %v689, 0.5
        %v693 = vsel %vm614, -inf, %v692
        %vm694 = vcmask 64512
        %v695 = vsel %vm694, %v693, -inf
        %696 = vmax.xlane.f32.xlu0 %v695
        %v697 = vpop.xlane.xlu0 %696
        %v698 = vsub.f32 %v693, %v697
        %v699 = vmul.f32 %v698, 1.442695
        %v700 = vpow.pop %v699
        %v701 = vsel %vm694, %v700, 0.0
        %702 = vadd.xlane.f32.xlu0 %v701
        %v703 = vpop.xlane.xlu0 %702
        %v704 = vrcp.pop %v703
        %v705 = vmul.f32 %v700, %v704
        %v707 = vsel %vm694, %v705, 0
        %709 = vmatprep.subr.mxu0 0.0
        %710 = vmatpush1.msra.mxu0 %v603
        %711 = vmatprep.subr.mxu0 0.0
        %712 = vmatpush1.msra.mxu0 0.0
        %713 = vmatprep.subr.mxu0 0.0
        %714 = vmatpush1.msra.mxu0 0.0
        %715 = vmatprep.subr.mxu0 0.0
        %716 = vmatpush1.msra.mxu0 0.0
        %717 = vmatprep.subr.mxu0 0.0
        %718 = vmatpush1.msra.mxu0 0.0
        %719 = vmatprep.subr.mxu0 0.0
        %720 = vmatpush1.msra.mxu0 0.0
        %721 = vmatprep.subr.mxu0 0.0
        %722 = vmatpush1.msra.mxu0 0.0
        %723 = vmatprep.subr.mxu0 0.0
        %724 = vmatpush1.msra.mxu0 0.0
        %725 = vmatprep.subr.mxu0 0.0
        %726 = vmatpush1.msra.mxu0 0.0
        %727 = vmatprep.subr.mxu0 0.0
        %728 = vmatpush1.msra.mxu0 0.0
        %729 = vmatprep.subr.mxu0 0.0
        %730 = vmatpush1.msra.mxu0 0.0
        %731 = vmatprep.subr.mxu0 0.0
        %732 = vmatpush1.msra.mxu0 0.0
        %733 = vmatprep.subr.mxu0 0.0
        %734 = vmatpush1.msra.mxu0 0.0
        %735 = vmatprep.subr.mxu0 0.0
        %736 = vmatpush1.msra.mxu0 0.0
        %737 = vmatprep.subr.mxu0 0.0
        %738 = vmatpush1.msra.mxu0 0.0
        %739 = vmatprep.subr.mxu0 0.0
        %740 = vmatpush1.msra.mxu0 0.0
        %741 = vmatprep.subr.mxu0 0.0
        %742 = vmatpush1.msra.mxu0 0.0
        %743 = vmatprep.subr.mxu0 0.0
        %744 = vmatpush1.msra.mxu0 0.0
        %745 = vmatprep.subr.mxu0 0.0
        %746 = vmatpush1.msra.mxu0 0.0
        %747 = vmatprep.subr.mxu0 0.0
        %748 = vmatpush1.msra.mxu0 0.0
        %749 = vmatprep.subr.mxu0 0.0
        %750 = vmatpush1.msra.mxu0 0.0
        %751 = vmatprep.subr.mxu0 0.0
        %752 = vmatpush1.msra.mxu0 0.0
        %753 = vmatprep.subr.mxu0 0.0
        %754 = vmatpush1.msra.mxu0 0.0
        %755 = vmatprep.subr.mxu0 0.0
        %756 = vmatpush1.msra.mxu0 0.0
        %757 = vmatprep.subr.mxu0 0.0
        %758 = vmatpush1.msra.mxu0 0.0
        %759 = vmatprep.subr.mxu0 0.0
        %760 = vmatpush1.msra.mxu0 0.0
        %761 = vmatprep.subr.mxu0 0.0
        %762 = vmatpush1.msra.mxu0 0.0
        %763 = vmatprep.subr.mxu0 0.0
        %764 = vmatpush1.msra.mxu0 0.0
        %765 = vmatprep.subr.mxu0 0.0
        %766 = vmatpush1.msra.mxu0 0.0
        %767 = vmatprep.subr.mxu0 0.0
        %768 = vmatpush1.msra.mxu0 0.0
        %769 = vmatprep.subr.mxu0 0.0
        %770 = vmatpush1.msra.mxu0 0.0
        %771 = vmatprep.subr.mxu0 0.0
        %772 = vmatpush1.msra.mxu0 0.0
        %773 = vmatprep.mubr.f32.mxu0 0.0
        %774 = vmatmul.mubr.f32.gmra.mrb[0].mxu0 %v707
        %v775 = vpop.f32.mrb[0].mxu0
        %v776 = vadd.f32 0.0, %v775
        %v777 = vpop.f32.mrb[0].mxu0
        %778 = vdwg.mxu0
        %779 = vrot.lane.b32.xlu0 %v455, 124
        %v780 = vpop.permute.xlu0 %779
        %781 = vrot.lane.b32.xlu0 %v529, 124
        %v782 = vpop.permute.xlu0 %781
        %v783 = vsel %vm615, %v780, 0
        %v785 = vsel %vm615, %v782, 0
        %787 = vmatprep.subr.mxu0 0.0
        %788 = vmatpush1.xpose.msra.mxu0 %v785
        %789 = vmatprep.subr.mxu0 0.0
        %790 = vmatpush1.xpose.msra.mxu0 0.0
        %791 = vmatprep.subr.mxu0 0.0
        %792 = vmatpush1.xpose.msra.mxu0 0.0
        %793 = vmatprep.subr.mxu0 0.0
        %794 = vmatpush1.xpose.msra.mxu0 0.0
        %795 = vmatprep.subr.mxu0 0.0
        %796 = vmatpush1.xpose.msra.mxu0 0.0
        %797 = vmatprep.subr.mxu0 0.0
        %798 = vmatpush1.xpose.msra.mxu0 0.0
        %799 = vmatprep.subr.mxu0 0.0
        %800 = vmatpush1.xpose.msra.mxu0 0.0
        %801 = vmatprep.subr.mxu0 0.0
        %802 = vmatpush1.xpose.msra.mxu0 0.0
        %803 = vmatprep.subr.mxu0 0.0
        %804 = vmatpush1.xpose.msra.mxu0 0.0
        %805 = vmatprep.subr.mxu0 0.0
        %806 = vmatpush1.xpose.msra.mxu0 0.0
        %807 = vmatprep.subr.mxu0 0.0
        %808 = vmatpush1.xpose.msra.mxu0 0.0
        %809 = vmatprep.subr.mxu0 0.0
        %810 = vmatpush1.xpose.msra.mxu0 0.0
        %811 = vmatprep.subr.mxu0 0.0
        %812 = vmatpush1.xpose.msra.mxu0 0.0
        %813 = vmatprep.subr.mxu0 0.0
        %814 = vmatpush1.xpose.msra.mxu0 0.0
        %815 = vmatprep.subr.mxu0 0.0
        %816 = vmatpush1.xpose.msra.mxu0 0.0
        %817 = vmatprep.subr.mxu0 0.0
        %818 = vmatpush1.xpose.msra.mxu0 0.0
        %819 = vmatprep.subr.mxu0 0.0
        %820 = vmatpush1.xpose.msra.mxu0 0.0
        %821 = vmatprep.subr.mxu0 0.0
        %822 = vmatpush1.xpose.msra.mxu0 0.0
        %823 = vmatprep.subr.mxu0 0.0
        %824 = vmatpush1.xpose.msra.mxu0 0.0
        %825 = vmatprep.subr.mxu0 0.0
        %826 = vmatpush1.xpose.msra.mxu0 0.0
        %827 = vmatprep.subr.mxu0 0.0
        %828 = vmatpush1.xpose.msra.mxu0 0.0
        %829 = vmatprep.subr.mxu0 0.0
        %830 = vmatpush1.xpose.msra.mxu0 0.0
        %831 = vmatprep.subr.mxu0 0.0
        %832 = vmatpush1.xpose.msra.mxu0 0.0
        %833 = vmatprep.subr.mxu0 0.0
        %834 = vmatpush1.xpose.msra.mxu0 0.0
        %835 = vmatprep.subr.mxu0 0.0
        %836 = vmatpush1.xpose.msra.mxu0 0.0
        %837 = vmatprep.subr.mxu0 0.0
        %838 = vmatpush1.xpose.msra.mxu0 0.0
        %839 = vmatprep.subr.mxu0 0.0
        %840 = vmatpush1.xpose.msra.mxu0 0.0
        %841 = vmatprep.subr.mxu0 0.0
        %842 = vmatpush1.xpose.msra.mxu0 0.0
        %843 = vmatprep.subr.mxu0 0.0
        %844 = vmatpush1.xpose.msra.mxu0 0.0
        %845 = vmatprep.subr.mxu0 0.0
        %846 = vmatpush1.xpose.msra.mxu0 0.0
        %847 = vmatprep.subr.mxu0 0.0
        %848 = vmatpush1.xpose.msra.mxu0 0.0
        %849 = vmatprep.subr.mxu0 0.0
        %850 = vmatpush1.xpose.msra.mxu0 0.0
        %851 = vmatprep.mubr.f32.mxu0 0.0
        %852 = vmatmul.mubr.f32.gmra.mrb[0].mxu0 %v783
        %v853 = vpop.f32.mrb[0].mxu0
        %v854 = vadd.f32 0.0, %v853
        %v855 = vpop.f32.mrb[0].mxu0
        %856 = vdwg.mxu0
        %v857 = vmul.f32 %v854, 0.5
        %v858 = vsel %vm614, -inf, %v857
        %v859 = vsel %vm694, %v858, -inf
        %860 = vmax.xlane.f32.xlu0 %v859
        %v861 = vpop.xlane.xlu0 %860
        %v862 = vsub.f32 %v858, %v861
        %v863 = vmul.f32 %v862, 1.442695
        %v864 = vpow.pop %v863
        %v865 = vsel %vm694, %v864, 0.0
        %866 = vadd.xlane.f32.xlu0 %v865
        %v867 = vpop.xlane.xlu0 %866
        %v868 = vrcp.pop %v867
        %v869 = vmul.f32 %v864, %v868
        %871 = vrot.lane.b32.xlu0 %v603, 124
        %v872 = vpop.permute.xlu0 %871
        %v875 = vsel %vm694, %v869, 0
        %877 = vmatprep.subr.mxu0 0.0
        %878 = vmatpush1.msra.mxu0 %v872
        %879 = vmatprep.subr.mxu0 0.0
        %880 = vmatpush1.msra.mxu0 0.0
        %881 = vmatprep.subr.mxu0 0.0
        %882 = vmatpush1.msra.mxu0 0.0
        %883 = vmatprep.subr.mxu0 0.0
        %884 = vmatpush1.msra.mxu0 0.0
        %885 = vmatprep.subr.mxu0 0.0
        %886 = vmatpush1.msra.mxu0 0.0
        %887 = vmatprep.subr.mxu0 0.0
        %888 = vmatpush1.msra.mxu0 0.0
        %889 = vmatprep.subr.mxu0 0.0
        %890 = vmatpush1.msra.mxu0 0.0
        %891 = vmatprep.subr.mxu0 0.0
        %892 = vmatpush1.msra.mxu0 0.0
        %893 = vmatprep.subr.mxu0 0.0
        %894 = vmatpush1.msra.mxu0 0.0
        %895 = vmatprep.subr.mxu0 0.0
        %896 = vmatpush1.msra.mxu0 0.0
        %897 = vmatprep.subr.mxu0 0.0
        %898 = vmatpush1.msra.mxu0 0.0
        %899 = vmatprep.subr.mxu0 0.0
        %900 = vmatpush1.msra.mxu0 0.0
        %901 = vmatprep.subr.mxu0 0.0
        %902 = vmatpush1.msra.mxu0 0.0
        %903 = vmatprep.subr.mxu0 0.0
        %904 = vmatpush1.msra.mxu0 0.0
        %905 = vmatprep.subr.mxu0 0.0
        %906 = vmatpush1.msra.mxu0 0.0
        %907 = vmatprep.subr.mxu0 0.0
        %908 = vmatpush1.msra.mxu0 0.0
        %909 = vmatprep.subr.mxu0 0.0
        %910 = vmatpush1.msra.mxu0 0.0
        %911 = vmatprep.subr.mxu0 0.0
        %912 = vmatpush1.msra.mxu0 0.0
        %913 = vmatprep.subr.mxu0 0.0
        %914 = vmatpush1.msra.mxu0 0.0
        %915 = vmatprep.subr.mxu0 0.0
        %916 = vmatpush1.msra.mxu0 0.0
        %917 = vmatprep.subr.mxu0 0.0
        %918 = vmatpush1.msra.mxu0 0.0
        %919 = vmatprep.subr.mxu0 0.0
        %920 = vmatpush1.msra.mxu0 0.0
        %921 = vmatprep.subr.mxu0 0.0
        %922 = vmatpush1.msra.mxu0 0.0
        %923 = vmatprep.subr.mxu0 0.0
        %924 = vmatpush1.msra.mxu0 0.0
        %925 = vmatprep.subr.mxu0 0.0
        %926 = vmatpush1.msra.mxu0 0.0
        %927 = vmatprep.subr.mxu0 0.0
        %928 = vmatpush1.msra.mxu0 0.0
        %929 = vmatprep.subr.mxu0 0.0
        %930 = vmatpush1.msra.mxu0 0.0
        %931 = vmatprep.subr.mxu0 0.0
        %932 = vmatpush1.msra.mxu0 0.0
        %933 = vmatprep.subr.mxu0 0.0
        %934 = vmatpush1.msra.mxu0 0.0
        %935 = vmatprep.subr.mxu0 0.0
        %936 = vmatpush1.msra.mxu0 0.0
        %937 = vmatprep.subr.mxu0 0.0
        %938 = vmatpush1.msra.mxu0 0.0
        %939 = vmatprep.subr.mxu0 0.0
        %940 = vmatpush1.msra.mxu0 0.0
        %941 = vmatprep.mubr.f32.mxu0 0.0
        %942 = vmatmul.mubr.f32.gmra.mrb[0].mxu0 %v875
        %v943 = vpop.f32.mrb[0].mxu0
        %v944 = vadd.f32 0.0, %v943
        %v945 = vpop.f32.mrb[0].mxu0
        %946 = vdwg.mxu0
        %v948 = vrot.slane %v606, 4
        %v950 = vsel %vm615, %v944, 0
        %vm952 = vcmask 1043456
        %v953 = vsel %vm952, %v948, 0
        %955 = vmatprep.subr.mxu0 0.0
        %956 = vmatpush1.msra.mxu0 %v953
        %957 = vmatprep.subr.mxu0 0.0
        %958 = vmatpush1.msra.mxu0 0.0
        %959 = vmatprep.subr.mxu0 0.0
        %960 = vmatpush1.msra.mxu0 0.0
        %961 = vmatprep.subr.mxu0 0.0
        %962 = vmatpush1.msra.mxu0 0.0
        %963 = vmatprep.subr.mxu0 0.0
        %964 = vmatpush1.msra.mxu0 0.0
        %965 = vmatprep.subr.mxu0 0.0
        %966 = vmatpush1.msra.mxu0 0.0
        %967 = vmatprep.subr.mxu0 0.0
        %968 = vmatpush1.msra.mxu0 0.0
        %969 = vmatprep.subr.mxu0 0.0
        %970 = vmatpush1.msra.mxu0 0.0
        %971 = vmatprep.subr.mxu0 0.0
        %972 = vmatpush1.msra.mxu0 0.0
        %973 = vmatprep.subr.mxu0 0.0
        %974 = vmatpush1.msra.mxu0 0.0
        %975 = vmatprep.subr.mxu0 0.0
        %976 = vmatpush1.msra.mxu0 0.0
        %977 = vmatprep.subr.mxu0 0.0
        %978 = vmatpush1.msra.mxu0 0.0
        %979 = vmatprep.subr.mxu0 0.0
        %980 = vmatpush1.msra.mxu0 0.0
        %981 = vmatprep.subr.mxu0 0.0
        %982 = vmatpush1.msra.mxu0 0.0
        %983 = vmatprep.subr.mxu0 0.0
        %984 = vmatpush1.msra.mxu0 0.0
        %985 = vmatprep.subr.mxu0 0.0
        %986 = vmatpush1.msra.mxu0 0.0
        %987 = vmatprep.subr.mxu0 0.0
        %988 = vmatpush1.msra.mxu0 0.0
        %989 = vmatprep.subr.mxu0 0.0
        %990 = vmatpush1.msra.mxu0 0.0
        %991 = vmatprep.subr.mxu0 0.0
        %992 = vmatpush1.msra.mxu0 0.0
        %993 = vmatprep.subr.mxu0 0.0
        %994 = vmatpush1.msra.mxu0 0.0
        %995 = vmatprep.subr.mxu0 0.0
        %996 = vmatpush1.msra.mxu0 0.0
        %997 = vmatprep.subr.mxu0 0.0
        %998 = vmatpush1.msra.mxu0 0.0
        %999 = vmatprep.subr.mxu0 0.0
        %1000 = vmatpush1.msra.mxu0 0.0
        %1001 = vmatprep.subr.mxu0 0.0
        %1002 = vmatpush1.msra.mxu0 0.0
        %1003 = vmatprep.subr.mxu0 0.0
        %1004 = vmatpush1.msra.mxu0 0.0
        %1005 = vmatprep.subr.mxu0 0.0
        %1006 = vmatpush1.msra.mxu0 0.0
        %1007 = vmatprep.subr.mxu0 0.0
        %1008 = vmatpush1.msra.mxu0 0.0
        %1009 = vmatprep.subr.mxu0 0.0
        %1010 = vmatpush1.msra.mxu0 0.0
        %1011 = vmatprep.subr.mxu0 0.0
        %1012 = vmatpush1.msra.mxu0 0.0
        %1013 = vmatprep.subr.mxu0 0.0
        %1014 = vmatpush1.msra.mxu0 0.0
        %1015 = vmatprep.subr.mxu0 0.0
        %1016 = vmatpush1.msra.mxu0 0.0
        %1017 = vmatprep.subr.mxu0 0.0
        %1018 = vmatpush1.msra.mxu0 0.0
        %1019 = vmatprep.mubr.f32.mxu0 0.0
        %1020 = vmatmul.mubr.f32.gmra.mrb[0].mxu0 %v950
        %v1021 = vpop.f32.mrb[0].mxu0
        %v1022 = vadd.f32 0.0, %v1021
        %v1023 = vpop.f32.mrb[0].mxu0
        %1024 = vdwg.mxu0
        %v1026 = vsel %vm615, %v776, 0
        %v1028 = vsel %vm952, %v606, 0
        %1030 = vmatprep.subr.mxu0 0.0
        %1031 = vmatpush1.msra.mxu0 %v1028
        %1032 = vmatprep.subr.mxu0 0.0
        %1033 = vmatpush1.msra.mxu0 0.0
        %1034 = vmatprep.subr.mxu0 0.0
        %1035 = vmatpush1.msra.mxu0 0.0
        %1036 = vmatprep.subr.mxu0 0.0
        %1037 = vmatpush1.msra.mxu0 0.0
        %1038 = vmatprep.subr.mxu0 0.0
        %1039 = vmatpush1.msra.mxu0 0.0
        %1040 = vmatprep.subr.mxu0 0.0
        %1041 = vmatpush1.msra.mxu0 0.0
        %1042 = vmatprep.subr.mxu0 0.0
        %1043 = vmatpush1.msra.mxu0 0.0
        %1044 = vmatprep.subr.mxu0 0.0
        %1045 = vmatpush1.msra.mxu0 0.0
        %1046 = vmatprep.subr.mxu0 0.0
        %1047 = vmatpush1.msra.mxu0 0.0
        %1048 = vmatprep.subr.mxu0 0.0
        %1049 = vmatpush1.msra.mxu0 0.0
        %1050 = vmatprep.subr.mxu0 0.0
        %1051 = vmatpush1.msra.mxu0 0.0
        %1052 = vmatprep.subr.mxu0 0.0
        %1053 = vmatpush1.msra.mxu0 0.0
        %1054 = vmatprep.subr.mxu0 0.0
        %1055 = vmatpush1.msra.mxu0 0.0
        %1056 = vmatprep.subr.mxu0 0.0
        %1057 = vmatpush1.msra.mxu0 0.0
        %1058 = vmatprep.subr.mxu0 0.0
        %1059 = vmatpush1.msra.mxu0 0.0
        %1060 = vmatprep.subr.mxu0 0.0
        %1061 = vmatpush1.msra.mxu0 0.0
        %1062 = vmatprep.subr.mxu0 0.0
        %1063 = vmatpush1.msra.mxu0 0.0
        %1064 = vmatprep.subr.mxu0 0.0
        %1065 = vmatpush1.msra.mxu0 0.0
        %1066 = vmatprep.subr.mxu0 0.0
        %1067 = vmatpush1.msra.mxu0 0.0
        %1068 = vmatprep.subr.mxu0 0.0
        %1069 = vmatpush1.msra.mxu0 0.0
        %1070 = vmatprep.subr.mxu0 0.0
        %1071 = vmatpush1.msra.mxu0 0.0
        %1072 = vmatprep.subr.mxu0 0.0
        %1073 = vmatpush1.msra.mxu0 0.0
        %1074 = vmatprep.subr.mxu0 0.0
        %1075 = vmatpush1.msra.mxu0 0.0
        %1076 = vmatprep.subr.mxu0 0.0
        %1077 = vmatpush1.msra.mxu0 0.0
        %1078 = vmatprep.subr.mxu0 0.0
        %1079 = vmatpush1.msra.mxu0 0.0
        %1080 = vmatprep.subr.mxu0 0.0
        %1081 = vmatpush1.msra.mxu0 0.0
        %1082 = vmatprep.subr.mxu0 0.0
        %1083 = vmatpush1.msra.mxu0 0.0
        %1084 = vmatprep.subr.mxu0 0.0
        %1085 = vmatpush1.msra.mxu0 0.0
        %1086 = vmatprep.subr.mxu0 0.0
        %1087 = vmatpush1.msra.mxu0 0.0
        %1088 = vmatprep.subr.mxu0 0.0
        %1089 = vmatpush1.msra.mxu0 0.0
        %1090 = vmatprep.subr.mxu0 0.0
        %1091 = vmatpush1.msra.mxu0 0.0
        %1092 = vmatprep.subr.mxu0 0.0
        %1093 = vmatpush1.msra.mxu0 0.0
        %1094 = vmatprep.mubr.f32.mxu0 0.0
        %1095 = vmatmul.mubr.f32.gmra.mrb[0].mxu0 %v1026
        %v1096 = vpop.f32.mrb[0].mxu0
        %v1097 = vadd.f32 %v1022, %v1096
        %v1098 = vpop.f32.mrb[0].mxu0
        %1099 = vdwg.mxu0
        %1100 = vrot.lane.b32.xlu0 %v455, 120
        %v1101 = vpop.permute.xlu0 %1100
        %1102 = vrot.lane.b32.xlu0 %v529, 120
        %v1103 = vpop.permute.xlu0 %1102
        %v1104 = vsel %vm615, %v1101, 0
        %v1106 = vsel %vm615, %v1103, 0
        %1108 = vmatprep.subr.mxu0 0.0
        %1109 = vmatpush1.xpose.msra.mxu0 %v1106
        %1110 = vmatprep.subr.mxu0 0.0
        %1111 = vmatpush1.xpose.msra.mxu0 0.0
        %1112 = vmatprep.subr.mxu0 0.0
        %1113 = vmatpush1.xpose.msra.mxu0 0.0
        %1114 = vmatprep.subr.mxu0 0.0
        %1115 = vmatpush1.xpose.msra.mxu0 0.0
        %1116 = vmatprep.subr.mxu0 0.0
        %1117 = vmatpush1.xpose.msra.mxu0 0.0
        %1118 = vmatprep.subr.mxu0 0.0
        %1119 = vmatpush1.xpose.msra.mxu0 0.0
        %1120 = vmatprep.subr.mxu0 0.0
        %1121 = vmatpush1.xpose.msra.mxu0 0.0
        %1122 = vmatprep.subr.mxu0 0.0
        %1123 = vmatpush1.xpose.msra.mxu0 0.0
        %1124 = vmatprep.subr.mxu0 0.0
        %1125 = vmatpush1.xpose.msra.mxu0 0.0
        %1126 = vmatprep.subr.mxu0 0.0
        %1127 = vmatpush1.xpose.msra.mxu0 0.0
        %1128 = vmatprep.subr.mxu0 0.0
        %1129 = vmatpush1.xpose.msra.mxu0 0.0
        %1130 = vmatprep.subr.mxu0 0.0
        %1131 = vmatpush1.xpose.msra.mxu0 0.0
        %1132 = vmatprep.subr.mxu0 0.0
        %1133 = vmatpush1.xpose.msra.mxu0 0.0
        %1134 = vmatprep.subr.mxu0 0.0
        %1135 = vmatpush1.xpose.msra.mxu0 0.0
        %1136 = vmatprep.subr.mxu0 0.0
        %1137 = vmatpush1.xpose.msra.mxu0 0.0
        %1138 = vmatprep.subr.mxu0 0.0
        %1139 = vmatpush1.xpose.msra.mxu0 0.0
        %1140 = vmatprep.subr.mxu0 0.0
        %1141 = vmatpush1.xpose.msra.mxu0 0.0
        %1142 = vmatprep.subr.mxu0 0.0
        %1143 = vmatpush1.xpose.msra.mxu0 0.0
        %1144 = vmatprep.subr.mxu0 0.0
        %1145 = vmatpush1.xpose.msra.mxu0 0.0
        %1146 = vmatprep.subr.mxu0 0.0
        %1147 = vmatpush1.xpose.msra.mxu0 0.0
        %1148 = vmatprep.subr.mxu0 0.0
        %1149 = vmatpush1.xpose.msra.mxu0 0.0
        %1150 = vmatprep.subr.mxu0 0.0
        %1151 = vmatpush1.xpose.msra.mxu0 0.0
        %1152 = vmatprep.subr.mxu0 0.0
        %1153 = vmatpush1.xpose.msra.mxu0 0.0
        %1154 = vmatprep.subr.mxu0 0.0
        %1155 = vmatpush1.xpose.msra.mxu0 0.0
        %1156 = vmatprep.subr.mxu0 0.0
        %1157 = vmatpush1.xpose.msra.mxu0 0.0
        %1158 = vmatprep.subr.mxu0 0.0
        %1159 = vmatpush1.xpose.msra.mxu0 0.0
        %1160 = vmatprep.subr.mxu0 0.0
        %1161 = vmatpush1.xpose.msra.mxu0 0.0
        %1162 = vmatprep.subr.mxu0 0.0
        %1163 = vmatpush1.xpose.msra.mxu0 0.0
        %1164 = vmatprep.subr.mxu0 0.0
        %1165 = vmatpush1.xpose.msra.mxu0 0.0
        %1166 = vmatprep.subr.mxu0 0.0
        %1167 = vmatpush1.xpose.msra.mxu0 0.0
        %1168 = vmatprep.subr.mxu0 0.0
        %1169 = vmatpush1.xpose.msra.mxu0 0.0
        %1170 = vmatprep.subr.mxu0 0.0
        %1171 = vmatpush1.xpose.msra.mxu0 0.0
        %1172 = vmatprep.mubr.f32.mxu0 0.0
        %1173 = vmatmul.mubr.f32.gmra.mrb[0].mxu0 %v1104
        %v1174 = vpop.f32.mrb[0].mxu0
        %v1175 = vadd.f32 0.0, %v1174
        %v1176 = vpop.f32.mrb[0].mxu0
        %1177 = vdwg.mxu0
        %v1178 = vmul.f32 %v1175, 0.5
        %v1179 = vsel %vm614, -inf, %v1178
        %v1180 = vsel %vm694, %v1179, -inf
        %1181 = vmax.xlane.f32.xlu0 %v1180
        %v1182 = vpop.xlane.xlu0 %1181
        %v1183 = vsub.f32 %v1179, %v1182
        %v1184 = vmul.f32 %v1183, 1.442695
        %v1185 = vpow.pop %v1184
        %v1186 = vsel %vm694, %v1185, 0.0
        %1187 = vadd.xlane.f32.xlu0 %v1186
        %v1188 = vpop.xlane.xlu0 %1187
        %v1189 = vrcp.pop %v1188
        %v1190 = vmul.f32 %v1185, %v1189
        %1191 = vrot.lane.b32.xlu0 %v603, 120
        %v1192 = vpop.permute.xlu0 %1191
        %v1195 = vsel %vm694, %v1190, 0
        %1197 = vmatprep.subr.mxu0 0.0
        %1198 = vmatpush1.msra.mxu0 %v1192
        %1199 = vmatprep.subr.mxu0 0.0
        %1200 = vmatpush1.msra.mxu0 0.0
        %1201 = vmatprep.subr.mxu0 0.0
        %1202 = vmatpush1.msra.mxu0 0.0
        %1203 = vmatprep.subr.mxu0 0.0
        %1204 = vmatpush1.msra.mxu0 0.0
        %1205 = vmatprep.subr.mxu0 0.0
        %1206 = vmatpush1.msra.mxu0 0.0
        %1207 = vmatprep.subr.mxu0 0.0
        %1208 = vmatpush1.msra.mxu0 0.0
        %1209 = vmatprep.subr.mxu0 0.0
        %1210 = vmatpush1.msra.mxu0 0.0
        %1211 = vmatprep.subr.mxu0 0.0
        %1212 = vmatpush1.msra.mxu0 0.0
        %1213 = vmatprep.subr.mxu0 0.0
        %1214 = vmatpush1.msra.mxu0 0.0
        %1215 = vmatprep.subr.mxu0 0.0
        %1216 = vmatpush1.msra.mxu0 0.0
        %1217 = vmatprep.subr.mxu0 0.0
        %1218 = vmatpush1.msra.mxu0 0.0
        %1219 = vmatprep.subr.mxu0 0.0
        %1220 = vmatpush1.msra.mxu0 0.0
        %1221 = vmatprep.subr.mxu0 0.0
        %1222 = vmatpush1.msra.mxu0 0.0
        %1223 = vmatprep.subr.mxu0 0.0
        %1224 = vmatpush1.msra.mxu0 0.0
        %1225 = vmatprep.subr.mxu0 0.0
        %1226 = vmatpush1.msra.mxu0 0.0
        %1227 = vmatprep.subr.mxu0 0.0
        %1228 = vmatpush1.msra.mxu0 0.0
        %1229 = vmatprep.subr.mxu0 0.0
        %1230 = vmatpush1.msra.mxu0 0.0
        %1231 = vmatprep.subr.mxu0 0.0
        %1232 = vmatpush1.msra.mxu0 0.0
        %1233 = vmatprep.subr.mxu0 0.0
        %1234 = vmatpush1.msra.mxu0 0.0
        %1235 = vmatprep.subr.mxu0 0.0
        %1236 = vmatpush1.msra.mxu0 0.0
        %1237 = vmatprep.subr.mxu0 0.0
        %1238 = vmatpush1.msra.mxu0 0.0
        %1239 = vmatprep.subr.mxu0 0.0
        %1240 = vmatpush1.msra.mxu0 0.0
        %1241 = vmatprep.subr.mxu0 0.0
        %1242 = vmatpush1.msra.mxu0 0.0
        %1243 = vmatprep.subr.mxu0 0.0
        %1244 = vmatpush1.msra.mxu0 0.0
        %1245 = vmatprep.subr.mxu0 0.0
        %1246 = vmatpush1.msra.mxu0 0.0
        %1247 = vmatprep.subr.mxu0 0.0
        %1248 = vmatpush1.msra.mxu0 0.0
        %1249 = vmatprep.subr.mxu0 0.0
        %1250 = vmatpush1.msra.mxu0 0.0
        %1251 = vmatprep.subr.mxu0 0.0
        %1252 = vmatpush1.msra.mxu0 0.0
        %1253 = vmatprep.subr.mxu0 0.0
        %1254 = vmatpush1.msra.mxu0 0.0
        %1255 = vmatprep.subr.mxu0 0.0
        %1256 = vmatpush1.msra.mxu0 0.0
        %1257 = vmatprep.subr.mxu0 0.0
        %1258 = vmatpush1.msra.mxu0 0.0
        %1259 = vmatprep.subr.mxu0 0.0
        %1260 = vmatpush1.msra.mxu0 0.0
        %1261 = vmatprep.mubr.f32.mxu0 0.0
        %1262 = vmatmul.mubr.f32.gmra.mrb[0].mxu0 %v1195
        %v1263 = vpop.f32.mrb[0].mxu0
        %v1264 = vadd.f32 0.0, %v1263
        %v1265 = vpop.f32.mrb[0].mxu0
        %1266 = vdwg.mxu0
        %v1268 = vsel %vm615, %v1264, 0
        %v1271 = vsel %vm952, %v607, 0
        %1273 = vmatprep.subr.mxu0 0.0
        %1274 = vmatpush1.msra.mxu0 %v1271
        %1275 = vmatprep.subr.mxu0 0.0
        %1276 = vmatpush1.msra.mxu0 0.0
        %1277 = vmatprep.subr.mxu0 0.0
        %1278 = vmatpush1.msra.mxu0 0.0
        %1279 = vmatprep.subr.mxu0 0.0
        %1280 = vmatpush1.msra.mxu0 0.0
        %1281 = vmatprep.subr.mxu0 0.0
        %1282 = vmatpush1.msra.mxu0 0.0
        %1283 = vmatprep.subr.mxu0 0.0
        %1284 = vmatpush1.msra.mxu0 0.0
        %1285 = vmatprep.subr.mxu0 0.0
        %1286 = vmatpush1.msra.mxu0 0.0
        %1287 = vmatprep.subr.mxu0 0.0
        %1288 = vmatpush1.msra.mxu0 0.0
        %1289 = vmatprep.subr.mxu0 0.0
        %1290 = vmatpush1.msra.mxu0 0.0
        %1291 = vmatprep.subr.mxu0 0.0
        %1292 = vmatpush1.msra.mxu0 0.0
        %1293 = vmatprep.subr.mxu0 0.0
        %1294 = vmatpush1.msra.mxu0 0.0
        %1295 = vmatprep.subr.mxu0 0.0
        %1296 = vmatpush1.msra.mxu0 0.0
        %1297 = vmatprep.subr.mxu0 0.0
        %1298 = vmatpush1.msra.mxu0 0.0
        %1299 = vmatprep.subr.mxu0 0.0
        %1300 = vmatpush1.msra.mxu0 0.0
        %1301 = vmatprep.subr.mxu0 0.0
        %1302 = vmatpush1.msra.mxu0 0.0
        %1303 = vmatprep.subr.mxu0 0.0
        %1304 = vmatpush1.msra.mxu0 0.0
        %1305 = vmatprep.subr.mxu0 0.0
        %1306 = vmatpush1.msra.mxu0 0.0
        %1307 = vmatprep.subr.mxu0 0.0
        %1308 = vmatpush1.msra.mxu0 0.0
        %1309 = vmatprep.subr.mxu0 0.0
        %1310 = vmatpush1.msra.mxu0 0.0
        %1311 = vmatprep.subr.mxu0 0.0
        %1312 = vmatpush1.msra.mxu0 0.0
        %1313 = vmatprep.subr.mxu0 0.0
        %1314 = vmatpush1.msra.mxu0 0.0
        %1315 = vmatprep.subr.mxu0 0.0
        %1316 = vmatpush1.msra.mxu0 0.0
        %1317 = vmatprep.subr.mxu0 0.0
        %1318 = vmatpush1.msra.mxu0 0.0
        %1319 = vmatprep.subr.mxu0 0.0
        %1320 = vmatpush1.msra.mxu0 0.0
        %1321 = vmatprep.subr.mxu0 0.0
        %1322 = vmatpush1.msra.mxu0 0.0
        %1323 = vmatprep.subr.mxu0 0.0
        %1324 = vmatpush1.msra.mxu0 0.0
        %1325 = vmatprep.subr.mxu0 0.0
        %1326 = vmatpush1.msra.mxu0 0.0
        %1327 = vmatprep.subr.mxu0 0.0
        %1328 = vmatpush1.msra.mxu0 0.0
        %1329 = vmatprep.subr.mxu0 0.0
        %1330 = vmatpush1.msra.mxu0 0.0
        %1331 = vmatprep.subr.mxu0 0.0
        %1332 = vmatpush1.msra.mxu0 0.0
        %1333 = vmatprep.subr.mxu0 0.0
        %1334 = vmatpush1.msra.mxu0 0.0
        %1335 = vmatprep.subr.mxu0 0.0
        %1336 = vmatpush1.msra.mxu0 0.0
        %1337 = vmatprep.mubr.f32.mxu0 0.0
        %1338 = vmatmul.mubr.f32.gmra.mrb[0].mxu0 %v1268
        %v1339 = vpop.f32.mrb[0].mxu0
        %v1340 = vadd.f32 0.0, %v1339
        %v1341 = vpop.f32.mrb[0].mxu0
        %1342 = vdwg.mxu0
        %v1343 = vadd.f32 %v1097, %v1340
        %1344 = vrot.lane.b32.xlu0 %v455, 116
        %v1345 = vpop.permute.xlu0 %1344
        %1346 = vrot.lane.b32.xlu0 %v529, 116
        %v1347 = vpop.permute.xlu0 %1346
        %v1348 = vsel %vm615, %v1345, 0
        %v1350 = vsel %vm615, %v1347, 0
        %1352 = vmatprep.subr.mxu0 0.0
        %1353 = vmatpush1.xpose.msra.mxu0 %v1350
        %1354 = vmatprep.subr.mxu0 0.0
        %1355 = vmatpush1.xpose.msra.mxu0 0.0
        %1356 = vmatprep.subr.mxu0 0.0
        %1357 = vmatpush1.xpose.msra.mxu0 0.0
        %1358 = vmatprep.subr.mxu0 0.0
        %1359 = vmatpush1.xpose.msra.mxu0 0.0
        %1360 = vmatprep.subr.mxu0 0.0
        %1361 = vmatpush1.xpose.msra.mxu0 0.0
        %1362 = vmatprep.subr.mxu0 0.0
        %1363 = vmatpush1.xpose.msra.mxu0 0.0
        %1364 = vmatprep.subr.mxu0 0.0
        %1365 = vmatpush1.xpose.msra.mxu0 0.0
        %1366 = vmatprep.subr.mxu0 0.0
        %1367 = vmatpush1.xpose.msra.mxu0 0.0
        %1368 = vmatprep.subr.mxu0 0.0
        %1369 = vmatpush1.xpose.msra.mxu0 0.0
        %1370 = vmatprep.subr.mxu0 0.0
        %1371 = vmatpush1.xpose.msra.mxu0 0.0
        %1372 = vmatprep.subr.mxu0 0.0
        %1373 = vmatpush1.xpose.msra.mxu0 0.0
        %1374 = vmatprep.subr.mxu0 0.0
        %1375 = vmatpush1.xpose.msra.mxu0 0.0
        %1376 = vmatprep.subr.mxu0 0.0
        %1377 = vmatpush1.xpose.msra.mxu0 0.0
        %1378 = vmatprep.subr.mxu0 0.0
        %1379 = vmatpush1.xpose.msra.mxu0 0.0
        %1380 = vmatprep.subr.mxu0 0.0
        %1381 = vmatpush1.xpose.msra.mxu0 0.0
        %1382 = vmatprep.subr.mxu0 0.0
        %1383 = vmatpush1.xpose.msra.mxu0 0.0
        %1384 = vmatprep.subr.mxu0 0.0
        %1385 = vmatpush1.xpose.msra.mxu0 0.0
        %1386 = vmatprep.subr.mxu0 0.0
        %1387 = vmatpush1.xpose.msra.mxu0 0.0
        %1388 = vmatprep.subr.mxu0 0.0
        %1389 = vmatpush1.xpose.msra.mxu0 0.0
        %1390 = vmatprep.subr.mxu0 0.0
        %1391 = vmatpush1.xpose.msra.mxu0 0.0
        %1392 = vmatprep.subr.mxu0 0.0
        %1393 = vmatpush1.xpose.msra.mxu0 0.0
        %1394 = vmatprep.subr.mxu0 0.0
        %1395 = vmatpush1.xpose.msra.mxu0 0.0
        %1396 = vmatprep.subr.mxu0 0.0
        %1397 = vmatpush1.xpose.msra.mxu0 0.0
        %1398 = vmatprep.subr.mxu0 0.0
        %1399 = vmatpush1.xpose.msra.mxu0 0.0
        %1400 = vmatprep.subr.mxu0 0.0
        %1401 = vmatpush1.xpose.msra.mxu0 0.0
        %1402 = vmatprep.subr.mxu0 0.0
        %1403 = vmatpush1.xpose.msra.mxu0 0.0
        %1404 = vmatprep.subr.mxu0 0.0
        %1405 = vmatpush1.xpose.msra.mxu0 0.0
        %1406 = vmatprep.subr.mxu0 0.0
        %1407 = vmatpush1.xpose.msra.mxu0 0.0
        %1408 = vmatprep.subr.mxu0 0.0
        %1409 = vmatpush1.xpose.msra.mxu0 0.0
        %1410 = vmatprep.subr.mxu0 0.0
        %1411 = vmatpush1.xpose.msra.mxu0 0.0
        %1412 = vmatprep.subr.mxu0 0.0
        %1413 = vmatpush1.xpose.msra.mxu0 0.0
        %1414 = vmatprep.subr.mxu0 0.0
        %1415 = vmatpush1.xpose.msra.mxu0 0.0
        %1416 = vmatprep.mubr.f32.mxu0 0.0
        %1417 = vmatmul.mubr.f32.gmra.mrb[0].mxu0 %v1348
        %v1418 = vpop.f32.mrb[0].mxu0
        %v1419 = vadd.f32 0.0, %v1418
        %v1420 = vpop.f32.mrb[0].mxu0
        %1421 = vdwg.mxu0
        %v1422 = vmul.f32 %v1419, 0.5
        %v1423 = vsel %vm614, -inf, %v1422
        %v1424 = vsel %vm694, %v1423, -inf
        %1425 = vmax.xlane.f32.xlu0 %v1424
        %v1426 = vpop.xlane.xlu0 %1425
        %v1427 = vsub.f32 %v1423, %v1426
        %v1428 = vmul.f32 %v1427, 1.442695
        %v1429 = vpow.pop %v1428
        %v1430 = vsel %vm694, %v1429, 0.0
        %1431 = vadd.xlane.f32.xlu0 %v1430
        %v1432 = vpop.xlane.xlu0 %1431
        %v1433 = vrcp.pop %v1432
        %v1434 = vmul.f32 %v1429, %v1433
        %1435 = vrot.lane.b32.xlu0 %v603, 116
        %v1436 = vpop.permute.xlu0 %1435
        %v1439 = vsel %vm694, %v1434, 0
        %1441 = vmatprep.subr.mxu0 0.0
        %1442 = vmatpush1.msra.mxu0 %v1436
        %1443 = vmatprep.subr.mxu0 0.0
        %1444 = vmatpush1.msra.mxu0 0.0
        %1445 = vmatprep.subr.mxu0 0.0
        %1446 = vmatpush1.msra.mxu0 0.0
        %1447 = vmatprep.subr.mxu0 0.0
        %1448 = vmatpush1.msra.mxu0 0.0
        %1449 = vmatprep.subr.mxu0 0.0
        %1450 = vmatpush1.msra.mxu0 0.0
        %1451 = vmatprep.subr.mxu0 0.0
        %1452 = vmatpush1.msra.mxu0 0.0
        %1453 = vmatprep.subr.mxu0 0.0
        %1454 = vmatpush1.msra.mxu0 0.0
        %1455 = vmatprep.subr.mxu0 0.0
        %1456 = vmatpush1.msra.mxu0 0.0
        %1457 = vmatprep.subr.mxu0 0.0
        %1458 = vmatpush1.msra.mxu0 0.0
        %1459 = vmatprep.subr.mxu0 0.0
        %1460 = vmatpush1.msra.mxu0 0.0
        %1461 = vmatprep.subr.mxu0 0.0
        %1462 = vmatpush1.msra.mxu0 0.0
        %1463 = vmatprep.subr.mxu0 0.0
        %1464 = vmatpush1.msra.mxu0 0.0
        %1465 = vmatprep.subr.mxu0 0.0
        %1466 = vmatpush1.msra.mxu0 0.0
        %1467 = vmatprep.subr.mxu0 0.0
        %1468 = vmatpush1.msra.mxu0 0.0
        %1469 = vmatprep.subr.mxu0 0.0
        %1470 = vmatpush1.msra.mxu0 0.0
        %1471 = vmatprep.subr.mxu0 0.0
        %1472 = vmatpush1.msra.mxu0 0.0
        %1473 = vmatprep.subr.mxu0 0.0
        %1474 = vmatpush1.msra.mxu0 0.0
        %1475 = vmatprep.subr.mxu0 0.0
        %1476 = vmatpush1.msra.mxu0 0.0
        %1477 = vmatprep.subr.mxu0 0.0
        %1478 = vmatpush1.msra.mxu0 0.0
        %1479 = vmatprep.subr.mxu0 0.0
        %1480 = vmatpush1.msra.mxu0 0.0
        %1481 = vmatprep.subr.mxu0 0.0
        %1482 = vmatpush1.msra.mxu0 0.0
        %1483 = vmatprep.subr.mxu0 0.0
        %1484 = vmatpush1.msra.mxu0 0.0
        %1485 = vmatprep.subr.mxu0 0.0
        %1486 = vmatpush1.msra.mxu0 0.0
        %1487 = vmatprep.subr.mxu0 0.0
        %1488 = vmatpush1.msra.mxu0 0.0
        %1489 = vmatprep.subr.mxu0 0.0
        %1490 = vmatpush1.msra.mxu0 0.0
        %1491 = vmatprep.subr.mxu0 0.0
        %1492 = vmatpush1.msra.mxu0 0.0
        %1493 = vmatprep.subr.mxu0 0.0
        %1494 = vmatpush1.msra.mxu0 0.0
        %1495 = vmatprep.subr.mxu0 0.0
        %1496 = vmatpush1.msra.mxu0 0.0
        %1497 = vmatprep.subr.mxu0 0.0
        %1498 = vmatpush1.msra.mxu0 0.0
        %1499 = vmatprep.subr.mxu0 0.0
        %1500 = vmatpush1.msra.mxu0 0.0
        %1501 = vmatprep.subr.mxu0 0.0
        %1502 = vmatpush1.msra.mxu0 0.0
        %1503 = vmatprep.subr.mxu0 0.0
        %1504 = vmatpush1.msra.mxu0 0.0
        %1505 = vmatprep.mubr.f32.mxu0 0.0
        %1506 = vmatmul.mubr.f32.gmra.mrb[0].mxu0 %v1439
        %v1507 = vpop.f32.mrb[0].mxu0
        %v1508 = vadd.f32 0.0, %v1507
        %v1509 = vpop.f32.mrb[0].mxu0
        %1510 = vdwg.mxu0
        %v1511 = vrot.slane %v607, 4
        %v1513 = vsel %vm615, %v1508, 0
        %v1515 = vsel %vm952, %v1511, 0
        %1517 = vmatprep.subr.mxu0 0.0
        %1518 = vmatpush1.msra.mxu0 %v1515
        %1519 = vmatprep.subr.mxu0 0.0
        %1520 = vmatpush1.msra.mxu0 0.0
        %1521 = vmatprep.subr.mxu0 0.0
        %1522 = vmatpush1.msra.mxu0 0.0
        %1523 = vmatprep.subr.mxu0 0.0
        %1524 = vmatpush1.msra.mxu0 0.0
        %1525 = vmatprep.subr.mxu0 0.0
        %1526 = vmatpush1.msra.mxu0 0.0
        %1527 = vmatprep.subr.mxu0 0.0
        %1528 = vmatpush1.msra.mxu0 0.0
        %1529 = vmatprep.subr.mxu0 0.0
        %1530 = vmatpush1.msra.mxu0 0.0
        %1531 = vmatprep.subr.mxu0 0.0
        %1532 = vmatpush1.msra.mxu0 0.0
        %1533 = vmatprep.subr.mxu0 0.0
        %1534 = vmatpush1.msra.mxu0 0.0
        %1535 = vmatprep.subr.mxu0 0.0
        %1536 = vmatpush1.msra.mxu0 0.0
        %1537 = vmatprep.subr.mxu0 0.0
        %1538 = vmatpush1.msra.mxu0 0.0
        %1539 = vmatprep.subr.mxu0 0.0
        %1540 = vmatpush1.msra.mxu0 0.0
        %1541 = vmatprep.subr.mxu0 0.0
        %1542 = vmatpush1.msra.mxu0 0.0
        %1543 = vmatprep.subr.mxu0 0.0
        %1544 = vmatpush1.msra.mxu0 0.0
        %1545 = vmatprep.subr.mxu0 0.0
        %1546 = vmatpush1.msra.mxu0 0.0
        %1547 = vmatprep.subr.mxu0 0.0
        %1548 = vmatpush1.msra.mxu0 0.0
        %1549 = vmatprep.subr.mxu0 0.0
        %1550 = vmatpush1.msra.mxu0 0.0
        %1551 = vmatprep.subr.mxu0 0.0
        %1552 = vmatpush1.msra.mxu0 0.0
        %1553 = vmatprep.subr.mxu0 0.0
        %1554 = vmatpush1.msra.mxu0 0.0
        %1555 = vmatprep.subr.mxu0 0.0
        %1556 = vmatpush1.msra.mxu0 0.0
        %1557 = vmatprep.subr.mxu0 0.0
        %1558 = vmatpush1.msra.mxu0 0.0
        %1559 = vmatprep.subr.mxu0 0.0
        %1560 = vmatpush1.msra.mxu0 0.0
        %1561 = vmatprep.subr.mxu0 0.0
        %1562 = vmatpush1.msra.mxu0 0.0
        %1563 = vmatprep.subr.mxu0 0.0
        %1564 = vmatpush1.msra.mxu0 0.0
        %1565 = vmatprep.subr.mxu0 0.0
        %1566 = vmatpush1.msra.mxu0 0.0
        %1567 = vmatprep.subr.mxu0 0.0
        %1568 = vmatpush1.msra.mxu0 0.0
        %1569 = vmatprep.subr.mxu0 0.0
        %1570 = vmatpush1.msra.mxu0 0.0
        %1571 = vmatprep.subr.mxu0 0.0
        %1572 = vmatpush1.msra.mxu0 0.0
        %1573 = vmatprep.subr.mxu0 0.0
        %1574 = vmatpush1.msra.mxu0 0.0
        %1575 = vmatprep.subr.mxu0 0.0
        %1576 = vmatpush1.msra.mxu0 0.0
        %1577 = vmatprep.subr.mxu0 0.0
        %1578 = vmatpush1.msra.mxu0 0.0
        %1579 = vmatprep.subr.mxu0 0.0
        %1580 = vmatpush1.msra.mxu0 0.0
        %1581 = vmatprep.mubr.f32.mxu0 0.0
        %1582 = vmatmul.mubr.f32.gmra.mrb[0].mxu0 %v1513
        %v1583 = vpop.f32.mrb[0].mxu0
        %v1584 = vadd.f32 0.0, %v1583
        %v1585 = vpop.f32.mrb[0].mxu0
        %1586 = vdwg.mxu0
        %v1587 = vadd.f32 %v1343, %v1584
        %1588 = vrot.lane.b32.xlu0 %v455, 112
        %v1589 = vpop.permute.xlu0 %1588
        %1590 = vrot.lane.b32.xlu0 %v529, 112
        %v1591 = vpop.permute.xlu0 %1590
        %v1592 = vsel %vm615, %v1589, 0
        %v1594 = vsel %vm615, %v1591, 0
        %1596 = vmatprep.subr.mxu0 0.0
        %1597 = vmatpush1.xpose.msra.mxu0 %v1594
        %1598 = vmatprep.subr.mxu0 0.0
        %1599 = vmatpush1.xpose.msra.mxu0 0.0
        %1600 = vmatprep.subr.mxu0 0.0
        %1601 = vmatpush1.xpose.msra.mxu0 0.0
        %1602 = vmatprep.subr.mxu0 0.0
        %1603 = vmatpush1.xpose.msra.mxu0 0.0
        %1604 = vmatprep.subr.mxu0 0.0
        %1605 = vmatpush1.xpose.msra.mxu0 0.0
        %1606 = vmatprep.subr.mxu0 0.0
        %1607 = vmatpush1.xpose.msra.mxu0 0.0
        %1608 = vmatprep.subr.mxu0 0.0
        %1609 = vmatpush1.xpose.msra.mxu0 0.0
        %1610 = vmatprep.subr.mxu0 0.0
        %1611 = vmatpush1.xpose.msra.mxu0 0.0
        %1612 = vmatprep.subr.mxu0 0.0
        %1613 = vmatpush1.xpose.msra.mxu0 0.0
        %1614 = vmatprep.subr.mxu0 0.0
        %1615 = vmatpush1.xpose.msra.mxu0 0.0
        %1616 = vmatprep.subr.mxu0 0.0
        %1617 = vmatpush1.xpose.msra.mxu0 0.0
        %1618 = vmatprep.subr.mxu0 0.0
        %1619 = vmatpush1.xpose.msra.mxu0 0.0
        %1620 = vmatprep.subr.mxu0 0.0
        %1621 = vmatpush1.xpose.msra.mxu0 0.0
        %1622 = vmatprep.subr.mxu0 0.0
        %1623 = vmatpush1.xpose.msra.mxu0 0.0
        %1624 = vmatprep.subr.mxu0 0.0
        %1625 = vmatpush1.xpose.msra.mxu0 0.0
        %1626 = vmatprep.subr.mxu0 0.0
        %1627 = vmatpush1.xpose.msra.mxu0 0.0
        %1628 = vmatprep.subr.mxu0 0.0
        %1629 = vmatpush1.xpose.msra.mxu0 0.0
        %1630 = vmatprep.subr.mxu0 0.0
        %1631 = vmatpush1.xpose.msra.mxu0 0.0
        %1632 = vmatprep.subr.mxu0 0.0
        %1633 = vmatpush1.xpose.msra.mxu0 0.0
        %1634 = vmatprep.subr.mxu0 0.0
        %1635 = vmatpush1.xpose.msra.mxu0 0.0
        %1636 = vmatprep.subr.mxu0 0.0
        %1637 = vmatpush1.xpose.msra.mxu0 0.0
        %1638 = vmatprep.subr.mxu0 0.0
        %1639 = vmatpush1.xpose.msra.mxu0 0.0
        %1640 = vmatprep.subr.mxu0 0.0
        %1641 = vmatpush1.xpose.msra.mxu0 0.0
        %1642 = vmatprep.subr.mxu0 0.0
        %1643 = vmatpush1.xpose.msra.mxu0 0.0
        %1644 = vmatprep.subr.mxu0 0.0
        %1645 = vmatpush1.xpose.msra.mxu0 0.0
        %1646 = vmatprep.subr.mxu0 0.0
        %1647 = vmatpush1.xpose.msra.mxu0 0.0
        %1648 = vmatprep.subr.mxu0 0.0
        %1649 = vmatpush1.xpose.msra.mxu0 0.0
        %1650 = vmatprep.subr.mxu0 0.0
        %1651 = vmatpush1.xpose.msra.mxu0 0.0
        %1652 = vmatprep.subr.mxu0 0.0
        %1653 = vmatpush1.xpose.msra.mxu0 0.0
        %1654 = vmatprep.subr.mxu0 0.0
        %1655 = vmatpush1.xpose.msra.mxu0 0.0
        %1656 = vmatprep.subr.mxu0 0.0
        %1657 = vmatpush1.xpose.msra.mxu0 0.0
        %1658 = vmatprep.subr.mxu0 0.0
        %1659 = vmatpush1.xpose.msra.mxu0 0.0
        %1660 = vmatprep.mubr.f32.mxu0 0.0
        %1661 = vmatmul.mubr.f32.gmra.mrb[0].mxu0 %v1592
        %v1662 = vpop.f32.mrb[0].mxu0
        %v1663 = vadd.f32 0.0, %v1662
        %v1664 = vpop.f32.mrb[0].mxu0
        %1665 = vdwg.mxu0
        %v1666 = vmul.f32 %v1663, 0.5
        %v1667 = vsel %vm614, -inf, %v1666
        %v1668 = vsel %vm694, %v1667, -inf
        %1669 = vmax.xlane.f32.xlu0 %v1668
        %v1670 = vpop.xlane.xlu0 %1669
        %v1671 = vsub.f32 %v1667, %v1670
        %v1672 = vmul.f32 %v1671, 1.442695
        %v1673 = vpow.pop %v1672
        %v1674 = vsel %vm694, %v1673, 0.0
        %1675 = vadd.xlane.f32.xlu0 %v1674
        %v1676 = vpop.xlane.xlu0 %1675
        %v1677 = vrcp.pop %v1676
        %v1678 = vmul.f32 %v1673, %v1677
        %1679 = vrot.lane.b32.xlu0 %v603, 112
        %v1680 = vpop.permute.xlu0 %1679
        %v1683 = vsel %vm694, %v1678, 0
        %1685 = vmatprep.subr.mxu0 0.0
        %1686 = vmatpush1.msra.mxu0 %v1680
        %1687 = vmatprep.subr.mxu0 0.0
        %1688 = vmatpush1.msra.mxu0 0.0
        %1689 = vmatprep.subr.mxu0 0.0
        %1690 = vmatpush1.msra.mxu0 0.0
        %1691 = vmatprep.subr.mxu0 0.0
        %1692 = vmatpush1.msra.mxu0 0.0
        %1693 = vmatprep.subr.mxu0 0.0
        %1694 = vmatpush1.msra.mxu0 0.0
        %1695 = vmatprep.subr.mxu0 0.0
        %1696 = vmatpush1.msra.mxu0 0.0
        %1697 = vmatprep.subr.mxu0 0.0
        %1698 = vmatpush1.msra.mxu0 0.0
        %1699 = vmatprep.subr.mxu0 0.0
        %1700 = vmatpush1.msra.mxu0 0.0
        %1701 = vmatprep.subr.mxu0 0.0
        %1702 = vmatpush1.msra.mxu0 0.0
        %1703 = vmatprep.subr.mxu0 0.0
        %1704 = vmatpush1.msra.mxu0 0.0
        %1705 = vmatprep.subr.mxu0 0.0
        %1706 = vmatpush1.msra.mxu0 0.0
        %1707 = vmatprep.subr.mxu0 0.0
        %1708 = vmatpush1.msra.mxu0 0.0
        %1709 = vmatprep.subr.mxu0 0.0
        %1710 = vmatpush1.msra.mxu0 0.0
        %1711 = vmatprep.subr.mxu0 0.0
        %1712 = vmatpush1.msra.mxu0 0.0
        %1713 = vmatprep.subr.mxu0 0.0
        %1714 = vmatpush1.msra.mxu0 0.0
        %1715 = vmatprep.subr.mxu0 0.0
        %1716 = vmatpush1.msra.mxu0 0.0
        %1717 = vmatprep.subr.mxu0 0.0
        %1718 = vmatpush1.msra.mxu0 0.0
        %1719 = vmatprep.subr.mxu0 0.0
        %1720 = vmatpush1.msra.mxu0 0.0
        %1721 = vmatprep.subr.mxu0 0.0
        %1722 = vmatpush1.msra.mxu0 0.0
        %1723 = vmatprep.subr.mxu0 0.0
        %1724 = vmatpush1.msra.mxu0 0.0
        %1725 = vmatprep.subr.mxu0 0.0
        %1726 = vmatpush1.msra.mxu0 0.0
        %1727 = vmatprep.subr.mxu0 0.0
        %1728 = vmatpush1.msra.mxu0 0.0
        %1729 = vmatprep.subr.mxu0 0.0
        %1730 = vmatpush1.msra.mxu0 0.0
        %1731 = vmatprep.subr.mxu0 0.0
        %1732 = vmatpush1.msra.mxu0 0.0
        %1733 = vmatprep.subr.mxu0 0.0
        %1734 = vmatpush1.msra.mxu0 0.0
        %1735 = vmatprep.subr.mxu0 0.0
        %1736 = vmatpush1.msra.mxu0 0.0
        %1737 = vmatprep.subr.mxu0 0.0
        %1738 = vmatpush1.msra.mxu0 0.0
        %1739 = vmatprep.subr.mxu0 0.0
        %1740 = vmatpush1.msra.mxu0 0.0
        %1741 = vmatprep.subr.mxu0 0.0
        %1742 = vmatpush1.msra.mxu0 0.0
        %1743 = vmatprep.subr.mxu0 0.0
        %1744 = vmatpush1.msra.mxu0 0.0
        %1745 = vmatprep.subr.mxu0 0.0
        %1746 = vmatpush1.msra.mxu0 0.0
        %1747 = vmatprep.subr.mxu0 0.0
        %1748 = vmatpush1.msra.mxu0 0.0
        %1749 = vmatprep.mubr.f32.mxu0 0.0
        %1750 = vmatmul.mubr.f32.gmra.mrb[0].mxu0 %v1683
        %v1751 = vpop.f32.mrb[0].mxu0
        %v1752 = vadd.f32 0.0, %v1751
        %v1753 = vpop.f32.mrb[0].mxu0
        %1754 = vdwg.mxu0
        %v1756 = vsel %vm615, %v1752, 0
        %v1759 = vsel %vm952, %v608, 0
        %1761 = vmatprep.subr.mxu0 0.0
        %1762 = vmatpush1.msra.mxu0 %v1759
        %1763 = vmatprep.subr.mxu0 0.0
        %1764 = vmatpush1.msra.mxu0 0.0
        %1765 = vmatprep.subr.mxu0 0.0
        %1766 = vmatpush1.msra.mxu0 0.0
        %1767 = vmatprep.subr.mxu0 0.0
        %1768 = vmatpush1.msra.mxu0 0.0
        %1769 = vmatprep.subr.mxu0 0.0
        %1770 = vmatpush1.msra.mxu0 0.0
        %1771 = vmatprep.subr.mxu0 0.0
        %1772 = vmatpush1.msra.mxu0 0.0
        %1773 = vmatprep.subr.mxu0 0.0
        %1774 = vmatpush1.msra.mxu0 0.0
        %1775 = vmatprep.subr.mxu0 0.0
        %1776 = vmatpush1.msra.mxu0 0.0
        %1777 = vmatprep.subr.mxu0 0.0
        %1778 = vmatpush1.msra.mxu0 0.0
        %1779 = vmatprep.subr.mxu0 0.0
        %1780 = vmatpush1.msra.mxu0 0.0
        %1781 = vmatprep.subr.mxu0 0.0
        %1782 = vmatpush1.msra.mxu0 0.0
        %1783 = vmatprep.subr.mxu0 0.0
        %1784 = vmatpush1.msra.mxu0 0.0
        %1785 = vmatprep.subr.mxu0 0.0
        %1786 = vmatpush1.msra.mxu0 0.0
        %1787 = vmatprep.subr.mxu0 0.0
        %1788 = vmatpush1.msra.mxu0 0.0
        %1789 = vmatprep.subr.mxu0 0.0
        %1790 = vmatpush1.msra.mxu0 0.0
        %1791 = vmatprep.subr.mxu0 0.0
        %1792 = vmatpush1.msra.mxu0 0.0
        %1793 = vmatprep.subr.mxu0 0.0
        %1794 = vmatpush1.msra.mxu0 0.0
        %1795 = vmatprep.subr.mxu0 0.0
        %1796 = vmatpush1.msra.mxu0 0.0
        %1797 = vmatprep.subr.mxu0 0.0
        %1798 = vmatpush1.msra.mxu0 0.0
        %1799 = vmatprep.subr.mxu0 0.0
        %1800 = vmatpush1.msra.mxu0 0.0
        %1801 = vmatprep.subr.mxu0 0.0
        %1802 = vmatpush1.msra.mxu0 0.0
        %1803 = vmatprep.subr.mxu0 0.0
        %1804 = vmatpush1.msra.mxu0 0.0
        %1805 = vmatprep.subr.mxu0 0.0
        %1806 = vmatpush1.msra.mxu0 0.0
        %1807 = vmatprep.subr.mxu0 0.0
        %1808 = vmatpush1.msra.mxu0 0.0
        %1809 = vmatprep.subr.mxu0 0.0
        %1810 = vmatpush1.msra.mxu0 0.0
        %1811 = vmatprep.subr.mxu0 0.0
        %1812 = vmatpush1.msra.mxu0 0.0
        %1813 = vmatprep.subr.mxu0 0.0
        %1814 = vmatpush1.msra.mxu0 0.0
        %1815 = vmatprep.subr.mxu0 0.0
        %1816 = vmatpush1.msra.mxu0 0.0
        %1817 = vmatprep.subr.mxu0 0.0
        %1818 = vmatpush1.msra.mxu0 0.0
        %1819 = vmatprep.subr.mxu0 0.0
        %1820 = vmatpush1.msra.mxu0 0.0
        %1821 = vmatprep.subr.mxu0 0.0
        %1822 = vmatpush1.msra.mxu0 0.0
        %1823 = vmatprep.subr.mxu0 0.0
        %1824 = vmatpush1.msra.mxu0 0.0
        %1825 = vmatprep.mubr.f32.mxu0 0.0
        %1826 = vmatmul.mubr.f32.gmra.mrb[0].mxu0 %v1756
        %v1827 = vpop.f32.mrb[0].mxu0
        %v1828 = vadd.f32 0.0, %v1827
        %v1829 = vpop.f32.mrb[0].mxu0
        %1830 = vdwg.mxu0
        %v1831 = vadd.f32 %v1587, %v1828
        %1832 = vrot.lane.b32.xlu0 %v455, 108
        %v1833 = vpop.permute.xlu0 %1832
        %1834 = vrot.lane.b32.xlu0 %v529, 108
        %v1835 = vpop.permute.xlu0 %1834
        %v1836 = vsel %vm615, %v1833, 0
        %v1838 = vsel %vm615, %v1835, 0
        %1840 = vmatprep.subr.mxu0 0.0
        %1841 = vmatpush1.xpose.msra.mxu0 %v1838
        %1842 = vmatprep.subr.mxu0 0.0
        %1843 = vmatpush1.xpose.msra.mxu0 0.0
        %1844 = vmatprep.subr.mxu0 0.0
        %1845 = vmatpush1.xpose.msra.mxu0 0.0
        %1846 = vmatprep.subr.mxu0 0.0
        %1847 = vmatpush1.xpose.msra.mxu0 0.0
        %1848 = vmatprep.subr.mxu0 0.0
        %1849 = vmatpush1.xpose.msra.mxu0 0.0
        %1850 = vmatprep.subr.mxu0 0.0
        %1851 = vmatpush1.xpose.msra.mxu0 0.0
        %1852 = vmatprep.subr.mxu0 0.0
        %1853 = vmatpush1.xpose.msra.mxu0 0.0
        %1854 = vmatprep.subr.mxu0 0.0
        %1855 = vmatpush1.xpose.msra.mxu0 0.0
        %1856 = vmatprep.subr.mxu0 0.0
        %1857 = vmatpush1.xpose.msra.mxu0 0.0
        %1858 = vmatprep.subr.mxu0 0.0
        %1859 = vmatpush1.xpose.msra.mxu0 0.0
        %1860 = vmatprep.subr.mxu0 0.0
        %1861 = vmatpush1.xpose.msra.mxu0 0.0
        %1862 = vmatprep.subr.mxu0 0.0
        %1863 = vmatpush1.xpose.msra.mxu0 0.0
        %1864 = vmatprep.subr.mxu0 0.0
        %1865 = vmatpush1.xpose.msra.mxu0 0.0
        %1866 = vmatprep.subr.mxu0 0.0
        %1867 = vmatpush1.xpose.msra.mxu0 0.0
        %1868 = vmatprep.subr.mxu0 0.0
        %1869 = vmatpush1.xpose.msra.mxu0 0.0
        %1870 = vmatprep.subr.mxu0 0.0
        %1871 = vmatpush1.xpose.msra.mxu0 0.0
        %1872 = vmatprep.subr.mxu0 0.0
        %1873 = vmatpush1.xpose.msra.mxu0 0.0
        %1874 = vmatprep.subr.mxu0 0.0
        %1875 = vmatpush1.xpose.msra.mxu0 0.0
        %1876 = vmatprep.subr.mxu0 0.0
        %1877 = vmatpush1.xpose.msra.mxu0 0.0
        %1878 = vmatprep.subr.mxu0 0.0
        %1879 = vmatpush1.xpose.msra.mxu0 0.0
        %1880 = vmatprep.subr.mxu0 0.0
        %1881 = vmatpush1.xpose.msra.mxu0 0.0
        %1882 = vmatprep.subr.mxu0 0.0
        %1883 = vmatpush1.xpose.msra.mxu0 0.0
        %1884 = vmatprep.subr.mxu0 0.0
        %1885 = vmatpush1.xpose.msra.mxu0 0.0
        %1886 = vmatprep.subr.mxu0 0.0
        %1887 = vmatpush1.xpose.msra.mxu0 0.0
        %1888 = vmatprep.subr.mxu0 0.0
        %1889 = vmatpush1.xpose.msra.mxu0 0.0
        %1890 = vmatprep.subr.mxu0 0.0
        %1891 = vmatpush1.xpose.msra.mxu0 0.0
        %1892 = vmatprep.subr.mxu0 0.0
        %1893 = vmatpush1.xpose.msra.mxu0 0.0
        %1894 = vmatprep.subr.mxu0 0.0
        %1895 = vmatpush1.xpose.msra.mxu0 0.0
        %1896 = vmatprep.subr.mxu0 0.0
        %1897 = vmatpush1.xpose.msra.mxu0 0.0
        %1898 = vmatprep.subr.mxu0 0.0
        %1899 = vmatpush1.xpose.msra.mxu0 0.0
        %1900 = vmatprep.subr.mxu0 0.0
        %1901 = vmatpush1.xpose.msra.mxu0 0.0
        %1902 = vmatprep.subr.mxu0 0.0
        %1903 = vmatpush1.xpose.msra.mxu0 0.0
        %1904 = vmatprep.mubr.f32.mxu0 0.0
        %1905 = vmatmul.mubr.f32.gmra.mrb[0].mxu0 %v1836
        %v1906 = vpop.f32.mrb[0].mxu0
        %v1907 = vadd.f32 0.0, %v1906
        %v1908 = vpop.f32.mrb[0].mxu0
        %1909 = vdwg.mxu0
        %v1910 = vmul.f32 %v1907, 0.5
        %v1911 = vsel %vm614, -inf, %v1910
        %v1912 = vsel %vm694, %v1911, -inf
        %1913 = vmax.xlane.f32.xlu0 %v1912
        %v1914 = vpop.xlane.xlu0 %1913
        %v1915 = vsub.f32 %v1911, %v1914
        %v1916 = vmul.f32 %v1915, 1.442695
        %v1917 = vpow.pop %v1916
        %v1918 = vsel %vm694, %v1917, 0.0
        %1919 = vadd.xlane.f32.xlu0 %v1918
        %v1920 = vpop.xlane.xlu0 %1919
        %v1921 = vrcp.pop %v1920
        %v1922 = vmul.f32 %v1917, %v1921
        %1923 = vrot.lane.b32.xlu0 %v603, 108
        %v1924 = vpop.permute.xlu0 %1923
        %v1927 = vsel %vm694, %v1922, 0
        %1929 = vmatprep.subr.mxu0 0.0
        %1930 = vmatpush1.msra.mxu0 %v1924
        %1931 = vmatprep.subr.mxu0 0.0
        %1932 = vmatpush1.msra.mxu0 0.0
        %1933 = vmatprep.subr.mxu0 0.0
        %1934 = vmatpush1.msra.mxu0 0.0
        %1935 = vmatprep.subr.mxu0 0.0
        %1936 = vmatpush1.msra.mxu0 0.0
        %1937 = vmatprep.subr.mxu0 0.0
        %1938 = vmatpush1.msra.mxu0 0.0
        %1939 = vmatprep.subr.mxu0 0.0
        %1940 = vmatpush1.msra.mxu0 0.0
        %1941 = vmatprep.subr.mxu0 0.0
        %1942 = vmatpush1.msra.mxu0 0.0
        %1943 = vmatprep.subr.mxu0 0.0
        %1944 = vmatpush1.msra.mxu0 0.0
        %1945 = vmatprep.subr.mxu0 0.0
        %1946 = vmatpush1.msra.mxu0 0.0
        %1947 = vmatprep.subr.mxu0 0.0
        %1948 = vmatpush1.msra.mxu0 0.0
        %1949 = vmatprep.subr.mxu0 0.0
        %1950 = vmatpush1.msra.mxu0 0.0
        %1951 = vmatprep.subr.mxu0 0.0
        %1952 = vmatpush1.msra.mxu0 0.0
        %1953 = vmatprep.subr.mxu0 0.0
        %1954 = vmatpush1.msra.mxu0 0.0
        %1955 = vmatprep.subr.mxu0 0.0
        %1956 = vmatpush1.msra.mxu0 0.0
        %1957 = vmatprep.subr.mxu0 0.0
        %1958 = vmatpush1.msra.mxu0 0.0
        %1959 = vmatprep.subr.mxu0 0.0
        %1960 = vmatpush1.msra.mxu0 0.0
        %1961 = vmatprep.subr.mxu0 0.0
        %1962 = vmatpush1.msra.mxu0 0.0
        %1963 = vmatprep.subr.mxu0 0.0
        %1964 = vmatpush1.msra.mxu0 0.0
        %1965 = vmatprep.subr.mxu0 0.0
        %1966 = vmatpush1.msra.mxu0 0.0
        %1967 = vmatprep.subr.mxu0 0.0
        %1968 = vmatpush1.msra.mxu0 0.0
        %1969 = vmatprep.subr.mxu0 0.0
        %1970 = vmatpush1.msra.mxu0 0.0
        %1971 = vmatprep.subr.mxu0 0.0
        %1972 = vmatpush1.msra.mxu0 0.0
        %1973 = vmatprep.subr.mxu0 0.0
        %1974 = vmatpush1.msra.mxu0 0.0
        %1975 = vmatprep.subr.mxu0 0.0
        %1976 = vmatpush1.msra.mxu0 0.0
        %1977 = vmatprep.subr.mxu0 0.0
        %1978 = vmatpush1.msra.mxu0 0.0
        %1979 = vmatprep.subr.mxu0 0.0
        %1980 = vmatpush1.msra.mxu0 0.0
        %1981 = vmatprep.subr.mxu0 0.0
        %1982 = vmatpush1.msra.mxu0 0.0
        %1983 = vmatprep.subr.mxu0 0.0
        %1984 = vmatpush1.msra.mxu0 0.0
        %1985 = vmatprep.subr.mxu0 0.0
        %1986 = vmatpush1.msra.mxu0 0.0
        %1987 = vmatprep.subr.mxu0 0.0
        %1988 = vmatpush1.msra.mxu0 0.0
        %1989 = vmatprep.subr.mxu0 0.0
        %1990 = vmatpush1.msra.mxu0 0.0
        %1991 = vmatprep.subr.mxu0 0.0
        %1992 = vmatpush1.msra.mxu0 0.0
        %1993 = vmatprep.mubr.f32.mxu0 0.0
        %1994 = vmatmul.mubr.f32.gmra.mrb[0].mxu0 %v1927
        %v1995 = vpop.f32.mrb[0].mxu0
        %v1996 = vadd.f32 0.0, %v1995
        %v1997 = vpop.f32.mrb[0].mxu0
        %1998 = vdwg.mxu0
        %v1999 = vrot.slane %v608, 4
        %v2001 = vsel %vm615, %v1996, 0
        %v2003 = vsel %vm952, %v1999, 0
        %2005 = vmatprep.subr.mxu0 0.0
        %2006 = vmatpush1.msra.mxu0 %v2003
        %2007 = vmatprep.subr.mxu0 0.0
        %2008 = vmatpush1.msra.mxu0 0.0
        %2009 = vmatprep.subr.mxu0 0.0
        %2010 = vmatpush1.msra.mxu0 0.0
        %2011 = vmatprep.subr.mxu0 0.0
        %2012 = vmatpush1.msra.mxu0 0.0
        %2013 = vmatprep.subr.mxu0 0.0
        %2014 = vmatpush1.msra.mxu0 0.0
        %2015 = vmatprep.subr.mxu0 0.0
        %2016 = vmatpush1.msra.mxu0 0.0
        %2017 = vmatprep.subr.mxu0 0.0
        %2018 = vmatpush1.msra.mxu0 0.0
        %2019 = vmatprep.subr.mxu0 0.0
        %2020 = vmatpush1.msra.mxu0 0.0
        %2021 = vmatprep.subr.mxu0 0.0
        %2022 = vmatpush1.msra.mxu0 0.0
        %2023 = vmatprep.subr.mxu0 0.0
        %2024 = vmatpush1.msra.mxu0 0.0
        %2025 = vmatprep.subr.mxu0 0.0
        %2026 = vmatpush1.msra.mxu0 0.0
        %2027 = vmatprep.subr.mxu0 0.0
        %2028 = vmatpush1.msra.mxu0 0.0
        %2029 = vmatprep.subr.mxu0 0.0
        %2030 = vmatpush1.msra.mxu0 0.0
        %2031 = vmatprep.subr.mxu0 0.0
        %2032 = vmatpush1.msra.mxu0 0.0
        %2033 = vmatprep.subr.mxu0 0.0
        %2034 = vmatpush1.msra.mxu0 0.0
        %2035 = vmatprep.subr.mxu0 0.0
        %2036 = vmatpush1.msra.mxu0 0.0
        %2037 = vmatprep.subr.mxu0 0.0
        %2038 = vmatpush1.msra.mxu0 0.0
        %2039 = vmatprep.subr.mxu0 0.0
        %2040 = vmatpush1.msra.mxu0 0.0
        %2041 = vmatprep.subr.mxu0 0.0
        %2042 = vmatpush1.msra.mxu0 0.0
        %2043 = vmatprep.subr.mxu0 0.0
        %2044 = vmatpush1.msra.mxu0 0.0
        %2045 = vmatprep.subr.mxu0 0.0
        %2046 = vmatpush1.msra.mxu0 0.0
        %2047 = vmatprep.subr.mxu0 0.0
        %2048 = vmatpush1.msra.mxu0 0.0
        %2049 = vmatprep.subr.mxu0 0.0
        %2050 = vmatpush1.msra.mxu0 0.0
        %2051 = vmatprep.subr.mxu0 0.0
        %2052 = vmatpush1.msra.mxu0 0.0
        %2053 = vmatprep.subr.mxu0 0.0
        %2054 = vmatpush1.msra.mxu0 0.0
        %2055 = vmatprep.subr.mxu0 0.0
        %2056 = vmatpush1.msra.mxu0 0.0
        %2057 = vmatprep.subr.mxu0 0.0
        %2058 = vmatpush1.msra.mxu0 0.0
        %2059 = vmatprep.subr.mxu0 0.0
        %2060 = vmatpush1.msra.mxu0 0.0
        %2061 = vmatprep.subr.mxu0 0.0
        %2062 = vmatpush1.msra.mxu0 0.0
        %2063 = vmatprep.subr.mxu0 0.0
        %2064 = vmatpush1.msra.mxu0 0.0
        %2065 = vmatprep.subr.mxu0 0.0
        %2066 = vmatpush1.msra.mxu0 0.0
        %2067 = vmatprep.subr.mxu0 0.0
        %2068 = vmatpush1.msra.mxu0 0.0
        %2069 = vmatprep.mubr.f32.mxu0 0.0
        %2070 = vmatmul.mubr.f32.gmra.mrb[0].mxu0 %v2001
        %v2071 = vpop.f32.mrb[0].mxu0
        %v2072 = vadd.f32 0.0, %v2071
        %v2073 = vpop.f32.mrb[0].mxu0
        %2074 = vdwg.mxu0
        %v2075 = vadd.f32 %v1831, %v2072
        %2076 = vrot.lane.b32.xlu0 %v455, 104
        %v2077 = vpop.permute.xlu0 %2076
        %2078 = vrot.lane.b32.xlu0 %v529, 104
        %v2079 = vpop.permute.xlu0 %2078
        %v2080 = vsel %vm615, %v2077, 0
        %v2082 = vsel %vm615, %v2079, 0
        %2084 = vmatprep.subr.mxu0 0.0
        %2085 = vmatpush1.xpose.msra.mxu0 %v2082
        %2086 = vmatprep.subr.mxu0 0.0
        %2087 = vmatpush1.xpose.msra.mxu0 0.0
        %2088 = vmatprep.subr.mxu0 0.0
        %2089 = vmatpush1.xpose.msra.mxu0 0.0
        %2090 = vmatprep.subr.mxu0 0.0
        %2091 = vmatpush1.xpose.msra.mxu0 0.0
        %2092 = vmatprep.subr.mxu0 0.0
        %2093 = vmatpush1.xpose.msra.mxu0 0.0
        %2094 = vmatprep.subr.mxu0 0.0
        %2095 = vmatpush1.xpose.msra.mxu0 0.0
        %2096 = vmatprep.subr.mxu0 0.0
        %2097 = vmatpush1.xpose.msra.mxu0 0.0
        %2098 = vmatprep.subr.mxu0 0.0
        %2099 = vmatpush1.xpose.msra.mxu0 0.0
        %2100 = vmatprep.subr.mxu0 0.0
        %2101 = vmatpush1.xpose.msra.mxu0 0.0
        %2102 = vmatprep.subr.mxu0 0.0
        %2103 = vmatpush1.xpose.msra.mxu0 0.0
        %2104 = vmatprep.subr.mxu0 0.0
        %2105 = vmatpush1.xpose.msra.mxu0 0.0
        %2106 = vmatprep.subr.mxu0 0.0
        %2107 = vmatpush1.xpose.msra.mxu0 0.0
        %2108 = vmatprep.subr.mxu0 0.0
        %2109 = vmatpush1.xpose.msra.mxu0 0.0
        %2110 = vmatprep.subr.mxu0 0.0
        %2111 = vmatpush1.xpose.msra.mxu0 0.0
        %2112 = vmatprep.subr.mxu0 0.0
        %2113 = vmatpush1.xpose.msra.mxu0 0.0
        %2114 = vmatprep.subr.mxu0 0.0
        %2115 = vmatpush1.xpose.msra.mxu0 0.0
        %2116 = vmatprep.subr.mxu0 0.0
        %2117 = vmatpush1.xpose.msra.mxu0 0.0
        %2118 = vmatprep.subr.mxu0 0.0
        %2119 = vmatpush1.xpose.msra.mxu0 0.0
        %2120 = vmatprep.subr.mxu0 0.0
        %2121 = vmatpush1.xpose.msra.mxu0 0.0
        %2122 = vmatprep.subr.mxu0 0.0
        %2123 = vmatpush1.xpose.msra.mxu0 0.0
        %2124 = vmatprep.subr.mxu0 0.0
        %2125 = vmatpush1.xpose.msra.mxu0 0.0
        %2126 = vmatprep.subr.mxu0 0.0
        %2127 = vmatpush1.xpose.msra.mxu0 0.0
        %2128 = vmatprep.subr.mxu0 0.0
        %2129 = vmatpush1.xpose.msra.mxu0 0.0
        %2130 = vmatprep.subr.mxu0 0.0
        %2131 = vmatpush1.xpose.msra.mxu0 0.0
        %2132 = vmatprep.subr.mxu0 0.0
        %2133 = vmatpush1.xpose.msra.mxu0 0.0
        %2134 = vmatprep.subr.mxu0 0.0
        %2135 = vmatpush1.xpose.msra.mxu0 0.0
        %2136 = vmatprep.subr.mxu0 0.0
        %2137 = vmatpush1.xpose.msra.mxu0 0.0
        %2138 = vmatprep.subr.mxu0 0.0
        %2139 = vmatpush1.xpose.msra.mxu0 0.0
        %2140 = vmatprep.subr.mxu0 0.0
        %2141 = vmatpush1.xpose.msra.mxu0 0.0
        %2142 = vmatprep.subr.mxu0 0.0
        %2143 = vmatpush1.xpose.msra.mxu0 0.0
        %2144 = vmatprep.subr.mxu0 0.0
        %2145 = vmatpush1.xpose.msra.mxu0 0.0
        %2146 = vmatprep.subr.mxu0 0.0
        %2147 = vmatpush1.xpose.msra.mxu0 0.0
        %2148 = vmatprep.mubr.f32.mxu0 0.0
        %2149 = vmatmul.mubr.f32.gmra.mrb[0].mxu0 %v2080
        %v2150 = vpop.f32.mrb[0].mxu0
        %v2151 = vadd.f32 0.0, %v2150
        %v2152 = vpop.f32.mrb[0].mxu0
        %2153 = vdwg.mxu0
        %v2154 = vmul.f32 %v2151, 0.5
        %v2155 = vsel %vm614, -inf, %v2154
        %v2156 = vsel %vm694, %v2155, -inf
        %2157 = vmax.xlane.f32.xlu0 %v2156
        %v2158 = vpop.xlane.xlu0 %2157
        %v2159 = vsub.f32 %v2155, %v2158
        %v2160 = vmul.f32 %v2159, 1.442695
        %v2161 = vpow.pop %v2160
        %v2162 = vsel %vm694, %v2161, 0.0
        %2163 = vadd.xlane.f32.xlu0 %v2162
        %v2164 = vpop.xlane.xlu0 %2163
        %v2165 = vrcp.pop %v2164
        %v2166 = vmul.f32 %v2161, %v2165
        %2167 = vrot.lane.b32.xlu0 %v603, 104
        %v2168 = vpop.permute.xlu0 %2167
        %v2171 = vsel %vm694, %v2166, 0
        %2173 = vmatprep.subr.mxu0 0.0
        %2174 = vmatpush1.msra.mxu0 %v2168
        %2175 = vmatprep.subr.mxu0 0.0
        %2176 = vmatpush1.msra.mxu0 0.0
        %2177 = vmatprep.subr.mxu0 0.0
        %2178 = vmatpush1.msra.mxu0 0.0
        %2179 = vmatprep.subr.mxu0 0.0
        %2180 = vmatpush1.msra.mxu0 0.0
        %2181 = vmatprep.subr.mxu0 0.0
        %2182 = vmatpush1.msra.mxu0 0.0
        %2183 = vmatprep.subr.mxu0 0.0
        %2184 = vmatpush1.msra.mxu0 0.0
        %2185 = vmatprep.subr.mxu0 0.0
        %2186 = vmatpush1.msra.mxu0 0.0
        %2187 = vmatprep.subr.mxu0 0.0
        %2188 = vmatpush1.msra.mxu0 0.0
        %2189 = vmatprep.subr.mxu0 0.0
        %2190 = vmatpush1.msra.mxu0 0.0
        %2191 = vmatprep.subr.mxu0 0.0
        %2192 = vmatpush1.msra.mxu0 0.0
        %2193 = vmatprep.subr.mxu0 0.0
        %2194 = vmatpush1.msra.mxu0 0.0
        %2195 = vmatprep.subr.mxu0 0.0
        %2196 = vmatpush1.msra.mxu0 0.0
        %2197 = vmatprep.subr.mxu0 0.0
        %2198 = vmatpush1.msra.mxu0 0.0
        %2199 = vmatprep.subr.mxu0 0.0
        %2200 = vmatpush1.msra.mxu0 0.0
        %2201 = vmatprep.subr.mxu0 0.0
        %2202 = vmatpush1.msra.mxu0 0.0
        %2203 = vmatprep.subr.mxu0 0.0
        %2204 = vmatpush1.msra.mxu0 0.0
        %2205 = vmatprep.subr.mxu0 0.0
        %2206 = vmatpush1.msra.mxu0 0.0
        %2207 = vmatprep.subr.mxu0 0.0
        %2208 = vmatpush1.msra.mxu0 0.0
        %2209 = vmatprep.subr.mxu0 0.0
        %2210 = vmatpush1.msra.mxu0 0.0
        %2211 = vmatprep.subr.mxu0 0.0
        %2212 = vmatpush1.msra.mxu0 0.0
        %2213 = vmatprep.subr.mxu0 0.0
        %2214 = vmatpush1.msra.mxu0 0.0
        %2215 = vmatprep.subr.mxu0 0.0
        %2216 = vmatpush1.msra.mxu0 0.0
        %2217 = vmatprep.subr.mxu0 0.0
        %2218 = vmatpush1.msra.mxu0 0.0
        %2219 = vmatprep.subr.mxu0 0.0
        %2220 = vmatpush1.msra.mxu0 0.0
        %2221 = vmatprep.subr.mxu0 0.0
        %2222 = vmatpush1.msra.mxu0 0.0
        %2223 = vmatprep.subr.mxu0 0.0
        %2224 = vmatpush1.msra.mxu0 0.0
        %2225 = vmatprep.subr.mxu0 0.0
        %2226 = vmatpush1.msra.mxu0 0.0
        %2227 = vmatprep.subr.mxu0 0.0
        %2228 = vmatpush1.msra.mxu0 0.0
        %2229 = vmatprep.subr.mxu0 0.0
        %2230 = vmatpush1.msra.mxu0 0.0
        %2231 = vmatprep.subr.mxu0 0.0
        %2232 = vmatpush1.msra.mxu0 0.0
        %2233 = vmatprep.subr.mxu0 0.0
        %2234 = vmatpush1.msra.mxu0 0.0
        %2235 = vmatprep.subr.mxu0 0.0
        %2236 = vmatpush1.msra.mxu0 0.0
        %2237 = vmatprep.mubr.f32.mxu0 0.0
        %2238 = vmatmul.mubr.f32.gmra.mrb[0].mxu0 %v2171
        %v2239 = vpop.f32.mrb[0].mxu0
        %v2240 = vadd.f32 0.0, %v2239
        %v2241 = vpop.f32.mrb[0].mxu0
        %2242 = vdwg.mxu0
        %v2244 = vsel %vm615, %v2240, 0
        %v2247 = vsel %vm952, %v609, 0
        %2249 = vmatprep.subr.mxu0 0.0
        %2250 = vmatpush1.msra.mxu0 %v2247
        %2251 = vmatprep.subr.mxu0 0.0
        %2252 = vmatpush1.msra.mxu0 0.0
        %2253 = vmatprep.subr.mxu0 0.0
        %2254 = vmatpush1.msra.mxu0 0.0
        %2255 = vmatprep.subr.mxu0 0.0
        %2256 = vmatpush1.msra.mxu0 0.0
        %2257 = vmatprep.subr.mxu0 0.0
        %2258 = vmatpush1.msra.mxu0 0.0
        %2259 = vmatprep.subr.mxu0 0.0
        %2260 = vmatpush1.msra.mxu0 0.0
        %2261 = vmatprep.subr.mxu0 0.0
        %2262 = vmatpush1.msra.mxu0 0.0
        %2263 = vmatprep.subr.mxu0 0.0
        %2264 = vmatpush1.msra.mxu0 0.0
        %2265 = vmatprep.subr.mxu0 0.0
        %2266 = vmatpush1.msra.mxu0 0.0
        %2267 = vmatprep.subr.mxu0 0.0
        %2268 = vmatpush1.msra.mxu0 0.0
        %2269 = vmatprep.subr.mxu0 0.0
        %2270 = vmatpush1.msra.mxu0 0.0
        %2271 = vmatprep.subr.mxu0 0.0
        %2272 = vmatpush1.msra.mxu0 0.0
        %2273 = vmatprep.subr.mxu0 0.0
        %2274 = vmatpush1.msra.mxu0 0.0
        %2275 = vmatprep.subr.mxu0 0.0
        %2276 = vmatpush1.msra.mxu0 0.0
        %2277 = vmatprep.subr.mxu0 0.0
        %2278 = vmatpush1.msra.mxu0 0.0
        %2279 = vmatprep.subr.mxu0 0.0
        %2280 = vmatpush1.msra.mxu0 0.0
        %2281 = vmatprep.subr.mxu0 0.0
        %2282 = vmatpush1.msra.mxu0 0.0
        %2283 = vmatprep.subr.mxu0 0.0
        %2284 = vmatpush1.msra.mxu0 0.0
        %2285 = vmatprep.subr.mxu0 0.0
        %2286 = vmatpush1.msra.mxu0 0.0
        %2287 = vmatprep.subr.mxu0 0.0
        %2288 = vmatpush1.msra.mxu0 0.0
        %2289 = vmatprep.subr.mxu0 0.0
        %2290 = vmatpush1.msra.mxu0 0.0
        %2291 = vmatprep.subr.mxu0 0.0
        %2292 = vmatpush1.msra.mxu0 0.0
        %2293 = vmatprep.subr.mxu0 0.0
        %2294 = vmatpush1.msra.mxu0 0.0
        %2295 = vmatprep.subr.mxu0 0.0
        %2296 = vmatpush1.msra.mxu0 0.0
        %2297 = vmatprep.subr.mxu0 0.0
        %2298 = vmatpush1.msra.mxu0 0.0
        %2299 = vmatprep.subr.mxu0 0.0
        %2300 = vmatpush1.msra.mxu0 0.0
        %2301 = vmatprep.subr.mxu0 0.0
        %2302 = vmatpush1.msra.mxu0 0.0
        %2303 = vmatprep.subr.mxu0 0.0
        %2304 = vmatpush1.msra.mxu0 0.0
        %2305 = vmatprep.subr.mxu0 0.0
        %2306 = vmatpush1.msra.mxu0 0.0
        %2307 = vmatprep.subr.mxu0 0.0
        %2308 = vmatpush1.msra.mxu0 0.0
        %2309 = vmatprep.subr.mxu0 0.0
        %2310 = vmatpush1.msra.mxu0 0.0
        %2311 = vmatprep.subr.mxu0 0.0
        %2312 = vmatpush1.msra.mxu0 0.0
        %2313 = vmatprep.mubr.f32.mxu0 0.0
        %2314 = vmatmul.mubr.f32.gmra.mrb[0].mxu0 %v2244
        %v2315 = vpop.f32.mrb[0].mxu0
        %v2316 = vadd.f32 0.0, %v2315
        %v2317 = vpop.f32.mrb[0].mxu0
        %2318 = vdwg.mxu0
        %v2319 = vadd.f32 %v2075, %v2316
        %2320 = vrot.lane.b32.xlu0 %v455, 100
        %v2321 = vpop.permute.xlu0 %2320
        %2322 = vrot.lane.b32.xlu0 %v529, 100
        %v2323 = vpop.permute.xlu0 %2322
        %v2324 = vsel %vm615, %v2321, 0
        %v2326 = vsel %vm615, %v2323, 0
        %2328 = vmatprep.subr.mxu0 0.0
        %2329 = vmatpush1.xpose.msra.mxu0 %v2326
        %2330 = vmatprep.subr.mxu0 0.0
        %2331 = vmatpush1.xpose.msra.mxu0 0.0
        %2332 = vmatprep.subr.mxu0 0.0
        %2333 = vmatpush1.xpose.msra.mxu0 0.0
        %2334 = vmatprep.subr.mxu0 0.0
        %2335 = vmatpush1.xpose.msra.mxu0 0.0
        %2336 = vmatprep.subr.mxu0 0.0
        %2337 = vmatpush1.xpose.msra.mxu0 0.0
        %2338 = vmatprep.subr.mxu0 0.0
        %2339 = vmatpush1.xpose.msra.mxu0 0.0
        %2340 = vmatprep.subr.mxu0 0.0
        %2341 = vmatpush1.xpose.msra.mxu0 0.0
        %2342 = vmatprep.subr.mxu0 0.0
        %2343 = vmatpush1.xpose.msra.mxu0 0.0
        %2344 = vmatprep.subr.mxu0 0.0
        %2345 = vmatpush1.xpose.msra.mxu0 0.0
        %2346 = vmatprep.subr.mxu0 0.0
        %2347 = vmatpush1.xpose.msra.mxu0 0.0
        %2348 = vmatprep.subr.mxu0 0.0
        %2349 = vmatpush1.xpose.msra.mxu0 0.0
        %2350 = vmatprep.subr.mxu0 0.0
        %2351 = vmatpush1.xpose.msra.mxu0 0.0
        %2352 = vmatprep.subr.mxu0 0.0
        %2353 = vmatpush1.xpose.msra.mxu0 0.0
        %2354 = vmatprep.subr.mxu0 0.0
        %2355 = vmatpush1.xpose.msra.mxu0 0.0
        %2356 = vmatprep.subr.mxu0 0.0
        %2357 = vmatpush1.xpose.msra.mxu0 0.0
        %2358 = vmatprep.subr.mxu0 0.0
        %2359 = vmatpush1.xpose.msra.mxu0 0.0
        %2360 = vmatprep.subr.mxu0 0.0
        %2361 = vmatpush1.xpose.msra.mxu0 0.0
        %2362 = vmatprep.subr.mxu0 0.0
        %2363 = vmatpush1.xpose.msra.mxu0 0.0
        %2364 = vmatprep.subr.mxu0 0.0
        %2365 = vmatpush1.xpose.msra.mxu0 0.0
        %2366 = vmatprep.subr.mxu0 0.0
        %2367 = vmatpush1.xpose.msra.mxu0 0.0
        %2368 = vmatprep.subr.mxu0 0.0
        %2369 = vmatpush1.xpose.msra.mxu0 0.0
        %2370 = vmatprep.subr.mxu0 0.0
        %2371 = vmatpush1.xpose.msra.mxu0 0.0
        %2372 = vmatprep.subr.mxu0 0.0
        %2373 = vmatpush1.xpose.msra.mxu0 0.0
        %2374 = vmatprep.subr.mxu0 0.0
        %2375 = vmatpush1.xpose.msra.mxu0 0.0
        %2376 = vmatprep.subr.mxu0 0.0
        %2377 = vmatpush1.xpose.msra.mxu0 0.0
        %2378 = vmatprep.subr.mxu0 0.0
        %2379 = vmatpush1.xpose.msra.mxu0 0.0
        %2380 = vmatprep.subr.mxu0 0.0
        %2381 = vmatpush1.xpose.msra.mxu0 0.0
        %2382 = vmatprep.subr.mxu0 0.0
        %2383 = vmatpush1.xpose.msra.mxu0 0.0
        %2384 = vmatprep.subr.mxu0 0.0
        %2385 = vmatpush1.xpose.msra.mxu0 0.0
        %2386 = vmatprep.subr.mxu0 0.0
        %2387 = vmatpush1.xpose.msra.mxu0 0.0
        %2388 = vmatprep.subr.mxu0 0.0
        %2389 = vmatpush1.xpose.msra.mxu0 0.0
        %2390 = vmatprep.subr.mxu0 0.0
        %2391 = vmatpush1.xpose.msra.mxu0 0.0
        %2392 = vmatprep.mubr.f32.mxu0 0.0
        %2393 = vmatmul.mubr.f32.gmra.mrb[0].mxu0 %v2324
        %v2394 = vpop.f32.mrb[0].mxu0
        %v2395 = vadd.f32 0.0, %v2394
        %v2396 = vpop.f32.mrb[0].mxu0
        %2397 = vdwg.mxu0
        %v2398 = vmul.f32 %v2395, 0.5
        %v2399 = vsel %vm614, -inf, %v2398
        %v2400 = vsel %vm694, %v2399, -inf
        %2401 = vmax.xlane.f32.xlu0 %v2400
        %v2402 = vpop.xlane.xlu0 %2401
        %v2403 = vsub.f32 %v2399, %v2402
        %v2404 = vmul.f32 %v2403, 1.442695
        %v2405 = vpow.pop %v2404
        %v2406 = vsel %vm694, %v2405, 0.0
        %2407 = vadd.xlane.f32.xlu0 %v2406
        %v2408 = vpop.xlane.xlu0 %2407
        %v2409 = vrcp.pop %v2408
        %v2410 = vmul.f32 %v2405, %v2409
        %2411 = vrot.lane.b32.xlu0 %v603, 100
        %v2412 = vpop.permute.xlu0 %2411
        %v2415 = vsel %vm694, %v2410, 0
        %2417 = vmatprep.subr.mxu0 0.0
        %2418 = vmatpush1.msra.mxu0 %v2412
        %2419 = vmatprep.subr.mxu0 0.0
        %2420 = vmatpush1.msra.mxu0 0.0
        %2421 = vmatprep.subr.mxu0 0.0
        %2422 = vmatpush1.msra.mxu0 0.0
        %2423 = vmatprep.subr.mxu0 0.0
        %2424 = vmatpush1.msra.mxu0 0.0
        %2425 = vmatprep.subr.mxu0 0.0
        %2426 = vmatpush1.msra.mxu0 0.0
        %2427 = vmatprep.subr.mxu0 0.0
        %2428 = vmatpush1.msra.mxu0 0.0
        %2429 = vmatprep.subr.mxu0 0.0
        %2430 = vmatpush1.msra.mxu0 0.0
        %2431 = vmatprep.subr.mxu0 0.0
        %2432 = vmatpush1.msra.mxu0 0.0
        %2433 = vmatprep.subr.mxu0 0.0
        %2434 = vmatpush1.msra.mxu0 0.0
        %2435 = vmatprep.subr.mxu0 0.0
        %2436 = vmatpush1.msra.mxu0 0.0
        %2437 = vmatprep.subr.mxu0 0.0
        %2438 = vmatpush1.msra.mxu0 0.0
        %2439 = vmatprep.subr.mxu0 0.0
        %2440 = vmatpush1.msra.mxu0 0.0
        %2441 = vmatprep.subr.mxu0 0.0
        %2442 = vmatpush1.msra.mxu0 0.0
        %2443 = vmatprep.subr.mxu0 0.0
        %2444 = vmatpush1.msra.mxu0 0.0
        %2445 = vmatprep.subr.mxu0 0.0
        %2446 = vmatpush1.msra.mxu0 0.0
        %2447 = vmatprep.subr.mxu0 0.0
        %2448 = vmatpush1.msra.mxu0 0.0
        %2449 = vmatprep.subr.mxu0 0.0
        %2450 = vmatpush1.msra.mxu0 0.0
        %2451 = vmatprep.subr.mxu0 0.0
        %2452 = vmatpush1.msra.mxu0 0.0
        %2453 = vmatprep.subr.mxu0 0.0
        %2454 = vmatpush1.msra.mxu0 0.0
        %2455 = vmatprep.subr.mxu0 0.0
        %2456 = vmatpush1.msra.mxu0 0.0
        %2457 = vmatprep.subr.mxu0 0.0
        %2458 = vmatpush1.msra.mxu0 0.0
        %2459 = vmatprep.subr.mxu0 0.0
        %2460 = vmatpush1.msra.mxu0 0.0
        %2461 = vmatprep.subr.mxu0 0.0
        %2462 = vmatpush1.msra.mxu0 0.0
        %2463 = vmatprep.subr.mxu0 0.0
        %2464 = vmatpush1.msra.mxu0 0.0
        %2465 = vmatprep.subr.mxu0 0.0
        %2466 = vmatpush1.msra.mxu0 0.0
        %2467 = vmatprep.subr.mxu0 0.0
        %2468 = vmatpush1.msra.mxu0 0.0
        %2469 = vmatprep.subr.mxu0 0.0
        %2470 = vmatpush1.msra.mxu0 0.0
        %2471 = vmatprep.subr.mxu0 0.0
        %2472 = vmatpush1.msra.mxu0 0.0
        %2473 = vmatprep.subr.mxu0 0.0
        %2474 = vmatpush1.msra.mxu0 0.0
        %2475 = vmatprep.subr.mxu0 0.0
        %2476 = vmatpush1.msra.mxu0 0.0
        %2477 = vmatprep.subr.mxu0 0.0
        %2478 = vmatpush1.msra.mxu0 0.0
        %2479 = vmatprep.subr.mxu0 0.0
        %2480 = vmatpush1.msra.mxu0 0.0
        %2481 = vmatprep.mubr.f32.mxu0 0.0
        %2482 = vmatmul.mubr.f32.gmra.mrb[0].mxu0 %v2415
        %v2483 = vpop.f32.mrb[0].mxu0
        %v2484 = vadd.f32 0.0, %v2483
        %v2485 = vpop.f32.mrb[0].mxu0
        %2486 = vdwg.mxu0
        %v2487 = vrot.slane %v609, 4
        %v2489 = vsel %vm615, %v2484, 0
        %v2491 = vsel %vm952, %v2487, 0
        %2493 = vmatprep.subr.mxu0 0.0
        %2494 = vmatpush1.msra.mxu0 %v2491
        %2495 = vmatprep.subr.mxu0 0.0
        %2496 = vmatpush1.msra.mxu0 0.0
        %2497 = vmatprep.subr.mxu0 0.0
        %2498 = vmatpush1.msra.mxu0 0.0
        %2499 = vmatprep.subr.mxu0 0.0
        %2500 = vmatpush1.msra.mxu0 0.0
        %2501 = vmatprep.subr.mxu0 0.0
        %2502 = vmatpush1.msra.mxu0 0.0
        %2503 = vmatprep.subr.mxu0 0.0
        %2504 = vmatpush1.msra.mxu0 0.0
        %2505 = vmatprep.subr.mxu0 0.0
        %2506 = vmatpush1.msra.mxu0 0.0
        %2507 = vmatprep.subr.mxu0 0.0
        %2508 = vmatpush1.msra.mxu0 0.0
        %2509 = vmatprep.subr.mxu0 0.0
        %2510 = vmatpush1.msra.mxu0 0.0
        %2511 = vmatprep.subr.mxu0 0.0
        %2512 = vmatpush1.msra.mxu0 0.0
        %2513 = vmatprep.subr.mxu0 0.0
        %2514 = vmatpush1.msra.mxu0 0.0
        %2515 = vmatprep.subr.mxu0 0.0
        %2516 = vmatpush1.msra.mxu0 0.0
        %2517 = vmatprep.subr.mxu0 0.0
        %2518 = vmatpush1.msra.mxu0 0.0
        %2519 = vmatprep.subr.mxu0 0.0
        %2520 = vmatpush1.msra.mxu0 0.0
        %2521 = vmatprep.subr.mxu0 0.0
        %2522 = vmatpush1.msra.mxu0 0.0
        %2523 = vmatprep.subr.mxu0 0.0
        %2524 = vmatpush1.msra.mxu0 0.0
        %2525 = vmatprep.subr.mxu0 0.0
        %2526 = vmatpush1.msra.mxu0 0.0
        %2527 = vmatprep.subr.mxu0 0.0
        %2528 = vmatpush1.msra.mxu0 0.0
        %2529 = vmatprep.subr.mxu0 0.0
        %2530 = vmatpush1.msra.mxu0 0.0
        %2531 = vmatprep.subr.mxu0 0.0
        %2532 = vmatpush1.msra.mxu0 0.0
        %2533 = vmatprep.subr.mxu0 0.0
        %2534 = vmatpush1.msra.mxu0 0.0
        %2535 = vmatprep.subr.mxu0 0.0
        %2536 = vmatpush1.msra.mxu0 0.0
        %2537 = vmatprep.subr.mxu0 0.0
        %2538 = vmatpush1.msra.mxu0 0.0
        %2539 = vmatprep.subr.mxu0 0.0
        %2540 = vmatpush1.msra.mxu0 0.0
        %2541 = vmatprep.subr.mxu0 0.0
        %2542 = vmatpush1.msra.mxu0 0.0
        %2543 = vmatprep.subr.mxu0 0.0
        %2544 = vmatpush1.msra.mxu0 0.0
        %2545 = vmatprep.subr.mxu0 0.0
        %2546 = vmatpush1.msra.mxu0 0.0
        %2547 = vmatprep.subr.mxu0 0.0
        %2548 = vmatpush1.msra.mxu0 0.0
        %2549 = vmatprep.subr.mxu0 0.0
        %2550 = vmatpush1.msra.mxu0 0.0
        %2551 = vmatprep.subr.mxu0 0.0
        %2552 = vmatpush1.msra.mxu0 0.0
        %2553 = vmatprep.subr.mxu0 0.0
        %2554 = vmatpush1.msra.mxu0 0.0
        %2555 = vmatprep.subr.mxu0 0.0
        %2556 = vmatpush1.msra.mxu0 0.0
        %2557 = vmatprep.mubr.f32.mxu0 0.0
        %2558 = vmatmul.mubr.f32.gmra.mrb[0].mxu0 %v2489
        %v2559 = vpop.f32.mrb[0].mxu0
        %v2560 = vadd.f32 0.0, %v2559
        %v2561 = vpop.f32.mrb[0].mxu0
        %2562 = vdwg.mxu0
        %v2563 = vadd.f32 %v2319, %v2560
        %v2564 = vld [vmem:[%s5] sm:$0x1]
        %v2566 = vlaneseq
        %v2567 = vshrl.u32 %v2566, 7
        %v2568 = vsub.s32 0, %v2567
        %v2569 = vrot.slane %v2564, %v2568
        %v2571 = vadd.f32 %v2563, %v2569
        %v2572 = vadd.f32 %v2571, %v379
        %v2573 = vsel %vm384, %v2572, 0.0
        %2574 = vadd.xlane.f32.xlu0 %v2573
        %v2575 = vpop.xlane.xlu0 %2574
        %v2576 = vrcp.pop 32.0
        %v2577 = vmul.f32 %v2575, %v2576
        %v2578 = vsub.f32 %v2572, %v2577
        %v2579 = vmul.f32 %v2578, %v2578
        %v2580 = vsel %vm384, %v2579, 0.0
        %2581 = vadd.xlane.f32.xlu0 %v2580
        %v2582 = vpop.xlane.xlu0 %2581
        %v2583 = vmul.f32 %v2582, %v2576
        %v2584 = vadd.f32 %v2583, 1e-05
        %v2585 = vrsqrt.pop %v2584
        %v2586 = vmul.f32 %v2578, %v2585
        %v2587 = vld [vmem:[%s6] sm:$0x1]
        %v2589 = vlaneseq
        %v2590 = vshrl.u32 %v2589, 7
        %v2591 = vsub.s32 0, %v2590
        %v2592 = vrot.slane %v2587, %v2591
        %v2594 = vmul.f32 %v2586, %v2592
        %v2595 = vld [vmem:[%s7] sm:$0x1]
        %v2597 = vlaneseq
        %v2598 = vshrl.u32 %v2597, 7
        %v2599 = vsub.s32 0, %v2598
        %v2600 = vrot.slane %v2595, %v2599
        %v2602 = vadd.f32 %v2594, %v2600
        %2603 = vst.msk [vmem:[%s378] sm:$0xff] %vm384, %v2602
        %s2604 = sand.u32 %s208, 1
        %s2605 = scalar_lea.sflag [#allocation4], %s2604
        %s2606 = sand.u32 %s208, 1
        %s2607 = smul.addr %s2606, 8
        %s2608 = scalar_lea.vmem [#allocation11], %s2607
        // Predicated region
        $region73: #{tpu_custom_call.1} parent=51 // pred_check
          %p2609 = pneg %p218
        $region74: #{tpu_custom_call.1} parent=51 // pred_check_branch
          %2611 = sbr.rel (%p2609) target = $region76
        $region75: #{tpu_custom_call.1} parent=51 // pred_region
          %s2613 = ssub.s32 128, 128
          %2614 = vsyncadd %s2605, %s2613
          %s2615 = smul.addr %s27, 128
          %s2616 = scalar_lea.hbm %s8, %s2615
          %s2618 = sshll.u32 %s2608, 4
          %s2619 = int_to_ptr.vmem [resolvable:$true] %s2618
          %2621 = dma.vmem_to_hbm [thread:$0]  %s2619, 128, %s2616, %s2605
        $region76: #{tpu_custom_call.1} parent=51 // pred_fallthru
          _
      $region52: #{tpu_custom_call.1} parent=5 // pred_fallthru
        _
      %p2622 = scmp.le.s32.totalorder 2, %s22
      // Predicated region
      $region77: #{tpu_custom_call.1} parent=5 // pred_check
        %p2623 = pneg %p2622
      $region78: #{tpu_custom_call.1} parent=5 // pred_check_branch
        %2625 = sbr.rel (%p2623) target = $region80
      $region79: #{tpu_custom_call.1} parent=5 // pred_region
        %s2626 = ssub.s32 %s22, 2
        // Predicated region
        $region81: #{tpu_custom_call.1} parent=79 // pred_check
          %p2627 = pneg %p224
        $region82: #{tpu_custom_call.1} parent=79 // pred_check_branch
          %2629 = sbr.rel (%p2627) target = $region84
        $region83: #{tpu_custom_call.1} parent=79 // pred_region
          %s2630 = sand.u32 %s209, 1
          %s2631 = scalar_lea.sflag [#allocation4], %s2630
          %s2632 = sand.u32 %s209, 1
          %s2633 = smul.addr %s2632, 8
          %s2634 = scalar_lea.vmem [#allocation11], %s2633
          %2635 = dma.done %s2631, 128
        $region84: #{tpu_custom_call.1} parent=79 // pred_fallthru
          _
      $region80: #{tpu_custom_call.1} parent=5 // pred_fallthru
        _
    $region6: #{tpu_custom_call.1} parent=1 // loop_footer
      %s26 = sadd.s32 1, %s22
    $region7: #{tpu_custom_call.1} parent=1 // loop_footer_branch
      %21 = sbr.rel target = $region3
    $region8: #{tpu_custom_call.1} parent=1 // loop_exit
      _
    %2636 = vsyncpa [#allocation3], 1
    %s2637 = scalar_lea.sflag [#allocation3], 1
    %2638 = vsyncpa %s2637, 1
    %2639 = vsyncpa [#allocation6], 1
    %2640 = vsyncpa [#allocation9], 1
    %2641 = vsyncpa [#allocation4], 1
    %s2642 = scalar_lea.sflag [#allocation4], 1
    %2643 = vsyncpa %s2642, 1

</llo_original>
